<compile_context>
chip_gen: v7x
topology: tpu7x:2x2x1
jax: 0.10.0
libtpu: 0.0.40
codegen_flags: <defaults>
</compile_context>

<pallas_src>
import functools

import numpy as np

import jax
import jax.numpy as jnp
from jax.experimental import pallas as pl
from jax.experimental.pallas import tpu as pltpu


# --------------------- fused pool + double_conv kernel ----------------------
def _down_fused_kernel(x_ref, w1_ref, b1_ref, w2_ref, b2_ref, o_ref,
                       xk_ref, yk_ref, *, H2, W2, compute_dtype):
    """MaxPool2x2 -> conv3x3+BN+ReLU -> conv3x3+BN+ReLU for one image.

    x_ref : (H2, 2, W2, 2, Cin)  un-pooled rows, 2x2 pool windows exposed
    w*_ref: (3, 3*C, Cout)       dy-indexed, dx folded into K (BN-scale folded)
    b*_ref: (1, Cout)            folded conv-bias + BN bias (f32)
    o_ref : (1, H2, W2, Cout)
    xk_ref: (H2+2, W2, 3*Cin)    scratch: zero-padded, dx-packed conv1 operand
    yk_ref: (H2+2, W2, 3*Cout)   scratch: zero-padded, dx-packed conv2 operand
    """
    dt = compute_dtype
    cin = x_ref.shape[-1]
    cout = o_ref.shape[-1]
    m = H2 * W2

    def pack_dx(img, c):
        # img: (H2, W2, c) -> (H2, W2, 3c); lane block dx holds the image
        # shifted by (dx - 1) columns with zero fill, i.e. the 3 horizontal
        # conv taps packed into the MXU contraction dim.
        zc = jnp.zeros((H2, 1, c), img.dtype)
        left = jnp.concatenate([zc, img[:, :W2 - 1, :]], axis=1)    # dx = 0
        right = jnp.concatenate([img[:, 1:, :], zc], axis=1)        # dx = 2
        return jnp.concatenate([left, img, right], axis=-1)

    def conv3x3_bn_relu(inp_ref, w_ref, b_ref, c):
        # inp_ref[r, w, dx*c:(dx+1)*c] == padded_image[r, w + dx]; the per-dy
        # slices move only along the untiled leading dim -> always aligned.
        acc = jnp.zeros((m, cout), jnp.float32)
        for dy in range(3):
            lhs = inp_ref[dy:dy + H2].reshape(m, 3 * c)
            acc += jnp.dot(lhs, w_ref[dy], preferred_element_type=jnp.float32)
        return jnp.maximum(acc + b_ref[...], 0.0)                   # (m, Cout) f32

    # ---- fused 2x2 max pool (window dims exposed by a free wrapper reshape) -
    x = x_ref[...]
    pooled = jnp.maximum(jnp.maximum(x[:, 0, :, 0, :], x[:, 0, :, 1, :]),
                         jnp.maximum(x[:, 1, :, 0, :], x[:, 1, :, 1, :]))
    pooled = pooled.astype(dt)                                      # (H2, W2, Cin)

    # ---- conv1 operand: two zero border rows + one dense interior store ----
    xk_ref[0] = jnp.zeros((W2, 3 * cin), dt)
    xk_ref[H2 + 1] = jnp.zeros((W2, 3 * cin), dt)
    xk_ref[1:H2 + 1] = pack_dx(pooled, cin)
    y1 = conv3x3_bn_relu(xk_ref, w1_ref, b1_ref, cin)               # conv1+BN+ReLU

    # ---- conv2 operand (conv1 activation never leaves VMEM) ----------------
    yk_ref[0] = jnp.zeros((W2, 3 * cout), dt)
    yk_ref[H2 + 1] = jnp.zeros((W2, 3 * cout), dt)
    yk_ref[1:H2 + 1] = pack_dx(y1.reshape(H2, W2, cout).astype(dt), cout)
    y2 = conv3x3_bn_relu(yk_ref, w2_ref, b2_ref, cout)              # conv2+BN+ReLU

    # ---- single dense output store (no junk columns, no masking) -----------
    o_ref[0] = y2.reshape(H2, W2, cout).astype(o_ref.dtype)


# ------------------------------ helpers -------------------------------------
def _vmem_limit_bytes(working_bytes):
    """Generation-aware VMEM limit: <= ~85% of per-core capacity."""
    try:
        cap = int(pltpu.get_tpu_info().vmem_capacity_bytes)
    except Exception:
        cap = 64 << 20                      # conservative: v7x per-TC VMEM
    want = 2 * int(working_bytes) + (8 << 20)   # double-buffered blocks + slack
    return int(min(max(want, 32 << 20), int(cap * 0.85)))


def _fold_bn_into_conv(w_pt, b_conv, gamma, beta, mean, var, *, eps,
                       compute_dtype):
    """Fold eval-mode BN into the conv; pack dx taps into the K dim.

    w_pt: (Cout, Cin, 3, 3) OIHW -> (3, 3*Cin, Cout) with K ordered
    [dx=0 | dx=1 | dx=2] x Cin.  bias: (1, Cout) f32.
    """
    cout, cin = w_pt.shape[0], w_pt.shape[1]
    scale = gamma / jnp.sqrt(var + eps)                      # (Cout,)
    bias = beta + scale * (b_conv - mean)                    # (Cout,)
    w = jnp.transpose(w_pt, (2, 3, 1, 0)).reshape(3, 3 * cin, cout)
    w = (w * scale[None, None, :]).astype(compute_dtype)
    return w, bias.reshape(1, cout).astype(jnp.float32)


# ------------------------------- `down` -------------------------------------
def down_forward(x, params, *, eps=1e-5, compute_dtype=jnp.bfloat16,
                 channels_last=False):
    """Pallas TPU forward of `down` (MaxPool2d(2) + double_conv).

    x: (N, C, H, W) like PyTorch, or (N, H, W, C) if channels_last=True
    (the kernel is channels-last native; channels_last avoids the transposes).
    """
    x_nhwc = x if channels_last else jnp.transpose(x, (0, 2, 3, 1))
    N, H, W, Cin = x_nhwc.shape
    assert H % 2 == 0 and W % 2 == 0, "MaxPool2d(2) path assumes even H, W"
    H2, W2 = H // 2, W // 2
    assert H2 >= 1 and W2 >= 2

    w1, b1 = _fold_bn_into_conv(*params["conv1"], eps=eps,
                                compute_dtype=compute_dtype)
    w2, b2 = _fold_bn_into_conv(*params["conv2"], eps=eps,
                                compute_dtype=compute_dtype)
    Cout = w1.shape[-1]

    # Expose the 2x2 pool windows; row-major split => free (view) reshape.
    x5 = x_nhwc.astype(compute_dtype).reshape(N * H2, 2, W2, 2, Cin)

    itm = jnp.dtype(compute_dtype).itemsize
    working_bytes = (
        H2 * 2 * W2 * 2 * Cin * itm                          # input block
        + (3 * 3 * Cin * Cout + 3 * 3 * Cout * Cout) * itm   # packed weights
        + 2 * Cout * 4                                       # biases
        + H2 * W2 * Cout * 4                                 # output block (f32)
        + (H2 + 2) * W2 * 3 * (Cin + Cout) * itm             # VMEM scratches
        + 4 * H2 * W2 * Cout * 4)                            # live f32 accumulators

    kern = functools.partial(_down_fused_kernel, H2=H2, W2=W2,
                             compute_dtype=compute_dtype)
    y = pl.pallas_call(
        kern,
        out_shape=jax.ShapeDtypeStruct((N, H2, W2, Cout), jnp.float32),
        grid=(N,),
        in_specs=[
            pl.BlockSpec((H2, 2, W2, 2, Cin), lambda n: (n, 0, 0, 0, 0)),
            pl.BlockSpec((3, 3 * Cin, Cout), lambda n: (0, 0, 0)),
            pl.BlockSpec((1, Cout), lambda n: (0, 0)),
            pl.BlockSpec((3, 3 * Cout, Cout), lambda n: (0, 0, 0)),
            pl.BlockSpec((1, Cout), lambda n: (0, 0)),
        ],
        out_specs=pl.BlockSpec((1, H2, W2, Cout), lambda n: (n, 0, 0, 0)),
        scratch_shapes=[
            pltpu.VMEM((H2 + 2, W2, 3 * Cin), compute_dtype),
            pltpu.VMEM((H2 + 2, W2, 3 * Cout), compute_dtype),
        ],
        compiler_params=pltpu.CompilerParams(
            dimension_semantics=("parallel",),
            vmem_limit_bytes=_vmem_limit_bytes(working_bytes)),
    )(x5, w1, b1, w2, b2)

    return y if channels_last else jnp.transpose(y, (0, 3, 1, 2))   # -> NCHW


def init_params(key, in_ch, out_ch):
    def conv_block(k, cin, cout):
        kw, kb, kg, kbe, km, kv = jax.random.split(k, 6)
        w = 0.1 * jax.random.normal(kw, (cout, cin, 3, 3), jnp.float32)
        b = 0.1 * jax.random.normal(kb, (cout,), jnp.float32)
        gamma = 1.0 + 0.1 * jax.random.normal(kg, (cout,), jnp.float32)
        beta = 0.1 * jax.random.normal(kbe, (cout,), jnp.float32)
        mean = 0.1 * jax.random.normal(km, (cout,), jnp.float32)
        var = 1.0 + 0.5 * jax.random.uniform(kv, (cout,), jnp.float32)
        return (w, b, gamma, beta, mean, var)

    k1, k2 = jax.random.split(key)
    return {"conv1": conv_block(k1, in_ch, out_ch),
            "conv2": conv_block(k2, out_ch, out_ch)}


# ----------------------- pure-JAX reference (checking) ----------------------
def down_reference(x_nchw, params, eps=1e-5):
    x = jnp.transpose(x_nchw, (0, 2, 3, 1))
    x = jax.lax.reduce_window(x, -jnp.inf, jax.lax.max,
                              (1, 2, 2, 1), (1, 2, 2, 1), "VALID")
    for name in ("conv1", "conv2"):
        w, b, gamma, beta, mean, var = params[name]
        rhs = jnp.transpose(w, (2, 3, 1, 0))          # OIHW -> HWIO
        x = jax.lax.conv_general_dilated(
            x, rhs, (1, 1), ((1, 1), (1, 1)),
            dimension_numbers=("NHWC", "HWIO", "NHWC"))
        x = x + b
        x = gamma * (x - mean) / jnp.sqrt(var + eps) + beta
        x = jnp.maximum(x, 0.0)
    return jnp.transpose(x, (0, 3, 1, 2))


if __name__ == "__main__":
    key = jax.random.PRNGKey(0)
    kx, kp = jax.random.split(key)
    N, in_ch, out_ch, H, W = 2, 4, 8, 16, 16

    x = jax.random.normal(kx, (N, in_ch, H, W), jnp.float32)   # NCHW like PyTorch
    params = init_params(kp, in_ch, out_ch)

    out = jax.block_until_ready(down_forward(x, params))
    ref = down_reference(x, params)

    assert out.shape == (N, out_ch, H // 2, W // 2), out.shape
    # bf16 activations/weights in the kernel vs f32 reference -> relaxed tol
    np.testing.assert_allclose(np.asarray(out), np.asarray(ref),
                               rtol=5e-2, atol=5e-2)
    print("KERNEL_OK")
</pallas_src>

<mosaic_0001>
module attributes {stable_mosaic.version = 11 : i64} {
  func.func @_down_fused_kernel(%arg0: i32, %arg1: memref<8x2x8x2x4xbf16, #tpu.memory_space<vmem>>, %arg2: memref<3x12x8xbf16, #tpu.memory_space<vmem>>, %arg3: memref<1x8xf32, #tpu.memory_space<vmem>>, %arg4: memref<3x24x8xbf16, #tpu.memory_space<vmem>>, %arg5: memref<1x8xf32, #tpu.memory_space<vmem>>, %arg6: memref<1x8x8x8xf32, #tpu.memory_space<vmem>>, %arg7: memref<10x8x12xbf16, #tpu.memory_space<vmem>>, %arg8: memref<10x8x24xbf16, #tpu.memory_space<vmem>>) attributes {dimension_semantics = [#tpu.dimension_semantics<parallel>], iteration_bounds = array<i64: 2>, scalar_prefetch = 0 : i64, scratch_operands = 2 : i64, tpu.core_type = #tpu.core_type<tc>, window_params = [{transform_indices = @transform_0, window_bounds = array<i64: 8, 2, 8, 2, 4>}, {pipeline_mode = #tpu.pipeline_mode<synchronous>, transform_indices = @transform_1, window_bounds = array<i64: 3, 12, 8>}, {pipeline_mode = #tpu.pipeline_mode<synchronous>, transform_indices = @transform_2, window_bounds = array<i64: 1, 8>}, {pipeline_mode = #tpu.pipeline_mode<synchronous>, transform_indices = @transform_3, window_bounds = array<i64: 3, 24, 8>}, {pipeline_mode = #tpu.pipeline_mode<synchronous>, transform_indices = @transform_4, window_bounds = array<i64: 1, 8>}, {transform_indices = @transform_5, window_bounds = array<i64: 1, 8, 8, 8>}]} {
    %c0 = arith.constant 0 : index
    %c0_0 = arith.constant 0 : index
    %c0_1 = arith.constant 0 : index
    %c0_2 = arith.constant 0 : index
    %c0_3 = arith.constant 0 : index
    %0 = vector.load %arg1[%c0, %c0_0, %c0_1, %c0_2, %c0_3] : memref<8x2x8x2x4xbf16, #tpu.memory_space<vmem>>, vector<8x2x8x2x4xbf16>
    %1 = vector.extract_strided_slice %0 {offsets = [0, 0, 0, 0, 0], sizes = [8, 1, 8, 1, 4], strides = [1, 1, 1, 1, 1]} : vector<8x2x8x2x4xbf16> to vector<8x1x8x1x4xbf16>
    %2 = vector.shape_cast %1 : vector<8x1x8x1x4xbf16> to vector<8x8x4xbf16>
    %3 = vector.extract_strided_slice %0 {offsets = [0, 0, 0, 1, 0], sizes = [8, 1, 8, 1, 4], strides = [1, 1, 1, 1, 1]} : vector<8x2x8x2x4xbf16> to vector<8x1x8x1x4xbf16>
    %4 = vector.shape_cast %3 : vector<8x1x8x1x4xbf16> to vector<8x8x4xbf16>
    %5 = arith.maximumf %2, %4 : vector<8x8x4xbf16>
    %6 = vector.extract_strided_slice %0 {offsets = [0, 1, 0, 0, 0], sizes = [8, 1, 8, 1, 4], strides = [1, 1, 1, 1, 1]} : vector<8x2x8x2x4xbf16> to vector<8x1x8x1x4xbf16>
    %7 = vector.shape_cast %6 : vector<8x1x8x1x4xbf16> to vector<8x8x4xbf16>
    %8 = vector.extract_strided_slice %0 {offsets = [0, 1, 0, 1, 0], sizes = [8, 1, 8, 1, 4], strides = [1, 1, 1, 1, 1]} : vector<8x2x8x2x4xbf16> to vector<8x1x8x1x4xbf16>
    %9 = vector.shape_cast %8 : vector<8x1x8x1x4xbf16> to vector<8x8x4xbf16>
    %10 = arith.maximumf %7, %9 : vector<8x8x4xbf16>
    %11 = arith.maximumf %5, %10 : vector<8x8x4xbf16>
    %cst = arith.constant 0.000000e+00 : bf16
    %12 = vector.broadcast %cst : bf16 to vector<8x12xbf16>
    %c0_4 = arith.constant 0 : index
    %c0_5 = arith.constant 0 : index
    %c0_6 = arith.constant 0 : index
    %13 = vector.load %arg7[%c0_4, %c0_5, %c0_6] : memref<10x8x12xbf16, #tpu.memory_space<vmem>>, vector<1x8x12xbf16>
    %14 = vector.shape_cast %13 : vector<1x8x12xbf16> to vector<8x12xbf16>
    %15 = vector.shape_cast %12 : vector<8x12xbf16> to vector<1x8x12xbf16>
    tpu.vector_store %arg7[%c0_4, %c0_5, %c0_6], %15 {strides = array<i32>} : memref<10x8x12xbf16, #tpu.memory_space<vmem>>, vector<1x8x12xbf16>,
    %cst_7 = arith.constant 0.000000e+00 : bf16
    %16 = vector.broadcast %cst_7 : bf16 to vector<8x12xbf16>
    %c9 = arith.constant 9 : index
    %c0_8 = arith.constant 0 : index
    %c0_9 = arith.constant 0 : index
    %17 = vector.load %arg7[%c9, %c0_8, %c0_9] : memref<10x8x12xbf16, #tpu.memory_space<vmem>>, vector<1x8x12xbf16>
    %18 = vector.shape_cast %17 : vector<1x8x12xbf16> to vector<8x12xbf16>
    %19 = vector.shape_cast %16 : vector<8x12xbf16> to vector<1x8x12xbf16>
    tpu.vector_store %arg7[%c9, %c0_8, %c0_9], %19 {strides = array<i32>} : memref<10x8x12xbf16, #tpu.memory_space<vmem>>, vector<1x8x12xbf16>,
    %cst_10 = arith.constant 0.000000e+00 : bf16
    %20 = vector.broadcast %cst_10 : bf16 to vector<8x1x4xbf16>
    %21 = vector.extract_strided_slice %11 {offsets = [0, 0, 0], sizes = [8, 7, 4], strides = [1, 1, 1]} : vector<8x8x4xbf16> to vector<8x7x4xbf16>
    %22 = tpu.concatenate %20, %21 in 1 : vector<8x1x4xbf16>, vector<8x7x4xbf16> -> vector<8x8x4xbf16>
    %23 = vector.extract_strided_slice %11 {offsets = [0, 1, 0], sizes = [8, 7, 4], strides = [1, 1, 1]} : vector<8x8x4xbf16> to vector<8x7x4xbf16>
    %24 = tpu.concatenate %23, %20 in 1 : vector<8x7x4xbf16>, vector<8x1x4xbf16> -> vector<8x8x4xbf16>
    %25 = tpu.concatenate %22, %11, %24 in 2 : vector<8x8x4xbf16>, vector<8x8x4xbf16>, vector<8x8x4xbf16> -> vector<8x8x12xbf16>
    %c1 = arith.constant 1 : index
    %c0_11 = arith.constant 0 : index
    %c0_12 = arith.constant 0 : index
    %26 = vector.load %arg7[%c1, %c0_11, %c0_12] : memref<10x8x12xbf16, #tpu.memory_space<vmem>>, vector<8x8x12xbf16>
    tpu.vector_store %arg7[%c1, %c0_11, %c0_12], %25 {strides = array<i32>} : memref<10x8x12xbf16, #tpu.memory_space<vmem>>, vector<8x8x12xbf16>,
    %cst_13 = arith.constant 0.000000e+00 : f32
    %27 = vector.broadcast %cst_13 : f32 to vector<64x8xf32>
    %c0_14 = arith.constant 0 : index
    %c0_15 = arith.constant 0 : index
    %c0_16 = arith.constant 0 : index
    %28 = vector.load %arg7[%c0_14, %c0_15, %c0_16] : memref<10x8x12xbf16, #tpu.memory_space<vmem>>, vector<8x8x12xbf16>
    %29 = vector.shape_cast %28 : vector<8x8x12xbf16> to vector<64x12xbf16>
    %c0_17 = arith.constant 0 : index
    %c0_18 = arith.constant 0 : index
    %c0_19 = arith.constant 0 : index
    %30 = vector.load %arg2[%c0_17, %c0_18, %c0_19] : memref<3x12x8xbf16, #tpu.memory_space<vmem>>, vector<1x12x8xbf16>
    %31 = vector.shape_cast %30 : vector<1x12x8xbf16> to vector<12x8xbf16>
    %cst_20 = arith.constant dense<0.000000e+00> : vector<64x8xf32>
    %32 = tpu.matmul %29, %31, %cst_20 {dimension_numbers = #tpu.dot_dimension_numbers<[1], [0], [0], [1], [0, 0, 1, 1], [], []>} : vector<64x12xbf16>, vector<12x8xbf16>, vector<64x8xf32> -> vector<64x8xf32>
    %33 = arith.addf %27, %32 : vector<64x8xf32>
    %c1_21 = arith.constant 1 : index
    %c0_22 = arith.constant 0 : index
    %c0_23 = arith.constant 0 : index
    %34 = vector.load %arg7[%c1_21, %c0_22, %c0_23] : memref<10x8x12xbf16, #tpu.memory_space<vmem>>, vector<8x8x12xbf16>
    %35 = vector.shape_cast %34 : vector<8x8x12xbf16> to vector<64x12xbf16>
    %c1_24 = arith.constant 1 : index
    %c0_25 = arith.constant 0 : index
    %c0_26 = arith.constant 0 : index
    %36 = vector.load %arg2[%c1_24, %c0_25, %c0_26] : memref<3x12x8xbf16, #tpu.memory_space<vmem>>, vector<1x12x8xbf16>
    %37 = vector.shape_cast %36 : vector<1x12x8xbf16> to vector<12x8xbf16>
    %cst_27 = arith.constant dense<0.000000e+00> : vector<64x8xf32>
    %38 = tpu.matmul %35, %37, %cst_27 {dimension_numbers = #tpu.dot_dimension_numbers<[1], [0], [0], [1], [0, 0, 1, 1], [], []>} : vector<64x12xbf16>, vector<12x8xbf16>, vector<64x8xf32> -> vector<64x8xf32>
    %39 = arith.addf %33, %38 : vector<64x8xf32>
    %c2 = arith.constant 2 : index
    %c0_28 = arith.constant 0 : index
    %c0_29 = arith.constant 0 : index
    %40 = vector.load %arg7[%c2, %c0_28, %c0_29] : memref<10x8x12xbf16, #tpu.memory_space<vmem>>, vector<8x8x12xbf16>
    %41 = vector.shape_cast %40 : vector<8x8x12xbf16> to vector<64x12xbf16>
    %c2_30 = arith.constant 2 : index
    %c0_31 = arith.constant 0 : index
    %c0_32 = arith.constant 0 : index
    %42 = vector.load %arg2[%c2_30, %c0_31, %c0_32] : memref<3x12x8xbf16, #tpu.memory_space<vmem>>, vector<1x12x8xbf16>
    %43 = vector.shape_cast %42 : vector<1x12x8xbf16> to vector<12x8xbf16>
    %cst_33 = arith.constant dense<0.000000e+00> : vector<64x8xf32>
    %44 = tpu.matmul %41, %43, %cst_33 {dimension_numbers = #tpu.dot_dimension_numbers<[1], [0], [0], [1], [0, 0, 1, 1], [], []>} : vector<64x12xbf16>, vector<12x8xbf16>, vector<64x8xf32> -> vector<64x8xf32>
    %45 = arith.addf %39, %44 : vector<64x8xf32>
    %c0_34 = arith.constant 0 : index
    %c0_35 = arith.constant 0 : index
    %46 = vector.load %arg3[%c0_34, %c0_35] : memref<1x8xf32, #tpu.memory_space<vmem>>, vector<1x8xf32>
    %47 = vector.broadcast %46 : vector<1x8xf32> to vector<64x8xf32>
    %48 = arith.addf %45, %47 : vector<64x8xf32>
    %cst_36 = arith.constant 0.000000e+00 : f32
    %49 = vector.broadcast %cst_36 : f32 to vector<64x8xf32>
    %50 = arith.maximumf %48, %49 : vector<64x8xf32>
    %cst_37 = arith.constant 0.000000e+00 : bf16
    %51 = vector.broadcast %cst_37 : bf16 to vector<8x24xbf16>
    %c0_38 = arith.constant 0 : index
    %c0_39 = arith.constant 0 : index
    %c0_40 = arith.constant 0 : index
    %52 = vector.load %arg8[%c0_38, %c0_39, %c0_40] : memref<10x8x24xbf16, #tpu.memory_space<vmem>>, vector<1x8x24xbf16>
    %53 = vector.shape_cast %52 : vector<1x8x24xbf16> to vector<8x24xbf16>
    %54 = vector.shape_cast %51 : vector<8x24xbf16> to vector<1x8x24xbf16>
    tpu.vector_store %arg8[%c0_38, %c0_39, %c0_40], %54 {strides = array<i32>} : memref<10x8x24xbf16, #tpu.memory_space<vmem>>, vector<1x8x24xbf16>,
    %cst_41 = arith.constant 0.000000e+00 : bf16
    %55 = vector.broadcast %cst_41 : bf16 to vector<8x24xbf16>
    %c9_42 = arith.constant 9 : index
    %c0_43 = arith.constant 0 : index
    %c0_44 = arith.constant 0 : index
    %56 = vector.load %arg8[%c9_42, %c0_43, %c0_44] : memref<10x8x24xbf16, #tpu.memory_space<vmem>>, vector<1x8x24xbf16>
    %57 = vector.shape_cast %56 : vector<1x8x24xbf16> to vector<8x24xbf16>
    %58 = vector.shape_cast %55 : vector<8x24xbf16> to vector<1x8x24xbf16>
    tpu.vector_store %arg8[%c9_42, %c0_43, %c0_44], %58 {strides = array<i32>} : memref<10x8x24xbf16, #tpu.memory_space<vmem>>, vector<1x8x24xbf16>,
    %59 = vector.shape_cast %50 : vector<64x8xf32> to vector<8x8x8xf32>
    %60 = arith.truncf %59 : vector<8x8x8xf32> to vector<8x8x8xbf16>
    %cst_45 = arith.constant 0.000000e+00 : bf16
    %61 = vector.broadcast %cst_45 : bf16 to vector<8x1x8xbf16>
    %62 = vector.extract_strided_slice %60 {offsets = [0, 0, 0], sizes = [8, 7, 8], strides = [1, 1, 1]} : vector<8x8x8xbf16> to vector<8x7x8xbf16>
    %63 = tpu.concatenate %61, %62 in 1 : vector<8x1x8xbf16>, vector<8x7x8xbf16> -> vector<8x8x8xbf16>
    %64 = vector.extract_strided_slice %60 {offsets = [0, 1, 0], sizes = [8, 7, 8], strides = [1, 1, 1]} : vector<8x8x8xbf16> to vector<8x7x8xbf16>
    %65 = tpu.concatenate %64, %61 in 1 : vector<8x7x8xbf16>, vector<8x1x8xbf16> -> vector<8x8x8xbf16>
    %66 = tpu.concatenate %63, %60, %65 in 2 : vector<8x8x8xbf16>, vector<8x8x8xbf16>, vector<8x8x8xbf16> -> vector<8x8x24xbf16>
    %c1_46 = arith.constant 1 : index
    %c0_47 = arith.constant 0 : index
    %c0_48 = arith.constant 0 : index
    %67 = vector.load %arg8[%c1_46, %c0_47, %c0_48] : memref<10x8x24xbf16, #tpu.memory_space<vmem>>, vector<8x8x24xbf16>
    tpu.vector_store %arg8[%c1_46, %c0_47, %c0_48], %66 {strides = array<i32>} : memref<10x8x24xbf16, #tpu.memory_space<vmem>>, vector<8x8x24xbf16>,
    %cst_49 = arith.constant 0.000000e+00 : f32
    %68 = vector.broadcast %cst_49 : f32 to vector<64x8xf32>
    %c0_50 = arith.constant 0 : index
    %c0_51 = arith.constant 0 : index
    %c0_52 = arith.constant 0 : index
    %69 = vector.load %arg8[%c0_50, %c0_51, %c0_52] : memref<10x8x24xbf16, #tpu.memory_space<vmem>>, vector<8x8x24xbf16>
    %70 = vector.shape_cast %69 : vector<8x8x24xbf16> to vector<64x24xbf16>
    %c0_53 = arith.constant 0 : index
    %c0_54 = arith.constant 0 : index
    %c0_55 = arith.constant 0 : index
    %71 = vector.load %arg4[%c0_53, %c0_54, %c0_55] : memref<3x24x8xbf16, #tpu.memory_space<vmem>>, vector<1x24x8xbf16>
    %72 = vector.shape_cast %71 : vector<1x24x8xbf16> to vector<24x8xbf16>
    %cst_56 = arith.constant dense<0.000000e+00> : vector<64x8xf32>
    %73 = tpu.matmul %70, %72, %cst_56 {dimension_numbers = #tpu.dot_dimension_numbers<[1], [0], [0], [1], [0, 0, 1, 1], [], []>} : vector<64x24xbf16>, vector<24x8xbf16>, vector<64x8xf32> -> vector<64x8xf32>
    %74 = arith.addf %68, %73 : vector<64x8xf32>
    %c1_57 = arith.constant 1 : index
    %c0_58 = arith.constant 0 : index
    %c0_59 = arith.constant 0 : index
    %75 = vector.load %arg8[%c1_57, %c0_58, %c0_59] : memref<10x8x24xbf16, #tpu.memory_space<vmem>>, vector<8x8x24xbf16>
    %76 = vector.shape_cast %75 : vector<8x8x24xbf16> to vector<64x24xbf16>
    %c1_60 = arith.constant 1 : index
    %c0_61 = arith.constant 0 : index
    %c0_62 = arith.constant 0 : index
    %77 = vector.load %arg4[%c1_60, %c0_61, %c0_62] : memref<3x24x8xbf16, #tpu.memory_space<vmem>>, vector<1x24x8xbf16>
    %78 = vector.shape_cast %77 : vector<1x24x8xbf16> to vector<24x8xbf16>
    %cst_63 = arith.constant dense<0.000000e+00> : vector<64x8xf32>
    %79 = tpu.matmul %76, %78, %cst_63 {dimension_numbers = #tpu.dot_dimension_numbers<[1], [0], [0], [1], [0, 0, 1, 1], [], []>} : vector<64x24xbf16>, vector<24x8xbf16>, vector<64x8xf32> -> vector<64x8xf32>
    %80 = arith.addf %74, %79 : vector<64x8xf32>
    %c2_64 = arith.constant 2 : index
    %c0_65 = arith.constant 0 : index
    %c0_66 = arith.constant 0 : index
    %81 = vector.load %arg8[%c2_64, %c0_65, %c0_66] : memref<10x8x24xbf16, #tpu.memory_space<vmem>>, vector<8x8x24xbf16>
    %82 = vector.shape_cast %81 : vector<8x8x24xbf16> to vector<64x24xbf16>
    %c2_67 = arith.constant 2 : index
    %c0_68 = arith.constant 0 : index
    %c0_69 = arith.constant 0 : index
    %83 = vector.load %arg4[%c2_67, %c0_68, %c0_69] : memref<3x24x8xbf16, #tpu.memory_space<vmem>>, vector<1x24x8xbf16>
    %84 = vector.shape_cast %83 : vector<1x24x8xbf16> to vector<24x8xbf16>
    %cst_70 = arith.constant dense<0.000000e+00> : vector<64x8xf32>
    %85 = tpu.matmul %82, %84, %cst_70 {dimension_numbers = #tpu.dot_dimension_numbers<[1], [0], [0], [1], [0, 0, 1, 1], [], []>} : vector<64x24xbf16>, vector<24x8xbf16>, vector<64x8xf32> -> vector<64x8xf32>
    %86 = arith.addf %80, %85 : vector<64x8xf32>
    %c0_71 = arith.constant 0 : index
    %c0_72 = arith.constant 0 : index
    %87 = vector.load %arg5[%c0_71, %c0_72] : memref<1x8xf32, #tpu.memory_space<vmem>>, vector<1x8xf32>
    %88 = vector.broadcast %87 : vector<1x8xf32> to vector<64x8xf32>
    %89 = arith.addf %86, %88 : vector<64x8xf32>
    %cst_73 = arith.constant 0.000000e+00 : f32
    %90 = vector.broadcast %cst_73 : f32 to vector<64x8xf32>
    %91 = arith.maximumf %89, %90 : vector<64x8xf32>
    %92 = vector.shape_cast %91 : vector<64x8xf32> to vector<8x8x8xf32>
    %c0_74 = arith.constant 0 : index
    %c0_75 = arith.constant 0 : index
    %c0_76 = arith.constant 0 : index
    %c0_77 = arith.constant 0 : index
    %93 = vector.load %arg6[%c0_74, %c0_75, %c0_76, %c0_77] : memref<1x8x8x8xf32, #tpu.memory_space<vmem>>, vector<1x8x8x8xf32>
    %94 = vector.shape_cast %93 : vector<1x8x8x8xf32> to vector<8x8x8xf32>
    %95 = vector.shape_cast %92 : vector<8x8x8xf32> to vector<1x8x8x8xf32>
    tpu.vector_store %arg6[%c0_74, %c0_75, %c0_76, %c0_77], %95 {strides = array<i32>} : memref<1x8x8x8xf32, #tpu.memory_space<vmem>>, vector<1x8x8x8xf32>,
    return
  }
  func.func @transform_0(%arg0: i32) -> (i32, i32, i32, i32, i32) {
    %c0_i32 = arith.constant 0 : i32
    %c0_i32_0 = arith.constant 0 : i32
    %c0_i32_1 = arith.constant 0 : i32
    %c0_i32_2 = arith.constant 0 : i32
    %c0_i32_3 = arith.constant 0 : i32
    return %arg0, %c0_i32, %c0_i32_0, %c0_i32_1, %c0_i32_2 : i32, i32, i32, i32, i32
  }
  func.func @transform_1(%arg0: i32) -> (i32, i32, i32) {
    %c0_i32 = arith.constant 0 : i32
    %c0_i32_0 = arith.constant 0 : i32
    %c0_i32_1 = arith.constant 0 : i32
    %c0_i32_2 = arith.constant 0 : i32
    return %c0_i32, %c0_i32_0, %c0_i32_1 : i32, i32, i32
  }
  func.func @transform_2(%arg0: i32) -> (i32, i32) {
    %c0_i32 = arith.constant 0 : i32
    %c0_i32_0 = arith.constant 0 : i32
    %c0_i32_1 = arith.constant 0 : i32
    return %c0_i32, %c0_i32_0 : i32, i32
  }
  func.func @transform_3(%arg0: i32) -> (i32, i32, i32) {
    %c0_i32 = arith.constant 0 : i32
    %c0_i32_0 = arith.constant 0 : i32
    %c0_i32_1 = arith.constant 0 : i32
    %c0_i32_2 = arith.constant 0 : i32
    return %c0_i32, %c0_i32_0, %c0_i32_1 : i32, i32, i32
  }
  func.func @transform_4(%arg0: i32) -> (i32, i32) {
    %c0_i32 = arith.constant 0 : i32
    %c0_i32_0 = arith.constant 0 : i32
    %c0_i32_1 = arith.constant 0 : i32
    return %c0_i32, %c0_i32_0 : i32, i32
  }
  func.func @transform_5(%arg0: i32) -> (i32, i32, i32, i32) {
    %c0_i32 = arith.constant 0 : i32
    %c0_i32_0 = arith.constant 0 : i32
    %c0_i32_1 = arith.constant 0 : i32
    %c0_i32_2 = arith.constant 0 : i32
    return %arg0, %c0_i32, %c0_i32_0, %c0_i32_1 : i32, i32, i32, i32
  }
}

</mosaic_0001>

<llo_original>
// kernel: tpu_custom_call.1
$region0: #{tpu_custom_call.1}
  #allocation0 [shape = 'u32[]', space=smem, size = 0x4, offset = 0x4, fixed_abs, tag = 'smem constant byte address 0x4 - core index']
  #allocation1 [shape = 'u32[144,128]{1,0:T(1,128)}', space=vmem, size = 0x12000, scoped, tag = 'internal scratch']
  #allocation2 [shape = 'bf16[10,8,12]{2,1,0:T(8,128)(2,1)}', space=vmem, size = 0x5000, scoped, tag = 'scratch operand']
  #allocation3 [shape = 'bf16[10,8,24]{2,1,0:T(8,128)(2,1)}', space=vmem, size = 0x5000, scoped, tag = 'scratch operand']
  %s0 = inlined_call_operand.vmem [shape: bf16[16,2,8,2,4], index: 0, kind: input, shape index: {}]
  %s1 = inlined_call_operand.vmem [shape: bf16[3,12,8], index: 1, kind: input, shape index: {}]
  %s2 = inlined_call_operand.vmem [shape: f32[1,8], index: 2, kind: input, shape index: {}]
  %s3 = inlined_call_operand.vmem [shape: bf16[3,24,8], index: 3, kind: input, shape index: {}]
  %s4 = inlined_call_operand.vmem [shape: f32[1,8], index: 4, kind: input, shape index: {}]
  %s5 = inlined_call_operand.hbm [shape: f32[2,8,8,8], index: 5, kind: output, shape index: {}]
  %s6 = sld [smem:[#allocation0]]
  $region53: #{tpu_custom_call.1} parent=0
    _
  %s8 = ssub.s32 1, %s6
  %s9 = scalar_select 0, %s8, %s6
  $region1: #{tpu_custom_call.1} parent=0
    #allocation4 [shape = 'u8[65536]{0}', space=vmem, size = 0x10000, scoped, tag = 'output window, operand 0']
    #allocation5 [shape = 's32[2]{0}', space=sflag, size = 0x8, scoped, tag = 'scoped memory for tpu_custom_call.1']
    %10 = vsyncpa [#allocation5], 0
    %s11 = scalar_lea.sflag [#allocation5], 1
    %12 = vsyncpa %s11, 0
    loop: start=0, step=1, limit=4
    $region2: #{tpu_custom_call.1} parent=1 // loop_pre_header
      _
    $region3: #{tpu_custom_call.1} parent=1 // loop_header
      %s14 = sphi 0, %s18
      %p15 = scmp.ge.s32.totalorder %s14, 4
      %s24 = sphi 0, %s26
      %s27 = sphi 0, %s24
      %s28 = sphi 0, %s27
      %s44 = sphi 0, %s28
      %s48 = sphi 0, %s48
      %s50 = sphi 0, %s48
      %s51 = sphi 0, %s50
      %s65 = sphi 0, %s51
      %s69 = sphi 0, %s69
      %s71 = sphi 0, %s69
      %s72 = sphi 0, %s71
      %s86 = sphi 0, %s72
      %s90 = sphi 0, %s90
      %s92 = sphi 0, %s90
      %s93 = sphi 0, %s92
      %s107 = sphi 0, %s93
      %s111 = sphi 0, %s111
      %s113 = sphi 0, %s111
      %s114 = sphi 0, %s113
      %s128 = sphi 0, %s114
      %s134 = sphi 0, %s136
      %s137 = sphi 0, %s134
      %s138 = sphi 0, %s137
      %s154 = sphi 0, %s138
    $region4: #{tpu_custom_call.1} parent=1 // loop_header_branch
      %17 = sbr.rel (%p15) target = $region8
    $region5: #{tpu_custom_call.1} parent=1 // loop_body
      %s19 = ssub.s32 %s14, 1
      %s20 = ssub.s32 %s14, 2
      %s21 = sadd.s32 %s14, 1
      %s22 = ssub.s32 %s14, %s21
      %p23 = scmp.eq.s32.totalorder %s22, 0
      %s25 = sadd.s32 %s24, 1
      %s26 = scalar_select %p23, %s24, %s25
      %p29 = pneg %p23
      %p30 = scmp.eq.s32.totalorder %s14, 1
      %p31 = por %p29, %p30
      %p32 = scmp.ne.s32.totalorder %s24, %s27
      %p33 = scmp.eq.s32.totalorder %s14, 0
      %p34 = por %p32, %p33
      %p35 = scmp.ne.s32.totalorder %s24, %s27
      %p36 = scmp.eq.s32.totalorder %s19, 1
      %p37 = por %p35, %p36
      %p38 = scmp.ne.s32.totalorder %s27, %s28
      %p39 = scmp.eq.s32.totalorder %s19, 0
      %p40 = por %p38, %p39
      %p41 = scmp.ne.s32.totalorder %s27, %s28
      %p42 = scmp.eq.s32.totalorder %s20, 1
      %p43 = por %p41, %p42
      %p45 = scmp.ne.s32.totalorder %s28, %s44
      %p46 = scmp.eq.s32.totalorder %s20, 0
      %p47 = por %p45, %p46
      %s49 = sadd.s32 %s48, 1
      %p52 = scmp.eq.s32.totalorder %s14, 1
      %p53 = scmp.ne.s32.totalorder %s48, %s50
      %p54 = scmp.eq.s32.totalorder %s14, 0
      %p55 = por %p53, %p54
      %p56 = scmp.ne.s32.totalorder %s48, %s50
      %p57 = scmp.eq.s32.totalorder %s19, 1
      %p58 = por %p56, %p57
      %p59 = scmp.ne.s32.totalorder %s50, %s51
      %p60 = scmp.eq.s32.totalorder %s19, 0
      %p61 = por %p59, %p60
      %p62 = scmp.ne.s32.totalorder %s50, %s51
      %p63 = scmp.eq.s32.totalorder %s20, 1
      %p64 = por %p62, %p63
      %p66 = scmp.ne.s32.totalorder %s51, %s65
      %p67 = scmp.eq.s32.totalorder %s20, 0
      %p68 = por %p66, %p67
      %s70 = sadd.s32 %s69, 1
      %p73 = scmp.eq.s32.totalorder %s14, 1
      %p74 = scmp.ne.s32.totalorder %s69, %s71
      %p75 = scmp.eq.s32.totalorder %s14, 0
      %p76 = por %p74, %p75
      %p77 = scmp.ne.s32.totalorder %s69, %s71
      %p78 = scmp.eq.s32.totalorder %s19, 1
      %p79 = por %p77, %p78
      %p80 = scmp.ne.s32.totalorder %s71, %s72
      %p81 = scmp.eq.s32.totalorder %s19, 0
      %p82 = por %p80, %p81
      %p83 = scmp.ne.s32.totalorder %s71, %s72
      %p84 = scmp.eq.s32.totalorder %s20, 1
      %p85 = por %p83, %p84
      %p87 = scmp.ne.s32.totalorder %s72, %s86
      %p88 = scmp.eq.s32.totalorder %s20, 0
      %p89 = por %p87, %p88
      %s91 = sadd.s32 %s90, 1
      %p94 = scmp.eq.s32.totalorder %s14, 1
      %p95 = scmp.ne.s32.totalorder %s90, %s92
      %p96 = scmp.eq.s32.totalorder %s14, 0
      %p97 = por %p95, %p96
      %p98 = scmp.ne.s32.totalorder %s90, %s92
      %p99 = scmp.eq.s32.totalorder %s19, 1
      %p100 = por %p98, %p99
      %p101 = scmp.ne.s32.totalorder %s92, %s93
      %p102 = scmp.eq.s32.totalorder %s19, 0
      %p103 = por %p101, %p102
      %p104 = scmp.ne.s32.totalorder %s92, %s93
      %p105 = scmp.eq.s32.totalorder %s20, 1
      %p106 = por %p104, %p105
      %p108 = scmp.ne.s32.totalorder %s93, %s107
      %p109 = scmp.eq.s32.totalorder %s20, 0
      %p110 = por %p108, %p109
      %s112 = sadd.s32 %s111, 1
      %p115 = scmp.eq.s32.totalorder %s14, 1
      %p116 = scmp.ne.s32.totalorder %s111, %s113
      %p117 = scmp.eq.s32.totalorder %s14, 0
      %p118 = por %p116, %p117
      %p119 = scmp.ne.s32.totalorder %s111, %s113
      %p120 = scmp.eq.s32.totalorder %s19, 1
      %p121 = por %p119, %p120
      %p122 = scmp.ne.s32.totalorder %s113, %s114
      %p123 = scmp.eq.s32.totalorder %s19, 0
      %p124 = por %p122, %p123
      %p125 = scmp.ne.s32.totalorder %s113, %s114
      %p126 = scmp.eq.s32.totalorder %s20, 1
      %p127 = por %p125, %p126
      %p129 = scmp.ne.s32.totalorder %s114, %s128
      %p130 = scmp.eq.s32.totalorder %s20, 0
      %p131 = por %p129, %p130
      %s132 = ssub.s32 %s14, %s21
      %p133 = scmp.eq.s32.totalorder %s132, 0
      %s135 = sadd.s32 %s134, 1
      %s136 = scalar_select %p133, %s134, %s135
      %p139 = pneg %p133
      %p140 = scmp.eq.s32.totalorder %s14, 1
      %p141 = por %p139, %p140
      %p142 = scmp.ne.s32.totalorder %s134, %s137
      %p143 = scmp.eq.s32.totalorder %s14, 0
      %p144 = por %p142, %p143
      %p145 = scmp.ne.s32.totalorder %s134, %s137
      %p146 = scmp.eq.s32.totalorder %s19, 1
      %p147 = por %p145, %p146
      %p148 = scmp.ne.s32.totalorder %s137, %s138
      %p149 = scmp.eq.s32.totalorder %s19, 0
      %p150 = por %p148, %p149
      %p151 = scmp.ne.s32.totalorder %s137, %s138
      %p152 = scmp.eq.s32.totalorder %s20, 1
      %p153 = por %p151, %p152
      %p155 = scmp.ne.s32.totalorder %s138, %s154
      %p156 = scmp.eq.s32.totalorder %s20, 0
      %p157 = por %p155, %p156
      %p158 = scmp.le.s32.totalorder 1, %s14
      %p159 = scmp.lt.s32.totalorder %s14, 3
      %p160 = pnand %p158, %p159
      %p161 = pneg %p160
      // Predicated region
      $region9: #{tpu_custom_call.1} parent=5 // pred_check
        _
      $region10: #{tpu_custom_call.1} parent=5 // pred_check_branch
        %163 = sbr.rel (%p160) target = $region12
      $region11: #{tpu_custom_call.1} parent=5 // pred_region
        %s164 = ssub.s32 %s14, 1
        // Predicated region
        $region13: #{tpu_custom_call.1} parent=11 // pred_check
          %p165 = pneg %p61
        $region14: #{tpu_custom_call.1} parent=11 // pred_check_branch
          %167 = sbr.rel (%p165) target = $region16
        $region15: #{tpu_custom_call.1} parent=11 // pred_region
          _
        $region16: #{tpu_custom_call.1} parent=11 // pred_fallthru
          _
        // Predicated region
        $region17: #{tpu_custom_call.1} parent=11 // pred_check
          %p168 = pneg %p82
        $region18: #{tpu_custom_call.1} parent=11 // pred_check_branch
          %170 = sbr.rel (%p168) target = $region20
        $region19: #{tpu_custom_call.1} parent=11 // pred_region
          _
        $region20: #{tpu_custom_call.1} parent=11 // pred_fallthru
          _
        // Predicated region
        $region21: #{tpu_custom_call.1} parent=11 // pred_check
          %p171 = pneg %p103
        $region22: #{tpu_custom_call.1} parent=11 // pred_check_branch
          %173 = sbr.rel (%p171) target = $region24
        $region23: #{tpu_custom_call.1} parent=11 // pred_region
          _
        $region24: #{tpu_custom_call.1} parent=11 // pred_fallthru
          _
        // Predicated region
        $region25: #{tpu_custom_call.1} parent=11 // pred_check
          %p174 = pneg %p124
        $region26: #{tpu_custom_call.1} parent=11 // pred_check_branch
          %176 = sbr.rel (%p174) target = $region28
        $region27: #{tpu_custom_call.1} parent=11 // pred_region
          _
        $region28: #{tpu_custom_call.1} parent=11 // pred_fallthru
          _
      $region12: #{tpu_custom_call.1} parent=5 // pred_fallthru
        _
      %p177 = scmp.lt.s32.totalorder %s14, 2
      // Predicated region
      $region29: #{tpu_custom_call.1} parent=5 // pred_check
        %p178 = pneg %p177
      $region30: #{tpu_custom_call.1} parent=5 // pred_check_branch
        %180 = sbr.rel (%p178) target = $region32
      $region31: #{tpu_custom_call.1} parent=5 // pred_region
        // Predicated region
        $region33: #{tpu_custom_call.1} parent=31 // pred_check
          %p181 = pneg %p34
        $region34: #{tpu_custom_call.1} parent=31 // pred_check_branch
          %183 = sbr.rel (%p181) target = $region36
        $region35: #{tpu_custom_call.1} parent=31 // pred_region
          %s184 = smul.u32 8, %s14
          %p185 = scmp.lt.s32.totalorder %s184, 15
          %s186 = scalar_select %p185, %s184, 15
          %s187 = smul.addr %s186, 16
          %s188 = scalar_lea.vmem %s0, %s187
          %s189 = smul.u32 8, %s14
        $region36: #{tpu_custom_call.1} parent=31 // pred_fallthru
          _
      $region32: #{tpu_custom_call.1} parent=5 // pred_fallthru
        _
      %p190 = scmp.le.s32.totalorder 1, %s14
      %p191 = scmp.lt.s32.totalorder %s14, 3
      %p192 = pnand %p190, %p191
      %p193 = pneg %p192
      // Predicated region
      $region37: #{tpu_custom_call.1} parent=5 // pred_check
        _
      $region38: #{tpu_custom_call.1} parent=5 // pred_check_branch
        %195 = sbr.rel (%p192) target = $region40
      $region39: #{tpu_custom_call.1} parent=5 // pred_region
        %s196 = ssub.s32 %s14, 1
        %s197 = smul.u32 8, %s19
        %p198 = scmp.lt.s32.totalorder %s197, 15
        %s199 = scalar_select %p198, %s197, 15
        %s200 = smul.addr %s199, 16
        %s201 = scalar_lea.vmem %s0, %s200
        %p202 = pneg %p40
        %p203 = pneg %p37
        %p204 = pneg %p61
        %p205 = pneg %p58
        %p206 = pneg %p82
        %p207 = pneg %p79
        %p208 = pneg %p103
        %p209 = pneg %p100
        %p210 = pneg %p124
        %p211 = pneg %p121
        %p212 = pneg %p150
        %p213 = pneg %p147
        %s214 = sand.u32 %s137, 1
        %s215 = scalar_lea.sflag [#allocation5], %s214
        %s216 = sand.u32 %s137, 1
        %s217 = smul.addr %s216, 64
        %s218 = scalar_lea.vmem [#allocation4], %s217
        %s219 = smul.u32 8, %s19
        %p220 = scmp.lt.s32.totalorder %s219, 15
        %s221 = scalar_select %p220, %s219, 15
        %s222 = smul.addr %s221, 16
        %s223 = scalar_lea.vmem %s0, %s222
        %s224 = smul.u32 8, %s19
        %v226 = vld [vmem:[%s223] sm:$0x1]
        %v227 = vld [vmem:[%s223 + $0x1] sm:$0x1]
        %v228 = vld [vmem:[%s223 + $0x2] sm:$0x1]
        %v229 = vld [vmem:[%s223 + $0x3] sm:$0x1]
        %v230 = vld [vmem:[%s223 + $0x4] sm:$0x1]
        %v231 = vld [vmem:[%s223 + $0x5] sm:$0x1]
        %v232 = vld [vmem:[%s223 + $0x6] sm:$0x1]
        %v233 = vld [vmem:[%s223 + $0x7] sm:$0x1]
        %v234 = vld [vmem:[%s223 + $0x8] sm:$0x1]
        %v235 = vld [vmem:[%s223 + $0x9] sm:$0x1]
        %v236 = vld [vmem:[%s223 + $0xa] sm:$0x1]
        %v237 = vld [vmem:[%s223 + $0xb] sm:$0x1]
        %v238 = vld [vmem:[%s223 + $0xc] sm:$0x1]
        %v239 = vld [vmem:[%s223 + $0xd] sm:$0x1]
        %v240 = vld [vmem:[%s223 + $0xe] sm:$0x1]
        %v241 = vld [vmem:[%s223 + $0xf] sm:$0x1]
        %v242 = vld [vmem:[%s223 + $0x10] sm:$0x1]
        %v243 = vld [vmem:[%s223 + $0x11] sm:$0x1]
        %v244 = vld [vmem:[%s223 + $0x12] sm:$0x1]
        %v245 = vld [vmem:[%s223 + $0x13] sm:$0x1]
        %v246 = vld [vmem:[%s223 + $0x14] sm:$0x1]
        %v247 = vld [vmem:[%s223 + $0x15] sm:$0x1]
        %v248 = vld [vmem:[%s223 + $0x16] sm:$0x1]
        %v249 = vld [vmem:[%s223 + $0x17] sm:$0x1]
        %v250 = vld [vmem:[%s223 + $0x18] sm:$0x1]
        %v251 = vld [vmem:[%s223 + $0x19] sm:$0x1]
        %v252 = vld [vmem:[%s223 + $0x1a] sm:$0x1]
        %v253 = vld [vmem:[%s223 + $0x1b] sm:$0x1]
        %v254 = vld [vmem:[%s223 + $0x1c] sm:$0x1]
        %v255 = vld [vmem:[%s223 + $0x1d] sm:$0x1]
        %v256 = vld [vmem:[%s223 + $0x1e] sm:$0x1]
        %v257 = vld [vmem:[%s223 + $0x1f] sm:$0x1]
        %v258 = vld [vmem:[%s223 + $0x20] sm:$0x1]
        %v259 = vld [vmem:[%s223 + $0x21] sm:$0x1]
        %v260 = vld [vmem:[%s223 + $0x22] sm:$0x1]
        %v261 = vld [vmem:[%s223 + $0x23] sm:$0x1]
        %v262 = vld [vmem:[%s223 + $0x24] sm:$0x1]
        %v263 = vld [vmem:[%s223 + $0x25] sm:$0x1]
        %v264 = vld [vmem:[%s223 + $0x26] sm:$0x1]
        %v265 = vld [vmem:[%s223 + $0x27] sm:$0x1]
        %v266 = vld [vmem:[%s223 + $0x28] sm:$0x1]
        %v267 = vld [vmem:[%s223 + $0x29] sm:$0x1]
        %v268 = vld [vmem:[%s223 + $0x2a] sm:$0x1]
        %v269 = vld [vmem:[%s223 + $0x2b] sm:$0x1]
        %v270 = vld [vmem:[%s223 + $0x2c] sm:$0x1]
        %v271 = vld [vmem:[%s223 + $0x2d] sm:$0x1]
        %v272 = vld [vmem:[%s223 + $0x2e] sm:$0x1]
        %v273 = vld [vmem:[%s223 + $0x2f] sm:$0x1]
        %v274 = vld [vmem:[%s223 + $0x30] sm:$0x1]
        %v275 = vld [vmem:[%s223 + $0x31] sm:$0x1]
        %v276 = vld [vmem:[%s223 + $0x32] sm:$0x1]
        %v277 = vld [vmem:[%s223 + $0x33] sm:$0x1]
        %v278 = vld [vmem:[%s223 + $0x34] sm:$0x1]
        %v279 = vld [vmem:[%s223 + $0x35] sm:$0x1]
        %v280 = vld [vmem:[%s223 + $0x36] sm:$0x1]
        %v281 = vld [vmem:[%s223 + $0x37] sm:$0x1]
        %v282 = vld [vmem:[%s223 + $0x38] sm:$0x1]
        %v283 = vld [vmem:[%s223 + $0x39] sm:$0x1]
        %v284 = vld [vmem:[%s223 + $0x3a] sm:$0x1]
        %v285 = vld [vmem:[%s223 + $0x3b] sm:$0x1]
        %v286 = vld [vmem:[%s223 + $0x3c] sm:$0x1]
        %v287 = vld [vmem:[%s223 + $0x3d] sm:$0x1]
        %v288 = vld [vmem:[%s223 + $0x3e] sm:$0x1]
        %v289 = vld [vmem:[%s223 + $0x3f] sm:$0x1]
        %v290 = vld [vmem:[%s223 + $0x40] sm:$0x1]
        %v291 = vld [vmem:[%s223 + $0x41] sm:$0x1]
        %v292 = vld [vmem:[%s223 + $0x42] sm:$0x1]
        %v293 = vld [vmem:[%s223 + $0x43] sm:$0x1]
        %v294 = vld [vmem:[%s223 + $0x44] sm:$0x1]
        %v295 = vld [vmem:[%s223 + $0x45] sm:$0x1]
        %v296 = vld [vmem:[%s223 + $0x46] sm:$0x1]
        %v297 = vld [vmem:[%s223 + $0x47] sm:$0x1]
        %v298 = vld [vmem:[%s223 + $0x48] sm:$0x1]
        %v299 = vld [vmem:[%s223 + $0x49] sm:$0x1]
        %v300 = vld [vmem:[%s223 + $0x4a] sm:$0x1]
        %v301 = vld [vmem:[%s223 + $0x4b] sm:$0x1]
        %v302 = vld [vmem:[%s223 + $0x4c] sm:$0x1]
        %v303 = vld [vmem:[%s223 + $0x4d] sm:$0x1]
        %v304 = vld [vmem:[%s223 + $0x4e] sm:$0x1]
        %v305 = vld [vmem:[%s223 + $0x4f] sm:$0x1]
        %v306 = vld [vmem:[%s223 + $0x50] sm:$0x1]
        %v307 = vld [vmem:[%s223 + $0x51] sm:$0x1]
        %v308 = vld [vmem:[%s223 + $0x52] sm:$0x1]
        %v309 = vld [vmem:[%s223 + $0x53] sm:$0x1]
        %v310 = vld [vmem:[%s223 + $0x54] sm:$0x1]
        %v311 = vld [vmem:[%s223 + $0x55] sm:$0x1]
        %v312 = vld [vmem:[%s223 + $0x56] sm:$0x1]
        %v313 = vld [vmem:[%s223 + $0x57] sm:$0x1]
        %v314 = vld [vmem:[%s223 + $0x58] sm:$0x1]
        %v315 = vld [vmem:[%s223 + $0x59] sm:$0x1]
        %v316 = vld [vmem:[%s223 + $0x5a] sm:$0x1]
        %v317 = vld [vmem:[%s223 + $0x5b] sm:$0x1]
        %v318 = vld [vmem:[%s223 + $0x5c] sm:$0x1]
        %v319 = vld [vmem:[%s223 + $0x5d] sm:$0x1]
        %v320 = vld [vmem:[%s223 + $0x5e] sm:$0x1]
        %v321 = vld [vmem:[%s223 + $0x5f] sm:$0x1]
        %v322 = vld [vmem:[%s223 + $0x60] sm:$0x1]
        %v323 = vld [vmem:[%s223 + $0x61] sm:$0x1]
        %v324 = vld [vmem:[%s223 + $0x62] sm:$0x1]
        %v325 = vld [vmem:[%s223 + $0x63] sm:$0x1]
        %v326 = vld [vmem:[%s223 + $0x64] sm:$0x1]
        %v327 = vld [vmem:[%s223 + $0x65] sm:$0x1]
        %v328 = vld [vmem:[%s223 + $0x66] sm:$0x1]
        %v329 = vld [vmem:[%s223 + $0x67] sm:$0x1]
        %v330 = vld [vmem:[%s223 + $0x68] sm:$0x1]
        %v331 = vld [vmem:[%s223 + $0x69] sm:$0x1]
        %v332 = vld [vmem:[%s223 + $0x6a] sm:$0x1]
        %v333 = vld [vmem:[%s223 + $0x6b] sm:$0x1]
        %v334 = vld [vmem:[%s223 + $0x6c] sm:$0x1]
        %v335 = vld [vmem:[%s223 + $0x6d] sm:$0x1]
        %v336 = vld [vmem:[%s223 + $0x6e] sm:$0x1]
        %v337 = vld [vmem:[%s223 + $0x6f] sm:$0x1]
        %v338 = vld [vmem:[%s223 + $0x70] sm:$0x1]
        %v339 = vld [vmem:[%s223 + $0x71] sm:$0x1]
        %v340 = vld [vmem:[%s223 + $0x72] sm:$0x1]
        %v341 = vld [vmem:[%s223 + $0x73] sm:$0x1]
        %v342 = vld [vmem:[%s223 + $0x74] sm:$0x1]
        %v343 = vld [vmem:[%s223 + $0x75] sm:$0x1]
        %v344 = vld [vmem:[%s223 + $0x76] sm:$0x1]
        %v345 = vld [vmem:[%s223 + $0x77] sm:$0x1]
        %v346 = vld [vmem:[%s223 + $0x78] sm:$0x1]
        %v347 = vld [vmem:[%s223 + $0x79] sm:$0x1]
        %v348 = vld [vmem:[%s223 + $0x7a] sm:$0x1]
        %v349 = vld [vmem:[%s223 + $0x7b] sm:$0x1]
        %v350 = vld [vmem:[%s223 + $0x7c] sm:$0x1]
        %v351 = vld [vmem:[%s223 + $0x7d] sm:$0x1]
        %v352 = vld [vmem:[%s223 + $0x7e] sm:$0x1]
        %v353 = vld [vmem:[%s223 + $0x7f] sm:$0x1]
        %v355 = vshrl.u32 %v226, 16
        %v357 = vrot.slane %v355, 7
        %v358 = vrot.slane %v357, 1
        %v360 = vshrl.u32 %v227, 16
        %v362 = vrot.slane %v360, 7
        %v363 = vrot.slane %v362, 1
        %v365 = vshrl.u32 %v228, 16
        %v367 = vrot.slane %v365, 7
        %v368 = vrot.slane %v367, 1
        %v370 = vshrl.u32 %v229, 16
        %v372 = vrot.slane %v370, 7
        %v373 = vrot.slane %v372, 1
        %v375 = vshrl.u32 %v230, 16
        %v377 = vrot.slane %v375, 7
        %v378 = vrot.slane %v377, 1
        %v380 = vshrl.u32 %v231, 16
        %v382 = vrot.slane %v380, 7
        %v383 = vrot.slane %v382, 1
        %v385 = vshrl.u32 %v232, 16
        %v387 = vrot.slane %v385, 7
        %v388 = vrot.slane %v387, 1
        %v390 = vshrl.u32 %v233, 16
        %v392 = vrot.slane %v390, 7
        %v393 = vrot.slane %v392, 1
        %v395 = vshrl.u32 %v242, 16
        %v397 = vrot.slane %v395, 7
        %v398 = vrot.slane %v397, 1
        %v400 = vshrl.u32 %v243, 16
        %v402 = vrot.slane %v400, 7
        %v403 = vrot.slane %v402, 1
        %v405 = vshrl.u32 %v244, 16
        %v407 = vrot.slane %v405, 7
        %v408 = vrot.slane %v407, 1
        %v410 = vshrl.u32 %v245, 16
        %v412 = vrot.slane %v410, 7
        %v413 = vrot.slane %v412, 1
        %v415 = vshrl.u32 %v246, 16
        %v417 = vrot.slane %v415, 7
        %v418 = vrot.slane %v417, 1
        %v420 = vshrl.u32 %v247, 16
        %v422 = vrot.slane %v420, 7
        %v423 = vrot.slane %v422, 1
        %v425 = vshrl.u32 %v248, 16
        %v427 = vrot.slane %v425, 7
        %v428 = vrot.slane %v427, 1
        %v430 = vshrl.u32 %v249, 16
        %v432 = vrot.slane %v430, 7
        %v433 = vrot.slane %v432, 1
        %v435 = vshrl.u32 %v258, 16
        %v437 = vrot.slane %v435, 7
        %v438 = vrot.slane %v437, 1
        %v440 = vshrl.u32 %v259, 16
        %v442 = vrot.slane %v440, 7
        %v443 = vrot.slane %v442, 1
        %v445 = vshrl.u32 %v260, 16
        %v447 = vrot.slane %v445, 7
        %v448 = vrot.slane %v447, 1
        %v450 = vshrl.u32 %v261, 16
        %v452 = vrot.slane %v450, 7
        %v453 = vrot.slane %v452, 1
        %v455 = vshrl.u32 %v262, 16
        %v457 = vrot.slane %v455, 7
        %v458 = vrot.slane %v457, 1
        %v460 = vshrl.u32 %v263, 16
        %v462 = vrot.slane %v460, 7
        %v463 = vrot.slane %v462, 1
        %v465 = vshrl.u32 %v264, 16
        %v467 = vrot.slane %v465, 7
        %v468 = vrot.slane %v467, 1
        %v470 = vshrl.u32 %v265, 16
        %v472 = vrot.slane %v470, 7
        %v473 = vrot.slane %v472, 1
        %v475 = vshrl.u32 %v274, 16
        %v477 = vrot.slane %v475, 7
        %v478 = vrot.slane %v477, 1
        %v480 = vshrl.u32 %v275, 16
        %v482 = vrot.slane %v480, 7
        %v483 = vrot.slane %v482, 1
        %v485 = vshrl.u32 %v276, 16
        %v487 = vrot.slane %v485, 7
        %v488 = vrot.slane %v487, 1
        %v490 = vshrl.u32 %v277, 16
        %v492 = vrot.slane %v490, 7
        %v493 = vrot.slane %v492, 1
        %v495 = vshrl.u32 %v278, 16
        %v497 = vrot.slane %v495, 7
        %v498 = vrot.slane %v497, 1
        %v500 = vshrl.u32 %v279, 16
        %v502 = vrot.slane %v500, 7
        %v503 = vrot.slane %v502, 1
        %v505 = vshrl.u32 %v280, 16
        %v507 = vrot.slane %v505, 7
        %v508 = vrot.slane %v507, 1
        %v510 = vshrl.u32 %v281, 16
        %v512 = vrot.slane %v510, 7
        %v513 = vrot.slane %v512, 1
        %v515 = vshrl.u32 %v290, 16
        %v517 = vrot.slane %v515, 7
        %v518 = vrot.slane %v517, 1
        %v520 = vshrl.u32 %v291, 16
        %v522 = vrot.slane %v520, 7
        %v523 = vrot.slane %v522, 1
        %v525 = vshrl.u32 %v292, 16
        %v527 = vrot.slane %v525, 7
        %v528 = vrot.slane %v527, 1
        %v530 = vshrl.u32 %v293, 16
        %v532 = vrot.slane %v530, 7
        %v533 = vrot.slane %v532, 1
        %v535 = vshrl.u32 %v294, 16
        %v537 = vrot.slane %v535, 7
        %v538 = vrot.slane %v537, 1
        %v540 = vshrl.u32 %v295, 16
        %v542 = vrot.slane %v540, 7
        %v543 = vrot.slane %v542, 1
        %v545 = vshrl.u32 %v296, 16
        %v547 = vrot.slane %v545, 7
        %v548 = vrot.slane %v547, 1
        %v550 = vshrl.u32 %v297, 16
        %v552 = vrot.slane %v550, 7
        %v553 = vrot.slane %v552, 1
        %v555 = vshrl.u32 %v306, 16
        %v557 = vrot.slane %v555, 7
        %v558 = vrot.slane %v557, 1
        %v560 = vshrl.u32 %v307, 16
        %v562 = vrot.slane %v560, 7
        %v563 = vrot.slane %v562, 1
        %v565 = vshrl.u32 %v308, 16
        %v567 = vrot.slane %v565, 7
        %v568 = vrot.slane %v567, 1
        %v570 = vshrl.u32 %v309, 16
        %v572 = vrot.slane %v570, 7
        %v573 = vrot.slane %v572, 1
        %v575 = vshrl.u32 %v310, 16
        %v577 = vrot.slane %v575, 7
        %v578 = vrot.slane %v577, 1
        %v580 = vshrl.u32 %v311, 16
        %v582 = vrot.slane %v580, 7
        %v583 = vrot.slane %v582, 1
        %v585 = vshrl.u32 %v312, 16
        %v587 = vrot.slane %v585, 7
        %v588 = vrot.slane %v587, 1
        %v590 = vshrl.u32 %v313, 16
        %v592 = vrot.slane %v590, 7
        %v593 = vrot.slane %v592, 1
        %v595 = vshrl.u32 %v322, 16
        %v597 = vrot.slane %v595, 7
        %v598 = vrot.slane %v597, 1
        %v600 = vshrl.u32 %v323, 16
        %v602 = vrot.slane %v600, 7
        %v603 = vrot.slane %v602, 1
        %v605 = vshrl.u32 %v324, 16
        %v607 = vrot.slane %v605, 7
        %v608 = vrot.slane %v607, 1
        %v610 = vshrl.u32 %v325, 16
        %v612 = vrot.slane %v610, 7
        %v613 = vrot.slane %v612, 1
        %v615 = vshrl.u32 %v326, 16
        %v617 = vrot.slane %v615, 7
        %v618 = vrot.slane %v617, 1
        %v620 = vshrl.u32 %v327, 16
        %v622 = vrot.slane %v620, 7
        %v623 = vrot.slane %v622, 1
        %v625 = vshrl.u32 %v328, 16
        %v627 = vrot.slane %v625, 7
        %v628 = vrot.slane %v627, 1
        %v630 = vshrl.u32 %v329, 16
        %v632 = vrot.slane %v630, 7
        %v633 = vrot.slane %v632, 1
        %v635 = vshrl.u32 %v338, 16
        %v637 = vrot.slane %v635, 7
        %v638 = vrot.slane %v637, 1
        %v640 = vshrl.u32 %v339, 16
        %v642 = vrot.slane %v640, 7
        %v643 = vrot.slane %v642, 1
        %v645 = vshrl.u32 %v340, 16
        %v647 = vrot.slane %v645, 7
        %v648 = vrot.slane %v647, 1
        %v650 = vshrl.u32 %v341, 16
        %v652 = vrot.slane %v650, 7
        %v653 = vrot.slane %v652, 1
        %v655 = vshrl.u32 %v342, 16
        %v657 = vrot.slane %v655, 7
        %v658 = vrot.slane %v657, 1
        %v660 = vshrl.u32 %v343, 16
        %v662 = vrot.slane %v660, 7
        %v663 = vrot.slane %v662, 1
        %v665 = vshrl.u32 %v344, 16
        %v667 = vrot.slane %v665, 7
        %v668 = vrot.slane %v667, 1
        %v670 = vshrl.u32 %v345, 16
        %v672 = vrot.slane %v670, 7
        %v673 = vrot.slane %v672, 1
        %v738 = vmax.bf16 %v226, %v358
        %v739 = vmax.bf16 %v227, %v363
        %v740 = vmax.bf16 %v228, %v368
        %v741 = vmax.bf16 %v229, %v373
        %v742 = vmax.bf16 %v230, %v378
        %v743 = vmax.bf16 %v231, %v383
        %v744 = vmax.bf16 %v232, %v388
        %v745 = vmax.bf16 %v233, %v393
        %v746 = vmax.bf16 %v242, %v398
        %v747 = vmax.bf16 %v243, %v403
        %v748 = vmax.bf16 %v244, %v408
        %v749 = vmax.bf16 %v245, %v413
        %v750 = vmax.bf16 %v246, %v418
        %v751 = vmax.bf16 %v247, %v423
        %v752 = vmax.bf16 %v248, %v428
        %v753 = vmax.bf16 %v249, %v433
        %v754 = vmax.bf16 %v258, %v438
        %v755 = vmax.bf16 %v259, %v443
        %v756 = vmax.bf16 %v260, %v448
        %v757 = vmax.bf16 %v261, %v453
        %v758 = vmax.bf16 %v262, %v458
        %v759 = vmax.bf16 %v263, %v463
        %v760 = vmax.bf16 %v264, %v468
        %v761 = vmax.bf16 %v265, %v473
        %v762 = vmax.bf16 %v274, %v478
        %v763 = vmax.bf16 %v275, %v483
        %v764 = vmax.bf16 %v276, %v488
        %v765 = vmax.bf16 %v277, %v493
        %v766 = vmax.bf16 %v278, %v498
        %v767 = vmax.bf16 %v279, %v503
        %v768 = vmax.bf16 %v280, %v508
        %v769 = vmax.bf16 %v281, %v513
        %v770 = vmax.bf16 %v290, %v518
        %v771 = vmax.bf16 %v291, %v523
        %v772 = vmax.bf16 %v292, %v528
        %v773 = vmax.bf16 %v293, %v533
        %v774 = vmax.bf16 %v294, %v538
        %v775 = vmax.bf16 %v295, %v543
        %v776 = vmax.bf16 %v296, %v548
        %v777 = vmax.bf16 %v297, %v553
        %v778 = vmax.bf16 %v306, %v558
        %v779 = vmax.bf16 %v307, %v563
        %v780 = vmax.bf16 %v308, %v568
        %v781 = vmax.bf16 %v309, %v573
        %v782 = vmax.bf16 %v310, %v578
        %v783 = vmax.bf16 %v311, %v583
        %v784 = vmax.bf16 %v312, %v588
        %v785 = vmax.bf16 %v313, %v593
        %v786 = vmax.bf16 %v322, %v598
        %v787 = vmax.bf16 %v323, %v603
        %v788 = vmax.bf16 %v324, %v608
        %v789 = vmax.bf16 %v325, %v613
        %v790 = vmax.bf16 %v326, %v618
        %v791 = vmax.bf16 %v327, %v623
        %v792 = vmax.bf16 %v328, %v628
        %v793 = vmax.bf16 %v329, %v633
        %v794 = vmax.bf16 %v338, %v638
        %v795 = vmax.bf16 %v339, %v643
        %v796 = vmax.bf16 %v340, %v648
        %v797 = vmax.bf16 %v341, %v653
        %v798 = vmax.bf16 %v342, %v658
        %v799 = vmax.bf16 %v343, %v663
        %v800 = vmax.bf16 %v344, %v668
        %v801 = vmax.bf16 %v345, %v673
        %v803 = vshrl.u32 %v234, 16
        %v805 = vrot.slane %v803, 7
        %v806 = vrot.slane %v805, 1
        %v808 = vshrl.u32 %v235, 16
        %v810 = vrot.slane %v808, 7
        %v811 = vrot.slane %v810, 1
        %v813 = vshrl.u32 %v236, 16
        %v815 = vrot.slane %v813, 7
        %v816 = vrot.slane %v815, 1
        %v818 = vshrl.u32 %v237, 16
        %v820 = vrot.slane %v818, 7
        %v821 = vrot.slane %v820, 1
        %v823 = vshrl.u32 %v238, 16
        %v825 = vrot.slane %v823, 7
        %v826 = vrot.slane %v825, 1
        %v828 = vshrl.u32 %v239, 16
        %v830 = vrot.slane %v828, 7
        %v831 = vrot.slane %v830, 1
        %v833 = vshrl.u32 %v240, 16
        %v835 = vrot.slane %v833, 7
        %v836 = vrot.slane %v835, 1
        %v838 = vshrl.u32 %v241, 16
        %v840 = vrot.slane %v838, 7
        %v841 = vrot.slane %v840, 1
        %v843 = vshrl.u32 %v250, 16
        %v845 = vrot.slane %v843, 7
        %v846 = vrot.slane %v845, 1
        %v848 = vshrl.u32 %v251, 16
        %v850 = vrot.slane %v848, 7
        %v851 = vrot.slane %v850, 1
        %v853 = vshrl.u32 %v252, 16
        %v855 = vrot.slane %v853, 7
        %v856 = vrot.slane %v855, 1
        %v858 = vshrl.u32 %v253, 16
        %v860 = vrot.slane %v858, 7
        %v861 = vrot.slane %v860, 1
        %v863 = vshrl.u32 %v254, 16
        %v865 = vrot.slane %v863, 7
        %v866 = vrot.slane %v865, 1
        %v868 = vshrl.u32 %v255, 16
        %v870 = vrot.slane %v868, 7
        %v871 = vrot.slane %v870, 1
        %v873 = vshrl.u32 %v256, 16
        %v875 = vrot.slane %v873, 7
        %v876 = vrot.slane %v875, 1
        %v878 = vshrl.u32 %v257, 16
        %v880 = vrot.slane %v878, 7
        %v881 = vrot.slane %v880, 1
        %v883 = vshrl.u32 %v266, 16
        %v885 = vrot.slane %v883, 7
        %v886 = vrot.slane %v885, 1
        %v888 = vshrl.u32 %v267, 16
        %v890 = vrot.slane %v888, 7
        %v891 = vrot.slane %v890, 1
        %v893 = vshrl.u32 %v268, 16
        %v895 = vrot.slane %v893, 7
        %v896 = vrot.slane %v895, 1
        %v898 = vshrl.u32 %v269, 16
        %v900 = vrot.slane %v898, 7
        %v901 = vrot.slane %v900, 1
        %v903 = vshrl.u32 %v270, 16
        %v905 = vrot.slane %v903, 7
        %v906 = vrot.slane %v905, 1
        %v908 = vshrl.u32 %v271, 16
        %v910 = vrot.slane %v908, 7
        %v911 = vrot.slane %v910, 1
        %v913 = vshrl.u32 %v272, 16
        %v915 = vrot.slane %v913, 7
        %v916 = vrot.slane %v915, 1
        %v918 = vshrl.u32 %v273, 16
        %v920 = vrot.slane %v918, 7
        %v921 = vrot.slane %v920, 1
        %v923 = vshrl.u32 %v282, 16
        %v925 = vrot.slane %v923, 7
        %v926 = vrot.slane %v925, 1
        %v928 = vshrl.u32 %v283, 16
        %v930 = vrot.slane %v928, 7
        %v931 = vrot.slane %v930, 1
        %v933 = vshrl.u32 %v284, 16
        %v935 = vrot.slane %v933, 7
        %v936 = vrot.slane %v935, 1
        %v938 = vshrl.u32 %v285, 16
        %v940 = vrot.slane %v938, 7
        %v941 = vrot.slane %v940, 1
        %v943 = vshrl.u32 %v286, 16
        %v945 = vrot.slane %v943, 7
        %v946 = vrot.slane %v945, 1
        %v948 = vshrl.u32 %v287, 16
        %v950 = vrot.slane %v948, 7
        %v951 = vrot.slane %v950, 1
        %v953 = vshrl.u32 %v288, 16
        %v955 = vrot.slane %v953, 7
        %v956 = vrot.slane %v955, 1
        %v958 = vshrl.u32 %v289, 16
        %v960 = vrot.slane %v958, 7
        %v961 = vrot.slane %v960, 1
        %v963 = vshrl.u32 %v298, 16
        %v965 = vrot.slane %v963, 7
        %v966 = vrot.slane %v965, 1
        %v968 = vshrl.u32 %v299, 16
        %v970 = vrot.slane %v968, 7
        %v971 = vrot.slane %v970, 1
        %v973 = vshrl.u32 %v300, 16
        %v975 = vrot.slane %v973, 7
        %v976 = vrot.slane %v975, 1
        %v978 = vshrl.u32 %v301, 16
        %v980 = vrot.slane %v978, 7
        %v981 = vrot.slane %v980, 1
        %v983 = vshrl.u32 %v302, 16
        %v985 = vrot.slane %v983, 7
        %v986 = vrot.slane %v985, 1
        %v988 = vshrl.u32 %v303, 16
        %v990 = vrot.slane %v988, 7
        %v991 = vrot.slane %v990, 1
        %v993 = vshrl.u32 %v304, 16
        %v995 = vrot.slane %v993, 7
        %v996 = vrot.slane %v995, 1
        %v998 = vshrl.u32 %v305, 16
        %v1000 = vrot.slane %v998, 7
        %v1001 = vrot.slane %v1000, 1
        %v1003 = vshrl.u32 %v314, 16
        %v1005 = vrot.slane %v1003, 7
        %v1006 = vrot.slane %v1005, 1
        %v1008 = vshrl.u32 %v315, 16
        %v1010 = vrot.slane %v1008, 7
        %v1011 = vrot.slane %v1010, 1
        %v1013 = vshrl.u32 %v316, 16
        %v1015 = vrot.slane %v1013, 7
        %v1016 = vrot.slane %v1015, 1
        %v1018 = vshrl.u32 %v317, 16
        %v1020 = vrot.slane %v1018, 7
        %v1021 = vrot.slane %v1020, 1
        %v1023 = vshrl.u32 %v318, 16
        %v1025 = vrot.slane %v1023, 7
        %v1026 = vrot.slane %v1025, 1
        %v1028 = vshrl.u32 %v319, 16
        %v1030 = vrot.slane %v1028, 7
        %v1031 = vrot.slane %v1030, 1
        %v1033 = vshrl.u32 %v320, 16
        %v1035 = vrot.slane %v1033, 7
        %v1036 = vrot.slane %v1035, 1
        %v1038 = vshrl.u32 %v321, 16
        %v1040 = vrot.slane %v1038, 7
        %v1041 = vrot.slane %v1040, 1
        %v1043 = vshrl.u32 %v330, 16
        %v1045 = vrot.slane %v1043, 7
        %v1046 = vrot.slane %v1045, 1
        %v1048 = vshrl.u32 %v331, 16
        %v1050 = vrot.slane %v1048, 7
        %v1051 = vrot.slane %v1050, 1
        %v1053 = vshrl.u32 %v332, 16
        %v1055 = vrot.slane %v1053, 7
        %v1056 = vrot.slane %v1055, 1
        %v1058 = vshrl.u32 %v333, 16
        %v1060 = vrot.slane %v1058, 7
        %v1061 = vrot.slane %v1060, 1
        %v1063 = vshrl.u32 %v334, 16
        %v1065 = vrot.slane %v1063, 7
        %v1066 = vrot.slane %v1065, 1
        %v1068 = vshrl.u32 %v335, 16
        %v1070 = vrot.slane %v1068, 7
        %v1071 = vrot.slane %v1070, 1
        %v1073 = vshrl.u32 %v336, 16
        %v1075 = vrot.slane %v1073, 7
        %v1076 = vrot.slane %v1075, 1
        %v1078 = vshrl.u32 %v337, 16
        %v1080 = vrot.slane %v1078, 7
        %v1081 = vrot.slane %v1080, 1
        %v1083 = vshrl.u32 %v346, 16
        %v1085 = vrot.slane %v1083, 7
        %v1086 = vrot.slane %v1085, 1
        %v1088 = vshrl.u32 %v347, 16
        %v1090 = vrot.slane %v1088, 7
        %v1091 = vrot.slane %v1090, 1
        %v1093 = vshrl.u32 %v348, 16
        %v1095 = vrot.slane %v1093, 7
        %v1096 = vrot.slane %v1095, 1
        %v1098 = vshrl.u32 %v349, 16
        %v1100 = vrot.slane %v1098, 7
        %v1101 = vrot.slane %v1100, 1
        %v1103 = vshrl.u32 %v350, 16
        %v1105 = vrot.slane %v1103, 7
        %v1106 = vrot.slane %v1105, 1
        %v1108 = vshrl.u32 %v351, 16
        %v1110 = vrot.slane %v1108, 7
        %v1111 = vrot.slane %v1110, 1
        %v1113 = vshrl.u32 %v352, 16
        %v1115 = vrot.slane %v1113, 7
        %v1116 = vrot.slane %v1115, 1
        %v1118 = vshrl.u32 %v353, 16
        %v1120 = vrot.slane %v1118, 7
        %v1121 = vrot.slane %v1120, 1
        %v1186 = vmax.bf16 %v234, %v806
        %v1187 = vmax.bf16 %v235, %v811
        %v1188 = vmax.bf16 %v236, %v816
        %v1189 = vmax.bf16 %v237, %v821
        %v1190 = vmax.bf16 %v238, %v826
        %v1191 = vmax.bf16 %v239, %v831
        %v1192 = vmax.bf16 %v240, %v836
        %v1193 = vmax.bf16 %v241, %v841
        %v1194 = vmax.bf16 %v250, %v846
        %v1195 = vmax.bf16 %v251, %v851
        %v1196 = vmax.bf16 %v252, %v856
        %v1197 = vmax.bf16 %v253, %v861
        %v1198 = vmax.bf16 %v254, %v866
        %v1199 = vmax.bf16 %v255, %v871
        %v1200 = vmax.bf16 %v256, %v876
        %v1201 = vmax.bf16 %v257, %v881
        %v1202 = vmax.bf16 %v266, %v886
        %v1203 = vmax.bf16 %v267, %v891
        %v1204 = vmax.bf16 %v268, %v896
        %v1205 = vmax.bf16 %v269, %v901
        %v1206 = vmax.bf16 %v270, %v906
        %v1207 = vmax.bf16 %v271, %v911
        %v1208 = vmax.bf16 %v272, %v916
        %v1209 = vmax.bf16 %v273, %v921
        %v1210 = vmax.bf16 %v282, %v926
        %v1211 = vmax.bf16 %v283, %v931
        %v1212 = vmax.bf16 %v284, %v936
        %v1213 = vmax.bf16 %v285, %v941
        %v1214 = vmax.bf16 %v286, %v946
        %v1215 = vmax.bf16 %v287, %v951
        %v1216 = vmax.bf16 %v288, %v956
        %v1217 = vmax.bf16 %v289, %v961
        %v1218 = vmax.bf16 %v298, %v966
        %v1219 = vmax.bf16 %v299, %v971
        %v1220 = vmax.bf16 %v300, %v976
        %v1221 = vmax.bf16 %v301, %v981
        %v1222 = vmax.bf16 %v302, %v986
        %v1223 = vmax.bf16 %v303, %v991
        %v1224 = vmax.bf16 %v304, %v996
        %v1225 = vmax.bf16 %v305, %v1001
        %v1226 = vmax.bf16 %v314, %v1006
        %v1227 = vmax.bf16 %v315, %v1011
        %v1228 = vmax.bf16 %v316, %v1016
        %v1229 = vmax.bf16 %v317, %v1021
        %v1230 = vmax.bf16 %v318, %v1026
        %v1231 = vmax.bf16 %v319, %v1031
        %v1232 = vmax.bf16 %v320, %v1036
        %v1233 = vmax.bf16 %v321, %v1041
        %v1234 = vmax.bf16 %v330, %v1046
        %v1235 = vmax.bf16 %v331, %v1051
        %v1236 = vmax.bf16 %v332, %v1056
        %v1237 = vmax.bf16 %v333, %v1061
        %v1238 = vmax.bf16 %v334, %v1066
        %v1239 = vmax.bf16 %v335, %v1071
        %v1240 = vmax.bf16 %v336, %v1076
        %v1241 = vmax.bf16 %v337, %v1081
        %v1242 = vmax.bf16 %v346, %v1086
        %v1243 = vmax.bf16 %v347, %v1091
        %v1244 = vmax.bf16 %v348, %v1096
        %v1245 = vmax.bf16 %v349, %v1101
        %v1246 = vmax.bf16 %v350, %v1106
        %v1247 = vmax.bf16 %v351, %v1111
        %v1248 = vmax.bf16 %v352, %v1116
        %v1249 = vmax.bf16 %v353, %v1121
        %v1250 = vmax.bf16 %v738, %v1186
        %v1251 = vmax.bf16 %v739, %v1187
        %v1252 = vmax.bf16 %v740, %v1188
        %v1253 = vmax.bf16 %v741, %v1189
        %v1254 = vmax.bf16 %v742, %v1190
        %v1255 = vmax.bf16 %v743, %v1191
        %v1256 = vmax.bf16 %v744, %v1192
        %v1257 = vmax.bf16 %v745, %v1193
        %v1258 = vmax.bf16 %v746, %v1194
        %v1259 = vmax.bf16 %v747, %v1195
        %v1260 = vmax.bf16 %v748, %v1196
        %v1261 = vmax.bf16 %v749, %v1197
        %v1262 = vmax.bf16 %v750, %v1198
        %v1263 = vmax.bf16 %v751, %v1199
        %v1264 = vmax.bf16 %v752, %v1200
        %v1265 = vmax.bf16 %v753, %v1201
        %v1266 = vmax.bf16 %v754, %v1202
        %v1267 = vmax.bf16 %v755, %v1203
        %v1268 = vmax.bf16 %v756, %v1204
        %v1269 = vmax.bf16 %v757, %v1205
        %v1270 = vmax.bf16 %v758, %v1206
        %v1271 = vmax.bf16 %v759, %v1207
        %v1272 = vmax.bf16 %v760, %v1208
        %v1273 = vmax.bf16 %v761, %v1209
        %v1274 = vmax.bf16 %v762, %v1210
        %v1275 = vmax.bf16 %v763, %v1211
        %v1276 = vmax.bf16 %v764, %v1212
        %v1277 = vmax.bf16 %v765, %v1213
        %v1278 = vmax.bf16 %v766, %v1214
        %v1279 = vmax.bf16 %v767, %v1215
        %v1280 = vmax.bf16 %v768, %v1216
        %v1281 = vmax.bf16 %v769, %v1217
        %v1282 = vmax.bf16 %v770, %v1218
        %v1283 = vmax.bf16 %v771, %v1219
        %v1284 = vmax.bf16 %v772, %v1220
        %v1285 = vmax.bf16 %v773, %v1221
        %v1286 = vmax.bf16 %v774, %v1222
        %v1287 = vmax.bf16 %v775, %v1223
        %v1288 = vmax.bf16 %v776, %v1224
        %v1289 = vmax.bf16 %v777, %v1225
        %v1290 = vmax.bf16 %v778, %v1226
        %v1291 = vmax.bf16 %v779, %v1227
        %v1292 = vmax.bf16 %v780, %v1228
        %v1293 = vmax.bf16 %v781, %v1229
        %v1294 = vmax.bf16 %v782, %v1230
        %v1295 = vmax.bf16 %v783, %v1231
        %v1296 = vmax.bf16 %v784, %v1232
        %v1297 = vmax.bf16 %v785, %v1233
        %v1298 = vmax.bf16 %v786, %v1234
        %v1299 = vmax.bf16 %v787, %v1235
        %v1300 = vmax.bf16 %v788, %v1236
        %v1301 = vmax.bf16 %v789, %v1237
        %v1302 = vmax.bf16 %v790, %v1238
        %v1303 = vmax.bf16 %v791, %v1239
        %v1304 = vmax.bf16 %v792, %v1240
        %v1305 = vmax.bf16 %v793, %v1241
        %v1306 = vmax.bf16 %v794, %v1242
        %v1307 = vmax.bf16 %v795, %v1243
        %v1308 = vmax.bf16 %v796, %v1244
        %v1309 = vmax.bf16 %v797, %v1245
        %v1310 = vmax.bf16 %v798, %v1246
        %v1311 = vmax.bf16 %v799, %v1247
        %v1312 = vmax.bf16 %v800, %v1248
        %v1313 = vmax.bf16 %v801, %v1249
        %vm1314 = vcmask 93184
        %1315 = vst.msk [vmem:[#allocation2] sm:$0xf] %vm1314, 0
        %s1316 = scalar_lea.vmem [#allocation2], 36
        %1317 = vst.msk [vmem:[%s1316] sm:$0xf] %vm1314, 0
        %v1375 = vunpack.c.l.s4 1966171168
        %v1376 = vunpack.c.0.s8 %v1375
        %v1377 = vlaneseq
        %v1378 = vshrl.u32 %v1377, 7
        %v1379 = vsub.s32 %v1376, %v1378
        %v1380 = vrot.slane %v1250, %v1379
        %v1382 = vunpack.c.l.s4 1966171168
        %v1383 = vunpack.c.0.s8 %v1382
        %v1384 = vlaneseq
        %v1385 = vshrl.u32 %v1384, 7
        %v1386 = vsub.s32 %v1383, %v1385
        %v1387 = vrot.slane %v1380, %v1386
        %v1389 = vunpack.c.l.s4 1966171168
        %v1390 = vunpack.c.0.s8 %v1389
        %v1391 = vlaneseq
        %v1392 = vshrl.u32 %v1391, 7
        %v1393 = vsub.s32 %v1390, %v1392
        %v1394 = vrot.slane %v1251, %v1393
        %v1396 = vunpack.c.l.s4 1966171168
        %v1397 = vunpack.c.0.s8 %v1396
        %v1398 = vlaneseq
        %v1399 = vshrl.u32 %v1398, 7
        %v1400 = vsub.s32 %v1397, %v1399
        %v1401 = vrot.slane %v1394, %v1400
        %v1403 = vunpack.c.l.s4 1966171168
        %v1404 = vunpack.c.0.s8 %v1403
        %v1405 = vlaneseq
        %v1406 = vshrl.u32 %v1405, 7
        %v1407 = vsub.s32 %v1404, %v1406
        %v1408 = vrot.slane %v1252, %v1407
        %v1410 = vunpack.c.l.s4 1966171168
        %v1411 = vunpack.c.0.s8 %v1410
        %v1412 = vlaneseq
        %v1413 = vshrl.u32 %v1412, 7
        %v1414 = vsub.s32 %v1411, %v1413
        %v1415 = vrot.slane %v1408, %v1414
        %v1417 = vunpack.c.l.s4 1966171168
        %v1418 = vunpack.c.0.s8 %v1417
        %v1419 = vlaneseq
        %v1420 = vshrl.u32 %v1419, 7
        %v1421 = vsub.s32 %v1418, %v1420
        %v1422 = vrot.slane %v1253, %v1421
        %v1424 = vunpack.c.l.s4 1966171168
        %v1425 = vunpack.c.0.s8 %v1424
        %v1426 = vlaneseq
        %v1427 = vshrl.u32 %v1426, 7
        %v1428 = vsub.s32 %v1425, %v1427
        %v1429 = vrot.slane %v1422, %v1428
        %v1431 = vunpack.c.l.s4 1966171168
        %v1432 = vunpack.c.0.s8 %v1431
        %v1433 = vlaneseq
        %v1434 = vshrl.u32 %v1433, 7
        %v1435 = vsub.s32 %v1432, %v1434
        %v1436 = vrot.slane %v1254, %v1435
        %v1438 = vunpack.c.l.s4 1966171168
        %v1439 = vunpack.c.0.s8 %v1438
        %v1440 = vlaneseq
        %v1441 = vshrl.u32 %v1440, 7
        %v1442 = vsub.s32 %v1439, %v1441
        %v1443 = vrot.slane %v1436, %v1442
        %v1445 = vunpack.c.l.s4 1966171168
        %v1446 = vunpack.c.0.s8 %v1445
        %v1447 = vlaneseq
        %v1448 = vshrl.u32 %v1447, 7
        %v1449 = vsub.s32 %v1446, %v1448
        %v1450 = vrot.slane %v1255, %v1449
        %v1452 = vunpack.c.l.s4 1966171168
        %v1453 = vunpack.c.0.s8 %v1452
        %v1454 = vlaneseq
        %v1455 = vshrl.u32 %v1454, 7
        %v1456 = vsub.s32 %v1453, %v1455
        %v1457 = vrot.slane %v1450, %v1456
        %v1459 = vunpack.c.l.s4 1966171168
        %v1460 = vunpack.c.0.s8 %v1459
        %v1461 = vlaneseq
        %v1462 = vshrl.u32 %v1461, 7
        %v1463 = vsub.s32 %v1460, %v1462
        %v1464 = vrot.slane %v1256, %v1463
        %v1466 = vunpack.c.l.s4 1966171168
        %v1467 = vunpack.c.0.s8 %v1466
        %v1468 = vlaneseq
        %v1469 = vshrl.u32 %v1468, 7
        %v1470 = vsub.s32 %v1467, %v1469
        %v1471 = vrot.slane %v1464, %v1470
        %v1473 = vunpack.c.l.s4 1966171168
        %v1474 = vunpack.c.0.s8 %v1473
        %v1475 = vlaneseq
        %v1476 = vshrl.u32 %v1475, 7
        %v1477 = vsub.s32 %v1474, %v1476
        %v1478 = vrot.slane %v1258, %v1477
        %v1480 = vunpack.c.l.s4 1966171168
        %v1481 = vunpack.c.0.s8 %v1480
        %v1482 = vlaneseq
        %v1483 = vshrl.u32 %v1482, 7
        %v1484 = vsub.s32 %v1481, %v1483
        %v1485 = vrot.slane %v1478, %v1484
        %v1487 = vunpack.c.l.s4 1966171168
        %v1488 = vunpack.c.0.s8 %v1487
        %v1489 = vlaneseq
        %v1490 = vshrl.u32 %v1489, 7
        %v1491 = vsub.s32 %v1488, %v1490
        %v1492 = vrot.slane %v1259, %v1491
        %v1494 = vunpack.c.l.s4 1966171168
        %v1495 = vunpack.c.0.s8 %v1494
        %v1496 = vlaneseq
        %v1497 = vshrl.u32 %v1496, 7
        %v1498 = vsub.s32 %v1495, %v1497
        %v1499 = vrot.slane %v1492, %v1498
        %v1501 = vunpack.c.l.s4 1966171168
        %v1502 = vunpack.c.0.s8 %v1501
        %v1503 = vlaneseq
        %v1504 = vshrl.u32 %v1503, 7
        %v1505 = vsub.s32 %v1502, %v1504
        %v1506 = vrot.slane %v1260, %v1505
        %v1508 = vunpack.c.l.s4 1966171168
        %v1509 = vunpack.c.0.s8 %v1508
        %v1510 = vlaneseq
        %v1511 = vshrl.u32 %v1510, 7
        %v1512 = vsub.s32 %v1509, %v1511
        %v1513 = vrot.slane %v1506, %v1512
        %v1515 = vunpack.c.l.s4 1966171168
        %v1516 = vunpack.c.0.s8 %v1515
        %v1517 = vlaneseq
        %v1518 = vshrl.u32 %v1517, 7
        %v1519 = vsub.s32 %v1516, %v1518
        %v1520 = vrot.slane %v1261, %v1519
        %v1522 = vunpack.c.l.s4 1966171168
        %v1523 = vunpack.c.0.s8 %v1522
        %v1524 = vlaneseq
        %v1525 = vshrl.u32 %v1524, 7
        %v1526 = vsub.s32 %v1523, %v1525
        %v1527 = vrot.slane %v1520, %v1526
        %v1529 = vunpack.c.l.s4 1966171168
        %v1530 = vunpack.c.0.s8 %v1529
        %v1531 = vlaneseq
        %v1532 = vshrl.u32 %v1531, 7
        %v1533 = vsub.s32 %v1530, %v1532
        %v1534 = vrot.slane %v1262, %v1533
        %v1536 = vunpack.c.l.s4 1966171168
        %v1537 = vunpack.c.0.s8 %v1536
        %v1538 = vlaneseq
        %v1539 = vshrl.u32 %v1538, 7
        %v1540 = vsub.s32 %v1537, %v1539
        %v1541 = vrot.slane %v1534, %v1540
        %v1543 = vunpack.c.l.s4 1966171168
        %v1544 = vunpack.c.0.s8 %v1543
        %v1545 = vlaneseq
        %v1546 = vshrl.u32 %v1545, 7
        %v1547 = vsub.s32 %v1544, %v1546
        %v1548 = vrot.slane %v1263, %v1547
        %v1550 = vunpack.c.l.s4 1966171168
        %v1551 = vunpack.c.0.s8 %v1550
        %v1552 = vlaneseq
        %v1553 = vshrl.u32 %v1552, 7
        %v1554 = vsub.s32 %v1551, %v1553
        %v1555 = vrot.slane %v1548, %v1554
        %v1557 = vunpack.c.l.s4 1966171168
        %v1558 = vunpack.c.0.s8 %v1557
        %v1559 = vlaneseq
        %v1560 = vshrl.u32 %v1559, 7
        %v1561 = vsub.s32 %v1558, %v1560
        %v1562 = vrot.slane %v1264, %v1561
        %v1564 = vunpack.c.l.s4 1966171168
        %v1565 = vunpack.c.0.s8 %v1564
        %v1566 = vlaneseq
        %v1567 = vshrl.u32 %v1566, 7
        %v1568 = vsub.s32 %v1565, %v1567
        %v1569 = vrot.slane %v1562, %v1568
        %v1571 = vunpack.c.l.s4 1966171168
        %v1572 = vunpack.c.0.s8 %v1571
        %v1573 = vlaneseq
        %v1574 = vshrl.u32 %v1573, 7
        %v1575 = vsub.s32 %v1572, %v1574
        %v1576 = vrot.slane %v1266, %v1575
        %v1578 = vunpack.c.l.s4 1966171168
        %v1579 = vunpack.c.0.s8 %v1578
        %v1580 = vlaneseq
        %v1581 = vshrl.u32 %v1580, 7
        %v1582 = vsub.s32 %v1579, %v1581
        %v1583 = vrot.slane %v1576, %v1582
        %v1585 = vunpack.c.l.s4 1966171168
        %v1586 = vunpack.c.0.s8 %v1585
        %v1587 = vlaneseq
        %v1588 = vshrl.u32 %v1587, 7
        %v1589 = vsub.s32 %v1586, %v1588
        %v1590 = vrot.slane %v1267, %v1589
        %v1592 = vunpack.c.l.s4 1966171168
        %v1593 = vunpack.c.0.s8 %v1592
        %v1594 = vlaneseq
        %v1595 = vshrl.u32 %v1594, 7
        %v1596 = vsub.s32 %v1593, %v1595
        %v1597 = vrot.slane %v1590, %v1596
        %v1599 = vunpack.c.l.s4 1966171168
        %v1600 = vunpack.c.0.s8 %v1599
        %v1601 = vlaneseq
        %v1602 = vshrl.u32 %v1601, 7
        %v1603 = vsub.s32 %v1600, %v1602
        %v1604 = vrot.slane %v1268, %v1603
        %v1606 = vunpack.c.l.s4 1966171168
        %v1607 = vunpack.c.0.s8 %v1606
        %v1608 = vlaneseq
        %v1609 = vshrl.u32 %v1608, 7
        %v1610 = vsub.s32 %v1607, %v1609
        %v1611 = vrot.slane %v1604, %v1610
        %v1613 = vunpack.c.l.s4 1966171168
        %v1614 = vunpack.c.0.s8 %v1613
        %v1615 = vlaneseq
        %v1616 = vshrl.u32 %v1615, 7
        %v1617 = vsub.s32 %v1614, %v1616
        %v1618 = vrot.slane %v1269, %v1617
        %v1620 = vunpack.c.l.s4 1966171168
        %v1621 = vunpack.c.0.s8 %v1620
        %v1622 = vlaneseq
        %v1623 = vshrl.u32 %v1622, 7
        %v1624 = vsub.s32 %v1621, %v1623
        %v1625 = vrot.slane %v1618, %v1624
        %v1627 = vunpack.c.l.s4 1966171168
        %v1628 = vunpack.c.0.s8 %v1627
        %v1629 = vlaneseq
        %v1630 = vshrl.u32 %v1629, 7
        %v1631 = vsub.s32 %v1628, %v1630
        %v1632 = vrot.slane %v1270, %v1631
        %v1634 = vunpack.c.l.s4 1966171168
        %v1635 = vunpack.c.0.s8 %v1634
        %v1636 = vlaneseq
        %v1637 = vshrl.u32 %v1636, 7
        %v1638 = vsub.s32 %v1635, %v1637
        %v1639 = vrot.slane %v1632, %v1638
        %v1641 = vunpack.c.l.s4 1966171168
        %v1642 = vunpack.c.0.s8 %v1641
        %v1643 = vlaneseq
        %v1644 = vshrl.u32 %v1643, 7
        %v1645 = vsub.s32 %v1642, %v1644
        %v1646 = vrot.slane %v1271, %v1645
        %v1648 = vunpack.c.l.s4 1966171168
        %v1649 = vunpack.c.0.s8 %v1648
        %v1650 = vlaneseq
        %v1651 = vshrl.u32 %v1650, 7
        %v1652 = vsub.s32 %v1649, %v1651
        %v1653 = vrot.slane %v1646, %v1652
        %v1655 = vunpack.c.l.s4 1966171168
        %v1656 = vunpack.c.0.s8 %v1655
        %v1657 = vlaneseq
        %v1658 = vshrl.u32 %v1657, 7
        %v1659 = vsub.s32 %v1656, %v1658
        %v1660 = vrot.slane %v1272, %v1659
        %v1662 = vunpack.c.l.s4 1966171168
        %v1663 = vunpack.c.0.s8 %v1662
        %v1664 = vlaneseq
        %v1665 = vshrl.u32 %v1664, 7
        %v1666 = vsub.s32 %v1663, %v1665
        %v1667 = vrot.slane %v1660, %v1666
        %v1669 = vunpack.c.l.s4 1966171168
        %v1670 = vunpack.c.0.s8 %v1669
        %v1671 = vlaneseq
        %v1672 = vshrl.u32 %v1671, 7
        %v1673 = vsub.s32 %v1670, %v1672
        %v1674 = vrot.slane %v1274, %v1673
        %v1676 = vunpack.c.l.s4 1966171168
        %v1677 = vunpack.c.0.s8 %v1676
        %v1678 = vlaneseq
        %v1679 = vshrl.u32 %v1678, 7
        %v1680 = vsub.s32 %v1677, %v1679
        %v1681 = vrot.slane %v1674, %v1680
        %v1683 = vunpack.c.l.s4 1966171168
        %v1684 = vunpack.c.0.s8 %v1683
        %v1685 = vlaneseq
        %v1686 = vshrl.u32 %v1685, 7
        %v1687 = vsub.s32 %v1684, %v1686
        %v1688 = vrot.slane %v1275, %v1687
        %v1690 = vunpack.c.l.s4 1966171168
        %v1691 = vunpack.c.0.s8 %v1690
        %v1692 = vlaneseq
        %v1693 = vshrl.u32 %v1692, 7
        %v1694 = vsub.s32 %v1691, %v1693
        %v1695 = vrot.slane %v1688, %v1694
        %v1697 = vunpack.c.l.s4 1966171168
        %v1698 = vunpack.c.0.s8 %v1697
        %v1699 = vlaneseq
        %v1700 = vshrl.u32 %v1699, 7
        %v1701 = vsub.s32 %v1698, %v1700
        %v1702 = vrot.slane %v1276, %v1701
        %v1704 = vunpack.c.l.s4 1966171168
        %v1705 = vunpack.c.0.s8 %v1704
        %v1706 = vlaneseq
        %v1707 = vshrl.u32 %v1706, 7
        %v1708 = vsub.s32 %v1705, %v1707
        %v1709 = vrot.slane %v1702, %v1708
        %v1711 = vunpack.c.l.s4 1966171168
        %v1712 = vunpack.c.0.s8 %v1711
        %v1713 = vlaneseq
        %v1714 = vshrl.u32 %v1713, 7
        %v1715 = vsub.s32 %v1712, %v1714
        %v1716 = vrot.slane %v1277, %v1715
        %v1718 = vunpack.c.l.s4 1966171168
        %v1719 = vunpack.c.0.s8 %v1718
        %v1720 = vlaneseq
        %v1721 = vshrl.u32 %v1720, 7
        %v1722 = vsub.s32 %v1719, %v1721
        %v1723 = vrot.slane %v1716, %v1722
        %v1725 = vunpack.c.l.s4 1966171168
        %v1726 = vunpack.c.0.s8 %v1725
        %v1727 = vlaneseq
        %v1728 = vshrl.u32 %v1727, 7
        %v1729 = vsub.s32 %v1726, %v1728
        %v1730 = vrot.slane %v1278, %v1729
        %v1732 = vunpack.c.l.s4 1966171168
        %v1733 = vunpack.c.0.s8 %v1732
        %v1734 = vlaneseq
        %v1735 = vshrl.u32 %v1734, 7
        %v1736 = vsub.s32 %v1733, %v1735
        %v1737 = vrot.slane %v1730, %v1736
        %v1739 = vunpack.c.l.s4 1966171168
        %v1740 = vunpack.c.0.s8 %v1739
        %v1741 = vlaneseq
        %v1742 = vshrl.u32 %v1741, 7
        %v1743 = vsub.s32 %v1740, %v1742
        %v1744 = vrot.slane %v1279, %v1743
        %v1746 = vunpack.c.l.s4 1966171168
        %v1747 = vunpack.c.0.s8 %v1746
        %v1748 = vlaneseq
        %v1749 = vshrl.u32 %v1748, 7
        %v1750 = vsub.s32 %v1747, %v1749
        %v1751 = vrot.slane %v1744, %v1750
        %v1753 = vunpack.c.l.s4 1966171168
        %v1754 = vunpack.c.0.s8 %v1753
        %v1755 = vlaneseq
        %v1756 = vshrl.u32 %v1755, 7
        %v1757 = vsub.s32 %v1754, %v1756
        %v1758 = vrot.slane %v1280, %v1757
        %v1760 = vunpack.c.l.s4 1966171168
        %v1761 = vunpack.c.0.s8 %v1760
        %v1762 = vlaneseq
        %v1763 = vshrl.u32 %v1762, 7
        %v1764 = vsub.s32 %v1761, %v1763
        %v1765 = vrot.slane %v1758, %v1764
        %v1767 = vunpack.c.l.s4 1966171168
        %v1768 = vunpack.c.0.s8 %v1767
        %v1769 = vlaneseq
        %v1770 = vshrl.u32 %v1769, 7
        %v1771 = vsub.s32 %v1768, %v1770
        %v1772 = vrot.slane %v1282, %v1771
        %v1774 = vunpack.c.l.s4 1966171168
        %v1775 = vunpack.c.0.s8 %v1774
        %v1776 = vlaneseq
        %v1777 = vshrl.u32 %v1776, 7
        %v1778 = vsub.s32 %v1775, %v1777
        %v1779 = vrot.slane %v1772, %v1778
        %v1781 = vunpack.c.l.s4 1966171168
        %v1782 = vunpack.c.0.s8 %v1781
        %v1783 = vlaneseq
        %v1784 = vshrl.u32 %v1783, 7
        %v1785 = vsub.s32 %v1782, %v1784
        %v1786 = vrot.slane %v1283, %v1785
        %v1788 = vunpack.c.l.s4 1966171168
        %v1789 = vunpack.c.0.s8 %v1788
        %v1790 = vlaneseq
        %v1791 = vshrl.u32 %v1790, 7
        %v1792 = vsub.s32 %v1789, %v1791
        %v1793 = vrot.slane %v1786, %v1792
        %v1795 = vunpack.c.l.s4 1966171168
        %v1796 = vunpack.c.0.s8 %v1795
        %v1797 = vlaneseq
        %v1798 = vshrl.u32 %v1797, 7
        %v1799 = vsub.s32 %v1796, %v1798
        %v1800 = vrot.slane %v1284, %v1799
        %v1802 = vunpack.c.l.s4 1966171168
        %v1803 = vunpack.c.0.s8 %v1802
        %v1804 = vlaneseq
        %v1805 = vshrl.u32 %v1804, 7
        %v1806 = vsub.s32 %v1803, %v1805
        %v1807 = vrot.slane %v1800, %v1806
        %v1809 = vunpack.c.l.s4 1966171168
        %v1810 = vunpack.c.0.s8 %v1809
        %v1811 = vlaneseq
        %v1812 = vshrl.u32 %v1811, 7
        %v1813 = vsub.s32 %v1810, %v1812
        %v1814 = vrot.slane %v1285, %v1813
        %v1816 = vunpack.c.l.s4 1966171168
        %v1817 = vunpack.c.0.s8 %v1816
        %v1818 = vlaneseq
        %v1819 = vshrl.u32 %v1818, 7
        %v1820 = vsub.s32 %v1817, %v1819
        %v1821 = vrot.slane %v1814, %v1820
        %v1823 = vunpack.c.l.s4 1966171168
        %v1824 = vunpack.c.0.s8 %v1823
        %v1825 = vlaneseq
        %v1826 = vshrl.u32 %v1825, 7
        %v1827 = vsub.s32 %v1824, %v1826
        %v1828 = vrot.slane %v1286, %v1827
        %v1830 = vunpack.c.l.s4 1966171168
        %v1831 = vunpack.c.0.s8 %v1830
        %v1832 = vlaneseq
        %v1833 = vshrl.u32 %v1832, 7
        %v1834 = vsub.s32 %v1831, %v1833
        %v1835 = vrot.slane %v1828, %v1834
        %v1837 = vunpack.c.l.s4 1966171168
        %v1838 = vunpack.c.0.s8 %v1837
        %v1839 = vlaneseq
        %v1840 = vshrl.u32 %v1839, 7
        %v1841 = vsub.s32 %v1838, %v1840
        %v1842 = vrot.slane %v1287, %v1841
        %v1844 = vunpack.c.l.s4 1966171168
        %v1845 = vunpack.c.0.s8 %v1844
        %v1846 = vlaneseq
        %v1847 = vshrl.u32 %v1846, 7
        %v1848 = vsub.s32 %v1845, %v1847
        %v1849 = vrot.slane %v1842, %v1848
        %v1851 = vunpack.c.l.s4 1966171168
        %v1852 = vunpack.c.0.s8 %v1851
        %v1853 = vlaneseq
        %v1854 = vshrl.u32 %v1853, 7
        %v1855 = vsub.s32 %v1852, %v1854
        %v1856 = vrot.slane %v1288, %v1855
        %v1858 = vunpack.c.l.s4 1966171168
        %v1859 = vunpack.c.0.s8 %v1858
        %v1860 = vlaneseq
        %v1861 = vshrl.u32 %v1860, 7
        %v1862 = vsub.s32 %v1859, %v1861
        %v1863 = vrot.slane %v1856, %v1862
        %v1865 = vunpack.c.l.s4 1966171168
        %v1866 = vunpack.c.0.s8 %v1865
        %v1867 = vlaneseq
        %v1868 = vshrl.u32 %v1867, 7
        %v1869 = vsub.s32 %v1866, %v1868
        %v1870 = vrot.slane %v1290, %v1869
        %v1872 = vunpack.c.l.s4 1966171168
        %v1873 = vunpack.c.0.s8 %v1872
        %v1874 = vlaneseq
        %v1875 = vshrl.u32 %v1874, 7
        %v1876 = vsub.s32 %v1873, %v1875
        %v1877 = vrot.slane %v1870, %v1876
        %v1879 = vunpack.c.l.s4 1966171168
        %v1880 = vunpack.c.0.s8 %v1879
        %v1881 = vlaneseq
        %v1882 = vshrl.u32 %v1881, 7
        %v1883 = vsub.s32 %v1880, %v1882
        %v1884 = vrot.slane %v1291, %v1883
        %v1886 = vunpack.c.l.s4 1966171168
        %v1887 = vunpack.c.0.s8 %v1886
        %v1888 = vlaneseq
        %v1889 = vshrl.u32 %v1888, 7
        %v1890 = vsub.s32 %v1887, %v1889
        %v1891 = vrot.slane %v1884, %v1890
        %v1893 = vunpack.c.l.s4 1966171168
        %v1894 = vunpack.c.0.s8 %v1893
        %v1895 = vlaneseq
        %v1896 = vshrl.u32 %v1895, 7
        %v1897 = vsub.s32 %v1894, %v1896
        %v1898 = vrot.slane %v1292, %v1897
        %v1900 = vunpack.c.l.s4 1966171168
        %v1901 = vunpack.c.0.s8 %v1900
        %v1902 = vlaneseq
        %v1903 = vshrl.u32 %v1902, 7
        %v1904 = vsub.s32 %v1901, %v1903
        %v1905 = vrot.slane %v1898, %v1904
        %v1907 = vunpack.c.l.s4 1966171168
        %v1908 = vunpack.c.0.s8 %v1907
        %v1909 = vlaneseq
        %v1910 = vshrl.u32 %v1909, 7
        %v1911 = vsub.s32 %v1908, %v1910
        %v1912 = vrot.slane %v1293, %v1911
        %v1914 = vunpack.c.l.s4 1966171168
        %v1915 = vunpack.c.0.s8 %v1914
        %v1916 = vlaneseq
        %v1917 = vshrl.u32 %v1916, 7
        %v1918 = vsub.s32 %v1915, %v1917
        %v1919 = vrot.slane %v1912, %v1918
        %v1921 = vunpack.c.l.s4 1966171168
        %v1922 = vunpack.c.0.s8 %v1921
        %v1923 = vlaneseq
        %v1924 = vshrl.u32 %v1923, 7
        %v1925 = vsub.s32 %v1922, %v1924
        %v1926 = vrot.slane %v1294, %v1925
        %v1928 = vunpack.c.l.s4 1966171168
        %v1929 = vunpack.c.0.s8 %v1928
        %v1930 = vlaneseq
        %v1931 = vshrl.u32 %v1930, 7
        %v1932 = vsub.s32 %v1929, %v1931
        %v1933 = vrot.slane %v1926, %v1932
        %v1935 = vunpack.c.l.s4 1966171168
        %v1936 = vunpack.c.0.s8 %v1935
        %v1937 = vlaneseq
        %v1938 = vshrl.u32 %v1937, 7
        %v1939 = vsub.s32 %v1936, %v1938
        %v1940 = vrot.slane %v1295, %v1939
        %v1942 = vunpack.c.l.s4 1966171168
        %v1943 = vunpack.c.0.s8 %v1942
        %v1944 = vlaneseq
        %v1945 = vshrl.u32 %v1944, 7
        %v1946 = vsub.s32 %v1943, %v1945
        %v1947 = vrot.slane %v1940, %v1946
        %v1949 = vunpack.c.l.s4 1966171168
        %v1950 = vunpack.c.0.s8 %v1949
        %v1951 = vlaneseq
        %v1952 = vshrl.u32 %v1951, 7
        %v1953 = vsub.s32 %v1950, %v1952
        %v1954 = vrot.slane %v1296, %v1953
        %v1956 = vunpack.c.l.s4 1966171168
        %v1957 = vunpack.c.0.s8 %v1956
        %v1958 = vlaneseq
        %v1959 = vshrl.u32 %v1958, 7
        %v1960 = vsub.s32 %v1957, %v1959
        %v1961 = vrot.slane %v1954, %v1960
        %v1963 = vunpack.c.l.s4 1966171168
        %v1964 = vunpack.c.0.s8 %v1963
        %v1965 = vlaneseq
        %v1966 = vshrl.u32 %v1965, 7
        %v1967 = vsub.s32 %v1964, %v1966
        %v1968 = vrot.slane %v1298, %v1967
        %v1970 = vunpack.c.l.s4 1966171168
        %v1971 = vunpack.c.0.s8 %v1970
        %v1972 = vlaneseq
        %v1973 = vshrl.u32 %v1972, 7
        %v1974 = vsub.s32 %v1971, %v1973
        %v1975 = vrot.slane %v1968, %v1974
        %v1977 = vunpack.c.l.s4 1966171168
        %v1978 = vunpack.c.0.s8 %v1977
        %v1979 = vlaneseq
        %v1980 = vshrl.u32 %v1979, 7
        %v1981 = vsub.s32 %v1978, %v1980
        %v1982 = vrot.slane %v1299, %v1981
        %v1984 = vunpack.c.l.s4 1966171168
        %v1985 = vunpack.c.0.s8 %v1984
        %v1986 = vlaneseq
        %v1987 = vshrl.u32 %v1986, 7
        %v1988 = vsub.s32 %v1985, %v1987
        %v1989 = vrot.slane %v1982, %v1988
        %v1991 = vunpack.c.l.s4 1966171168
        %v1992 = vunpack.c.0.s8 %v1991
        %v1993 = vlaneseq
        %v1994 = vshrl.u32 %v1993, 7
        %v1995 = vsub.s32 %v1992, %v1994
        %v1996 = vrot.slane %v1300, %v1995
        %v1998 = vunpack.c.l.s4 1966171168
        %v1999 = vunpack.c.0.s8 %v1998
        %v2000 = vlaneseq
        %v2001 = vshrl.u32 %v2000, 7
        %v2002 = vsub.s32 %v1999, %v2001
        %v2003 = vrot.slane %v1996, %v2002
        %v2005 = vunpack.c.l.s4 1966171168
        %v2006 = vunpack.c.0.s8 %v2005
        %v2007 = vlaneseq
        %v2008 = vshrl.u32 %v2007, 7
        %v2009 = vsub.s32 %v2006, %v2008
        %v2010 = vrot.slane %v1301, %v2009
        %v2012 = vunpack.c.l.s4 1966171168
        %v2013 = vunpack.c.0.s8 %v2012
        %v2014 = vlaneseq
        %v2015 = vshrl.u32 %v2014, 7
        %v2016 = vsub.s32 %v2013, %v2015
        %v2017 = vrot.slane %v2010, %v2016
        %v2019 = vunpack.c.l.s4 1966171168
        %v2020 = vunpack.c.0.s8 %v2019
        %v2021 = vlaneseq
        %v2022 = vshrl.u32 %v2021, 7
        %v2023 = vsub.s32 %v2020, %v2022
        %v2024 = vrot.slane %v1302, %v2023
        %v2026 = vunpack.c.l.s4 1966171168
        %v2027 = vunpack.c.0.s8 %v2026
        %v2028 = vlaneseq
        %v2029 = vshrl.u32 %v2028, 7
        %v2030 = vsub.s32 %v2027, %v2029
        %v2031 = vrot.slane %v2024, %v2030
        %v2033 = vunpack.c.l.s4 1966171168
        %v2034 = vunpack.c.0.s8 %v2033
        %v2035 = vlaneseq
        %v2036 = vshrl.u32 %v2035, 7
        %v2037 = vsub.s32 %v2034, %v2036
        %v2038 = vrot.slane %v1303, %v2037
        %v2040 = vunpack.c.l.s4 1966171168
        %v2041 = vunpack.c.0.s8 %v2040
        %v2042 = vlaneseq
        %v2043 = vshrl.u32 %v2042, 7
        %v2044 = vsub.s32 %v2041, %v2043
        %v2045 = vrot.slane %v2038, %v2044
        %v2047 = vunpack.c.l.s4 1966171168
        %v2048 = vunpack.c.0.s8 %v2047
        %v2049 = vlaneseq
        %v2050 = vshrl.u32 %v2049, 7
        %v2051 = vsub.s32 %v2048, %v2050
        %v2052 = vrot.slane %v1304, %v2051
        %v2054 = vunpack.c.l.s4 1966171168
        %v2055 = vunpack.c.0.s8 %v2054
        %v2056 = vlaneseq
        %v2057 = vshrl.u32 %v2056, 7
        %v2058 = vsub.s32 %v2055, %v2057
        %v2059 = vrot.slane %v2052, %v2058
        %v2061 = vunpack.c.l.s4 1966171168
        %v2062 = vunpack.c.0.s8 %v2061
        %v2063 = vlaneseq
        %v2064 = vshrl.u32 %v2063, 7
        %v2065 = vsub.s32 %v2062, %v2064
        %v2066 = vrot.slane %v1306, %v2065
        %v2068 = vunpack.c.l.s4 1966171168
        %v2069 = vunpack.c.0.s8 %v2068
        %v2070 = vlaneseq
        %v2071 = vshrl.u32 %v2070, 7
        %v2072 = vsub.s32 %v2069, %v2071
        %v2073 = vrot.slane %v2066, %v2072
        %v2075 = vunpack.c.l.s4 1966171168
        %v2076 = vunpack.c.0.s8 %v2075
        %v2077 = vlaneseq
        %v2078 = vshrl.u32 %v2077, 7
        %v2079 = vsub.s32 %v2076, %v2078
        %v2080 = vrot.slane %v1307, %v2079
        %v2082 = vunpack.c.l.s4 1966171168
        %v2083 = vunpack.c.0.s8 %v2082
        %v2084 = vlaneseq
        %v2085 = vshrl.u32 %v2084, 7
        %v2086 = vsub.s32 %v2083, %v2085
        %v2087 = vrot.slane %v2080, %v2086
        %v2089 = vunpack.c.l.s4 1966171168
        %v2090 = vunpack.c.0.s8 %v2089
        %v2091 = vlaneseq
        %v2092 = vshrl.u32 %v2091, 7
        %v2093 = vsub.s32 %v2090, %v2092
        %v2094 = vrot.slane %v1308, %v2093
        %v2096 = vunpack.c.l.s4 1966171168
        %v2097 = vunpack.c.0.s8 %v2096
        %v2098 = vlaneseq
        %v2099 = vshrl.u32 %v2098, 7
        %v2100 = vsub.s32 %v2097, %v2099
        %v2101 = vrot.slane %v2094, %v2100
        %v2103 = vunpack.c.l.s4 1966171168
        %v2104 = vunpack.c.0.s8 %v2103
        %v2105 = vlaneseq
        %v2106 = vshrl.u32 %v2105, 7
        %v2107 = vsub.s32 %v2104, %v2106
        %v2108 = vrot.slane %v1309, %v2107
        %v2110 = vunpack.c.l.s4 1966171168
        %v2111 = vunpack.c.0.s8 %v2110
        %v2112 = vlaneseq
        %v2113 = vshrl.u32 %v2112, 7
        %v2114 = vsub.s32 %v2111, %v2113
        %v2115 = vrot.slane %v2108, %v2114
        %v2117 = vunpack.c.l.s4 1966171168
        %v2118 = vunpack.c.0.s8 %v2117
        %v2119 = vlaneseq
        %v2120 = vshrl.u32 %v2119, 7
        %v2121 = vsub.s32 %v2118, %v2120
        %v2122 = vrot.slane %v1310, %v2121
        %v2124 = vunpack.c.l.s4 1966171168
        %v2125 = vunpack.c.0.s8 %v2124
        %v2126 = vlaneseq
        %v2127 = vshrl.u32 %v2126, 7
        %v2128 = vsub.s32 %v2125, %v2127
        %v2129 = vrot.slane %v2122, %v2128
        %v2131 = vunpack.c.l.s4 1966171168
        %v2132 = vunpack.c.0.s8 %v2131
        %v2133 = vlaneseq
        %v2134 = vshrl.u32 %v2133, 7
        %v2135 = vsub.s32 %v2132, %v2134
        %v2136 = vrot.slane %v1311, %v2135
        %v2138 = vunpack.c.l.s4 1966171168
        %v2139 = vunpack.c.0.s8 %v2138
        %v2140 = vlaneseq
        %v2141 = vshrl.u32 %v2140, 7
        %v2142 = vsub.s32 %v2139, %v2141
        %v2143 = vrot.slane %v2136, %v2142
        %v2145 = vunpack.c.l.s4 1966171168
        %v2146 = vunpack.c.0.s8 %v2145
        %v2147 = vlaneseq
        %v2148 = vshrl.u32 %v2147, 7
        %v2149 = vsub.s32 %v2146, %v2148
        %v2150 = vrot.slane %v1312, %v2149
        %v2152 = vunpack.c.l.s4 1966171168
        %v2153 = vunpack.c.0.s8 %v2152
        %v2154 = vlaneseq
        %v2155 = vshrl.u32 %v2154, 7
        %v2156 = vsub.s32 %v2153, %v2155
        %v2157 = vrot.slane %v2150, %v2156
        %v2158 = vunpack.c.l.b16 %v1387
        %v2159 = vunpack.c.l.b16 %v1401
        %v2160 = vunpack.c.l.b16 %v1415
        %v2161 = vunpack.c.l.b16 %v1429
        %v2162 = vunpack.c.l.b16 %v1443
        %v2163 = vunpack.c.l.b16 %v1457
        %v2164 = vunpack.c.l.b16 %v1471
        %v2165 = vunpack.c.l.b16 %v1485
        %v2166 = vunpack.c.l.b16 %v1499
        %v2167 = vunpack.c.l.b16 %v1513
        %v2168 = vunpack.c.l.b16 %v1527
        %v2169 = vunpack.c.l.b16 %v1541
        %v2170 = vunpack.c.l.b16 %v1555
        %v2171 = vunpack.c.l.b16 %v1569
        %v2172 = vunpack.c.l.b16 %v1583
        %v2173 = vunpack.c.l.b16 %v1597
        %v2174 = vunpack.c.l.b16 %v1611
        %v2175 = vunpack.c.l.b16 %v1625
        %v2176 = vunpack.c.l.b16 %v1639
        %v2177 = vunpack.c.l.b16 %v1653
        %v2178 = vunpack.c.l.b16 %v1667
        %v2179 = vunpack.c.l.b16 %v1681
        %v2180 = vunpack.c.l.b16 %v1695
        %v2181 = vunpack.c.l.b16 %v1709
        %v2182 = vunpack.c.l.b16 %v1723
        %v2183 = vunpack.c.l.b16 %v1737
        %v2184 = vunpack.c.l.b16 %v1751
        %v2185 = vunpack.c.l.b16 %v1765
        %v2186 = vunpack.c.l.b16 %v1779
        %v2187 = vunpack.c.l.b16 %v1793
        %v2188 = vunpack.c.l.b16 %v1807
        %v2189 = vunpack.c.l.b16 %v1821
        %v2190 = vunpack.c.l.b16 %v1835
        %v2191 = vunpack.c.l.b16 %v1849
        %v2192 = vunpack.c.l.b16 %v1863
        %v2193 = vunpack.c.l.b16 %v1877
        %v2194 = vunpack.c.l.b16 %v1891
        %v2195 = vunpack.c.l.b16 %v1905
        %v2196 = vunpack.c.l.b16 %v1919
        %v2197 = vunpack.c.l.b16 %v1933
        %v2198 = vunpack.c.l.b16 %v1947
        %v2199 = vunpack.c.l.b16 %v1961
        %v2200 = vunpack.c.l.b16 %v1975
        %v2201 = vunpack.c.l.b16 %v1989
        %v2202 = vunpack.c.l.b16 %v2003
        %v2203 = vunpack.c.l.b16 %v2017
        %v2204 = vunpack.c.l.b16 %v2031
        %v2205 = vunpack.c.l.b16 %v2045
        %v2206 = vunpack.c.l.b16 %v2059
        %v2207 = vunpack.c.l.b16 %v2073
        %v2208 = vunpack.c.l.b16 %v2087
        %v2209 = vunpack.c.l.b16 %v2101
        %v2210 = vunpack.c.l.b16 %v2115
        %v2211 = vunpack.c.l.b16 %v2129
        %v2212 = vunpack.c.l.b16 %v2143
        %v2213 = vunpack.c.l.b16 %v2157
        %v2214 = vrot.slane %v2158, 7
        %v2215 = vrot.slane %v2159, 6
        %vm2216 = vcmask 1042434
        %v2217 = vsel %vm2216, %v2215, %v2214
        %v2218 = vrot.slane %v2160, 5
        %vm2219 = vcmask 1043459
        %v2220 = vsel %vm2219, %v2218, %v2217
        %v2221 = vrot.slane %v2161, 4
        %vm2222 = vcmask 1044484
        %v2223 = vsel %vm2222, %v2221, %v2220
        %v2224 = vrot.slane %v2162, 3
        %vm2225 = vcmask 1045509
        %v2226 = vsel %vm2225, %v2224, %v2223
        %v2227 = vrot.slane %v2163, 2
        %vm2228 = vcmask 1046534
        %v2229 = vsel %vm2228, %v2227, %v2226
        %v2230 = vrot.slane %v2164, 1
        %vm2231 = vcmask 1047559
        %v2232 = vsel %vm2231, %v2230, %v2229
        %v2233 = vrot.slane %v2165, 7
        %v2234 = vrot.slane %v2166, 6
        %v2235 = vsel %vm2216, %v2234, %v2233
        %v2236 = vrot.slane %v2167, 5
        %v2237 = vsel %vm2219, %v2236, %v2235
        %v2238 = vrot.slane %v2168, 4
        %v2239 = vsel %vm2222, %v2238, %v2237
        %v2240 = vrot.slane %v2169, 3
        %v2241 = vsel %vm2225, %v2240, %v2239
        %v2242 = vrot.slane %v2170, 2
        %v2243 = vsel %vm2228, %v2242, %v2241
        %v2244 = vrot.slane %v2171, 1
        %v2245 = vsel %vm2231, %v2244, %v2243
        %v2246 = vrot.slane %v2172, 7
        %v2247 = vrot.slane %v2173, 6
        %v2248 = vsel %vm2216, %v2247, %v2246
        %v2249 = vrot.slane %v2174, 5
        %v2250 = vsel %vm2219, %v2249, %v2248
        %v2251 = vrot.slane %v2175, 4
        %v2252 = vsel %vm2222, %v2251, %v2250
        %v2253 = vrot.slane %v2176, 3
        %v2254 = vsel %vm2225, %v2253, %v2252
        %v2255 = vrot.slane %v2177, 2
        %v2256 = vsel %vm2228, %v2255, %v2254
        %v2257 = vrot.slane %v2178, 1
        %v2258 = vsel %vm2231, %v2257, %v2256
        %v2259 = vrot.slane %v2179, 7
        %v2260 = vrot.slane %v2180, 6
        %v2261 = vsel %vm2216, %v2260, %v2259
        %v2262 = vrot.slane %v2181, 5
        %v2263 = vsel %vm2219, %v2262, %v2261
        %v2264 = vrot.slane %v2182, 4
        %v2265 = vsel %vm2222, %v2264, %v2263
        %v2266 = vrot.slane %v2183, 3
        %v2267 = vsel %vm2225, %v2266, %v2265
        %v2268 = vrot.slane %v2184, 2
        %v2269 = vsel %vm2228, %v2268, %v2267
        %v2270 = vrot.slane %v2185, 1
        %v2271 = vsel %vm2231, %v2270, %v2269
        %v2272 = vrot.slane %v2186, 7
        %v2273 = vrot.slane %v2187, 6
        %v2274 = vsel %vm2216, %v2273, %v2272
        %v2275 = vrot.slane %v2188, 5
        %v2276 = vsel %vm2219, %v2275, %v2274
        %v2277 = vrot.slane %v2189, 4
        %v2278 = vsel %vm2222, %v2277, %v2276
        %v2279 = vrot.slane %v2190, 3
        %v2280 = vsel %vm2225, %v2279, %v2278
        %v2281 = vrot.slane %v2191, 2
        %v2282 = vsel %vm2228, %v2281, %v2280
        %v2283 = vrot.slane %v2192, 1
        %v2284 = vsel %vm2231, %v2283, %v2282
        %v2285 = vrot.slane %v2193, 7
        %v2286 = vrot.slane %v2194, 6
        %v2287 = vsel %vm2216, %v2286, %v2285
        %v2288 = vrot.slane %v2195, 5
        %v2289 = vsel %vm2219, %v2288, %v2287
        %v2290 = vrot.slane %v2196, 4
        %v2291 = vsel %vm2222, %v2290, %v2289
        %v2292 = vrot.slane %v2197, 3
        %v2293 = vsel %vm2225, %v2292, %v2291
        %v2294 = vrot.slane %v2198, 2
        %v2295 = vsel %vm2228, %v2294, %v2293
        %v2296 = vrot.slane %v2199, 1
        %v2297 = vsel %vm2231, %v2296, %v2295
        %v2298 = vrot.slane %v2200, 7
        %v2299 = vrot.slane %v2201, 6
        %v2300 = vsel %vm2216, %v2299, %v2298
        %v2301 = vrot.slane %v2202, 5
        %v2302 = vsel %vm2219, %v2301, %v2300
        %v2303 = vrot.slane %v2203, 4
        %v2304 = vsel %vm2222, %v2303, %v2302
        %v2305 = vrot.slane %v2204, 3
        %v2306 = vsel %vm2225, %v2305, %v2304
        %v2307 = vrot.slane %v2205, 2
        %v2308 = vsel %vm2228, %v2307, %v2306
        %v2309 = vrot.slane %v2206, 1
        %v2310 = vsel %vm2231, %v2309, %v2308
        %v2311 = vrot.slane %v2207, 7
        %v2312 = vrot.slane %v2208, 6
        %v2313 = vsel %vm2216, %v2312, %v2311
        %v2314 = vrot.slane %v2209, 5
        %v2315 = vsel %vm2219, %v2314, %v2313
        %v2316 = vrot.slane %v2210, 4
        %v2317 = vsel %vm2222, %v2316, %v2315
        %v2318 = vrot.slane %v2211, 3
        %v2319 = vsel %vm2225, %v2318, %v2317
        %v2320 = vrot.slane %v2212, 2
        %v2321 = vsel %vm2228, %v2320, %v2319
        %v2322 = vrot.slane %v2213, 1
        %v2323 = vsel %vm2231, %v2322, %v2321
        %v2324 = vpack.c.b16 %v2232, %v2232
        %v2325 = vpack.c.b16 %v2245, %v2245
        %v2326 = vpack.c.b16 %v2258, %v2258
        %v2327 = vpack.c.b16 %v2271, %v2271
        %v2328 = vpack.c.b16 %v2284, %v2284
        %v2329 = vpack.c.b16 %v2297, %v2297
        %v2330 = vpack.c.b16 %v2310, %v2310
        %v2331 = vpack.c.b16 %v2323, %v2323
        %vm2340 = vcmask 1040384
        %vm2341 = vsmask.f32 256
        %vm2342 = vmand %vm2340, %vm2341
        %v2343 = vsel %vm2342, 0, %v2324
        %v2344 = vsel %vm2342, 0, %v2325
        %v2345 = vsel %vm2342, 0, %v2326
        %v2346 = vsel %vm2342, 0, %v2327
        %v2347 = vsel %vm2342, 0, %v2328
        %v2348 = vsel %vm2342, 0, %v2329
        %v2349 = vsel %vm2342, 0, %v2330
        %v2350 = vsel %vm2342, 0, %v2331
        %v2360 = vunpack.c.l.s4 1966171168
        %v2361 = vunpack.c.0.s8 %v2360
        %v2362 = vlaneseq
        %v2363 = vshrl.u32 %v2362, 7
        %v2364 = vsub.s32 %v2361, %v2363
        %v2365 = vrot.slane %v1257, %v2364
        %v2367 = vunpack.c.l.s4 1966171168
        %v2368 = vunpack.c.0.s8 %v2367
        %v2369 = vlaneseq
        %v2370 = vshrl.u32 %v2369, 7
        %v2371 = vsub.s32 %v2368, %v2370
        %v2372 = vrot.slane %v2365, %v2371
        %v2374 = vunpack.c.l.s4 1966171168
        %v2375 = vunpack.c.0.s8 %v2374
        %v2376 = vlaneseq
        %v2377 = vshrl.u32 %v2376, 7
        %v2378 = vsub.s32 %v2375, %v2377
        %v2379 = vrot.slane %v1265, %v2378
        %v2381 = vunpack.c.l.s4 1966171168
        %v2382 = vunpack.c.0.s8 %v2381
        %v2383 = vlaneseq
        %v2384 = vshrl.u32 %v2383, 7
        %v2385 = vsub.s32 %v2382, %v2384
        %v2386 = vrot.slane %v2379, %v2385
        %v2388 = vunpack.c.l.s4 1966171168
        %v2389 = vunpack.c.0.s8 %v2388
        %v2390 = vlaneseq
        %v2391 = vshrl.u32 %v2390, 7
        %v2392 = vsub.s32 %v2389, %v2391
        %v2393 = vrot.slane %v1273, %v2392
        %v2395 = vunpack.c.l.s4 1966171168
        %v2396 = vunpack.c.0.s8 %v2395
        %v2397 = vlaneseq
        %v2398 = vshrl.u32 %v2397, 7
        %v2399 = vsub.s32 %v2396, %v2398
        %v2400 = vrot.slane %v2393, %v2399
        %v2402 = vunpack.c.l.s4 1966171168
        %v2403 = vunpack.c.0.s8 %v2402
        %v2404 = vlaneseq
        %v2405 = vshrl.u32 %v2404, 7
        %v2406 = vsub.s32 %v2403, %v2405
        %v2407 = vrot.slane %v1281, %v2406
        %v2409 = vunpack.c.l.s4 1966171168
        %v2410 = vunpack.c.0.s8 %v2409
        %v2411 = vlaneseq
        %v2412 = vshrl.u32 %v2411, 7
        %v2413 = vsub.s32 %v2410, %v2412
        %v2414 = vrot.slane %v2407, %v2413
        %v2416 = vunpack.c.l.s4 1966171168
        %v2417 = vunpack.c.0.s8 %v2416
        %v2418 = vlaneseq
        %v2419 = vshrl.u32 %v2418, 7
        %v2420 = vsub.s32 %v2417, %v2419
        %v2421 = vrot.slane %v1289, %v2420
        %v2423 = vunpack.c.l.s4 1966171168
        %v2424 = vunpack.c.0.s8 %v2423
        %v2425 = vlaneseq
        %v2426 = vshrl.u32 %v2425, 7
        %v2427 = vsub.s32 %v2424, %v2426
        %v2428 = vrot.slane %v2421, %v2427
        %v2430 = vunpack.c.l.s4 1966171168
        %v2431 = vunpack.c.0.s8 %v2430
        %v2432 = vlaneseq
        %v2433 = vshrl.u32 %v2432, 7
        %v2434 = vsub.s32 %v2431, %v2433
        %v2435 = vrot.slane %v1297, %v2434
        %v2437 = vunpack.c.l.s4 1966171168
        %v2438 = vunpack.c.0.s8 %v2437
        %v2439 = vlaneseq
        %v2440 = vshrl.u32 %v2439, 7
        %v2441 = vsub.s32 %v2438, %v2440
        %v2442 = vrot.slane %v2435, %v2441
        %v2444 = vunpack.c.l.s4 1966171168
        %v2445 = vunpack.c.0.s8 %v2444
        %v2446 = vlaneseq
        %v2447 = vshrl.u32 %v2446, 7
        %v2448 = vsub.s32 %v2445, %v2447
        %v2449 = vrot.slane %v1305, %v2448
        %v2451 = vunpack.c.l.s4 1966171168
        %v2452 = vunpack.c.0.s8 %v2451
        %v2453 = vlaneseq
        %v2454 = vshrl.u32 %v2453, 7
        %v2455 = vsub.s32 %v2452, %v2454
        %v2456 = vrot.slane %v2449, %v2455
        %v2458 = vunpack.c.l.s4 1966171168
        %v2459 = vunpack.c.0.s8 %v2458
        %v2460 = vlaneseq
        %v2461 = vshrl.u32 %v2460, 7
        %v2462 = vsub.s32 %v2459, %v2461
        %v2463 = vrot.slane %v1313, %v2462
        %v2465 = vunpack.c.l.s4 1966171168
        %v2466 = vunpack.c.0.s8 %v2465
        %v2467 = vlaneseq
        %v2468 = vshrl.u32 %v2467, 7
        %v2469 = vsub.s32 %v2466, %v2468
        %v2470 = vrot.slane %v2463, %v2469
        %v2471 = vunpack.c.l.b16 %v2372
        %v2472 = vunpack.c.l.b16 %v2386
        %v2473 = vunpack.c.l.b16 %v2400
        %v2474 = vunpack.c.l.b16 %v2414
        %v2475 = vunpack.c.l.b16 %v2428
        %v2476 = vunpack.c.l.b16 %v2442
        %v2477 = vunpack.c.l.b16 %v2456
        %v2478 = vunpack.c.l.b16 %v2470
        %v2479 = vrot.slane %v2160, 7
        %vm2480 = vcmask 1041409
        %v2481 = vsel %vm2480, %v2479, %v2159
        %v2482 = vrot.slane %v2161, 6
        %v2483 = vsel %vm2216, %v2482, %v2481
        %v2484 = vrot.slane %v2162, 5
        %v2485 = vsel %vm2219, %v2484, %v2483
        %v2486 = vrot.slane %v2163, 4
        %v2487 = vsel %vm2222, %v2486, %v2485
        %v2488 = vrot.slane %v2164, 3
        %v2489 = vsel %vm2225, %v2488, %v2487
        %v2490 = vrot.slane %v2471, 2
        %v2491 = vsel %vm2228, %v2490, %v2489
        %v2492 = vrot.slane %v2167, 7
        %v2493 = vsel %vm2480, %v2492, %v2166
        %v2494 = vrot.slane %v2168, 6
        %v2495 = vsel %vm2216, %v2494, %v2493
        %v2496 = vrot.slane %v2169, 5
        %v2497 = vsel %vm2219, %v2496, %v2495
        %v2498 = vrot.slane %v2170, 4
        %v2499 = vsel %vm2222, %v2498, %v2497
        %v2500 = vrot.slane %v2171, 3
        %v2501 = vsel %vm2225, %v2500, %v2499
        %v2502 = vrot.slane %v2472, 2
        %v2503 = vsel %vm2228, %v2502, %v2501
        %v2504 = vrot.slane %v2174, 7
        %v2505 = vsel %vm2480, %v2504, %v2173
        %v2506 = vrot.slane %v2175, 6
        %v2507 = vsel %vm2216, %v2506, %v2505
        %v2508 = vrot.slane %v2176, 5
        %v2509 = vsel %vm2219, %v2508, %v2507
        %v2510 = vrot.slane %v2177, 4
        %v2511 = vsel %vm2222, %v2510, %v2509
        %v2512 = vrot.slane %v2178, 3
        %v2513 = vsel %vm2225, %v2512, %v2511
        %v2514 = vrot.slane %v2473, 2
        %v2515 = vsel %vm2228, %v2514, %v2513
        %v2516 = vrot.slane %v2181, 7
        %v2517 = vsel %vm2480, %v2516, %v2180
        %v2518 = vrot.slane %v2182, 6
        %v2519 = vsel %vm2216, %v2518, %v2517
        %v2520 = vrot.slane %v2183, 5
        %v2521 = vsel %vm2219, %v2520, %v2519
        %v2522 = vrot.slane %v2184, 4
        %v2523 = vsel %vm2222, %v2522, %v2521
        %v2524 = vrot.slane %v2185, 3
        %v2525 = vsel %vm2225, %v2524, %v2523
        %v2526 = vrot.slane %v2474, 2
        %v2527 = vsel %vm2228, %v2526, %v2525
        %v2528 = vrot.slane %v2188, 7
        %v2529 = vsel %vm2480, %v2528, %v2187
        %v2530 = vrot.slane %v2189, 6
        %v2531 = vsel %vm2216, %v2530, %v2529
        %v2532 = vrot.slane %v2190, 5
        %v2533 = vsel %vm2219, %v2532, %v2531
        %v2534 = vrot.slane %v2191, 4
        %v2535 = vsel %vm2222, %v2534, %v2533
        %v2536 = vrot.slane %v2192, 3
        %v2537 = vsel %vm2225, %v2536, %v2535
        %v2538 = vrot.slane %v2475, 2
        %v2539 = vsel %vm2228, %v2538, %v2537
        %v2540 = vrot.slane %v2195, 7
        %v2541 = vsel %vm2480, %v2540, %v2194
        %v2542 = vrot.slane %v2196, 6
        %v2543 = vsel %vm2216, %v2542, %v2541
        %v2544 = vrot.slane %v2197, 5
        %v2545 = vsel %vm2219, %v2544, %v2543
        %v2546 = vrot.slane %v2198, 4
        %v2547 = vsel %vm2222, %v2546, %v2545
        %v2548 = vrot.slane %v2199, 3
        %v2549 = vsel %vm2225, %v2548, %v2547
        %v2550 = vrot.slane %v2476, 2
        %v2551 = vsel %vm2228, %v2550, %v2549
        %v2552 = vrot.slane %v2202, 7
        %v2553 = vsel %vm2480, %v2552, %v2201
        %v2554 = vrot.slane %v2203, 6
        %v2555 = vsel %vm2216, %v2554, %v2553
        %v2556 = vrot.slane %v2204, 5
        %v2557 = vsel %vm2219, %v2556, %v2555
        %v2558 = vrot.slane %v2205, 4
        %v2559 = vsel %vm2222, %v2558, %v2557
        %v2560 = vrot.slane %v2206, 3
        %v2561 = vsel %vm2225, %v2560, %v2559
        %v2562 = vrot.slane %v2477, 2
        %v2563 = vsel %vm2228, %v2562, %v2561
        %v2564 = vrot.slane %v2209, 7
        %v2565 = vsel %vm2480, %v2564, %v2208
        %v2566 = vrot.slane %v2210, 6
        %v2567 = vsel %vm2216, %v2566, %v2565
        %v2568 = vrot.slane %v2211, 5
        %v2569 = vsel %vm2219, %v2568, %v2567
        %v2570 = vrot.slane %v2212, 4
        %v2571 = vsel %vm2222, %v2570, %v2569
        %v2572 = vrot.slane %v2213, 3
        %v2573 = vsel %vm2225, %v2572, %v2571
        %v2574 = vrot.slane %v2478, 2
        %v2575 = vsel %vm2228, %v2574, %v2573
        %v2576 = vpack.c.b16 %v2491, %v2491
        %v2577 = vpack.c.b16 %v2503, %v2503
        %v2578 = vpack.c.b16 %v2515, %v2515
        %v2579 = vpack.c.b16 %v2527, %v2527
        %v2580 = vpack.c.b16 %v2539, %v2539
        %v2581 = vpack.c.b16 %v2551, %v2551
        %v2582 = vpack.c.b16 %v2563, %v2563
        %v2583 = vpack.c.b16 %v2575, %v2575
        %vm2592 = vcmask 1043456
        %vm2593 = vsmask.f32 3328
        %vm2594 = vmand %vm2592, %vm2593
        %v2595 = vsel %vm2594, %v2576, 0
        %v2596 = vsel %vm2594, %v2577, 0
        %v2597 = vsel %vm2594, %v2578, 0
        %v2598 = vsel %vm2594, %v2579, 0
        %v2599 = vsel %vm2594, %v2580, 0
        %v2600 = vsel %vm2594, %v2581, 0
        %v2601 = vsel %vm2594, %v2582, 0
        %v2602 = vsel %vm2594, %v2583, 0
        %v2603 = vrot.slane %v2159, 7
        %v2604 = vsel %vm2480, %v2603, %v2158
        %v2605 = vrot.slane %v2160, 6
        %v2606 = vsel %vm2216, %v2605, %v2604
        %v2607 = vrot.slane %v2161, 5
        %v2608 = vsel %vm2219, %v2607, %v2606
        %v2609 = vrot.slane %v2162, 4
        %v2610 = vsel %vm2222, %v2609, %v2608
        %v2611 = vrot.slane %v2163, 3
        %v2612 = vsel %vm2225, %v2611, %v2610
        %v2613 = vrot.slane %v2164, 2
        %v2614 = vsel %vm2228, %v2613, %v2612
        %v2615 = vrot.slane %v2471, 1
        %v2616 = vsel %vm2231, %v2615, %v2614
        %v2617 = vrot.slane %v2166, 7
        %v2618 = vsel %vm2480, %v2617, %v2165
        %v2619 = vrot.slane %v2167, 6
        %v2620 = vsel %vm2216, %v2619, %v2618
        %v2621 = vrot.slane %v2168, 5
        %v2622 = vsel %vm2219, %v2621, %v2620
        %v2623 = vrot.slane %v2169, 4
        %v2624 = vsel %vm2222, %v2623, %v2622
        %v2625 = vrot.slane %v2170, 3
        %v2626 = vsel %vm2225, %v2625, %v2624
        %v2627 = vrot.slane %v2171, 2
        %v2628 = vsel %vm2228, %v2627, %v2626
        %v2629 = vrot.slane %v2472, 1
        %v2630 = vsel %vm2231, %v2629, %v2628
        %v2631 = vrot.slane %v2173, 7
        %v2632 = vsel %vm2480, %v2631, %v2172
        %v2633 = vrot.slane %v2174, 6
        %v2634 = vsel %vm2216, %v2633, %v2632
        %v2635 = vrot.slane %v2175, 5
        %v2636 = vsel %vm2219, %v2635, %v2634
        %v2637 = vrot.slane %v2176, 4
        %v2638 = vsel %vm2222, %v2637, %v2636
        %v2639 = vrot.slane %v2177, 3
        %v2640 = vsel %vm2225, %v2639, %v2638
        %v2641 = vrot.slane %v2178, 2
        %v2642 = vsel %vm2228, %v2641, %v2640
        %v2643 = vrot.slane %v2473, 1
        %v2644 = vsel %vm2231, %v2643, %v2642
        %v2645 = vrot.slane %v2180, 7
        %v2646 = vsel %vm2480, %v2645, %v2179
        %v2647 = vrot.slane %v2181, 6
        %v2648 = vsel %vm2216, %v2647, %v2646
        %v2649 = vrot.slane %v2182, 5
        %v2650 = vsel %vm2219, %v2649, %v2648
        %v2651 = vrot.slane %v2183, 4
        %v2652 = vsel %vm2222, %v2651, %v2650
        %v2653 = vrot.slane %v2184, 3
        %v2654 = vsel %vm2225, %v2653, %v2652
        %v2655 = vrot.slane %v2185, 2
        %v2656 = vsel %vm2228, %v2655, %v2654
        %v2657 = vrot.slane %v2474, 1
        %v2658 = vsel %vm2231, %v2657, %v2656
        %v2659 = vrot.slane %v2187, 7
        %v2660 = vsel %vm2480, %v2659, %v2186
        %v2661 = vrot.slane %v2188, 6
        %v2662 = vsel %vm2216, %v2661, %v2660
        %v2663 = vrot.slane %v2189, 5
        %v2664 = vsel %vm2219, %v2663, %v2662
        %v2665 = vrot.slane %v2190, 4
        %v2666 = vsel %vm2222, %v2665, %v2664
        %v2667 = vrot.slane %v2191, 3
        %v2668 = vsel %vm2225, %v2667, %v2666
        %v2669 = vrot.slane %v2192, 2
        %v2670 = vsel %vm2228, %v2669, %v2668
        %v2671 = vrot.slane %v2475, 1
        %v2672 = vsel %vm2231, %v2671, %v2670
        %v2673 = vrot.slane %v2194, 7
        %v2674 = vsel %vm2480, %v2673, %v2193
        %v2675 = vrot.slane %v2195, 6
        %v2676 = vsel %vm2216, %v2675, %v2674
        %v2677 = vrot.slane %v2196, 5
        %v2678 = vsel %vm2219, %v2677, %v2676
        %v2679 = vrot.slane %v2197, 4
        %v2680 = vsel %vm2222, %v2679, %v2678
        %v2681 = vrot.slane %v2198, 3
        %v2682 = vsel %vm2225, %v2681, %v2680
        %v2683 = vrot.slane %v2199, 2
        %v2684 = vsel %vm2228, %v2683, %v2682
        %v2685 = vrot.slane %v2476, 1
        %v2686 = vsel %vm2231, %v2685, %v2684
        %v2687 = vrot.slane %v2201, 7
        %v2688 = vsel %vm2480, %v2687, %v2200
        %v2689 = vrot.slane %v2202, 6
        %v2690 = vsel %vm2216, %v2689, %v2688
        %v2691 = vrot.slane %v2203, 5
        %v2692 = vsel %vm2219, %v2691, %v2690
        %v2693 = vrot.slane %v2204, 4
        %v2694 = vsel %vm2222, %v2693, %v2692
        %v2695 = vrot.slane %v2205, 3
        %v2696 = vsel %vm2225, %v2695, %v2694
        %v2697 = vrot.slane %v2206, 2
        %v2698 = vsel %vm2228, %v2697, %v2696
        %v2699 = vrot.slane %v2477, 1
        %v2700 = vsel %vm2231, %v2699, %v2698
        %v2701 = vrot.slane %v2208, 7
        %v2702 = vsel %vm2480, %v2701, %v2207
        %v2703 = vrot.slane %v2209, 6
        %v2704 = vsel %vm2216, %v2703, %v2702
        %v2705 = vrot.slane %v2210, 5
        %v2706 = vsel %vm2219, %v2705, %v2704
        %v2707 = vrot.slane %v2211, 4
        %v2708 = vsel %vm2222, %v2707, %v2706
        %v2709 = vrot.slane %v2212, 3
        %v2710 = vsel %vm2225, %v2709, %v2708
        %v2711 = vrot.slane %v2213, 2
        %v2712 = vsel %vm2228, %v2711, %v2710
        %v2713 = vrot.slane %v2478, 1
        %v2714 = vsel %vm2231, %v2713, %v2712
        %v2715 = vpack.c.b16 %v2616, %v2616
        %v2716 = vpack.c.b16 %v2630, %v2630
        %v2717 = vpack.c.b16 %v2644, %v2644
        %v2718 = vpack.c.b16 %v2658, %v2658
        %v2719 = vpack.c.b16 %v2672, %v2672
        %v2720 = vpack.c.b16 %v2686, %v2686
        %v2721 = vpack.c.b16 %v2700, %v2700
        %v2722 = vpack.c.b16 %v2714, %v2714
        %2723 = vrot.lane.b32.xlu0 %v2715, 4
        %v2724 = vpop.permute.xlu0 %2723
        %2725 = vrot.lane.b32.xlu0 %v2716, 4
        %v2726 = vpop.permute.xlu0 %2725
        %2727 = vrot.lane.b32.xlu0 %v2717, 4
        %v2728 = vpop.permute.xlu0 %2727
        %2729 = vrot.lane.b32.xlu0 %v2718, 4
        %v2730 = vpop.permute.xlu0 %2729
        %2731 = vrot.lane.b32.xlu0 %v2719, 4
        %v2732 = vpop.permute.xlu0 %2731
        %2733 = vrot.lane.b32.xlu0 %v2720, 4
        %v2734 = vpop.permute.xlu0 %2733
        %2735 = vrot.lane.b32.xlu0 %v2721, 4
        %v2736 = vpop.permute.xlu0 %2735
        %2737 = vrot.lane.b32.xlu0 %v2722, 4
        %v2738 = vpop.permute.xlu0 %2737
        %2747 = vrot.lane.b32.xlu0 %v2595, 8
        %v2748 = vpop.permute.xlu0 %2747
        %2749 = vrot.lane.b32.xlu0 %v2596, 8
        %v2750 = vpop.permute.xlu0 %2749
        %2751 = vrot.lane.b32.xlu0 %v2597, 8
        %v2752 = vpop.permute.xlu0 %2751
        %2753 = vrot.lane.b32.xlu0 %v2598, 8
        %v2754 = vpop.permute.xlu0 %2753
        %2755 = vrot.lane.b32.xlu0 %v2599, 8
        %v2756 = vpop.permute.xlu0 %2755
        %2757 = vrot.lane.b32.xlu0 %v2600, 8
        %v2758 = vpop.permute.xlu0 %2757
        %2759 = vrot.lane.b32.xlu0 %v2601, 8
        %v2760 = vpop.permute.xlu0 %2759
        %2761 = vrot.lane.b32.xlu0 %v2602, 8
        %v2762 = vpop.permute.xlu0 %2761
        %vm2763 = vcmask 31744
        %v2766 = vsel %vm2763, %v2343, %v2724
        %v2769 = vsel %vm2763, %v2344, %v2726
        %v2772 = vsel %vm2763, %v2345, %v2728
        %v2775 = vsel %vm2763, %v2346, %v2730
        %v2778 = vsel %vm2763, %v2347, %v2732
        %v2781 = vsel %vm2763, %v2348, %v2734
        %v2784 = vsel %vm2763, %v2349, %v2736
        %v2787 = vsel %vm2763, %v2350, %v2738
        %vm2788 = vcmask 64512
        %v2790 = vsel %vm2788, %v2766, %v2748
        %v2793 = vsel %vm2788, %v2769, %v2750
        %v2796 = vsel %vm2788, %v2772, %v2752
        %v2799 = vsel %vm2788, %v2775, %v2754
        %v2802 = vsel %vm2788, %v2778, %v2756
        %v2805 = vsel %vm2788, %v2781, %v2758
        %v2808 = vsel %vm2788, %v2784, %v2760
        %v2811 = vsel %vm2788, %v2787, %v2762
        %s2813 = scalar_lea.vmem [#allocation2], 4
        %2814 = vst.msk [vmem:[%s2813] sm:$0xf] %vm1314, %v2790
        %2815 = vst.msk [vmem:[%s2813 + $0x4] sm:$0xf] %vm1314, %v2793
        %2816 = vst.msk [vmem:[%s2813 + $0x8] sm:$0xf] %vm1314, %v2796
        %2817 = vst.msk [vmem:[%s2813 + $0xc] sm:$0xf] %vm1314, %v2799
        %2818 = vst.msk [vmem:[%s2813 + $0x10] sm:$0xf] %vm1314, %v2802
        %2819 = vst.msk [vmem:[%s2813 + $0x14] sm:$0xf] %vm1314, %v2805
        %2820 = vst.msk [vmem:[%s2813 + $0x18] sm:$0xf] %vm1314, %v2808
        %2821 = vst.msk [vmem:[%s2813 + $0x1c] sm:$0xf] %vm1314, %v2811
        %v2822 = vld [vmem:[#allocation2] sm:$0xf]
        %v2823 = vld [vmem:[#allocation2 + $0x4] sm:$0xf]
        %v2824 = vld [vmem:[#allocation2 + $0x8] sm:$0xf]
        %v2825 = vld [vmem:[#allocation2 + $0xc] sm:$0xf]
        %v2826 = vld [vmem:[#allocation2 + $0x10] sm:$0xf]
        %v2827 = vld [vmem:[#allocation2 + $0x14] sm:$0xf]
        %v2828 = vld [vmem:[#allocation2 + $0x18] sm:$0xf]
        %v2829 = vld [vmem:[#allocation2 + $0x1c] sm:$0xf]
        %v2830 = vld [vmem:[%s1] sm:$0xf]
        %v2831 = vld [vmem:[%s1 + $0x4] sm:$0x3]
        %v2832 = vld [vmem:[%s2813] sm:$0xf]
        %v2833 = vld [vmem:[%s2813 + $0x4] sm:$0xf]
        %v2834 = vld [vmem:[%s2813 + $0x8] sm:$0xf]
        %v2835 = vld [vmem:[%s2813 + $0xc] sm:$0xf]
        %v2836 = vld [vmem:[%s2813 + $0x10] sm:$0xf]
        %v2837 = vld [vmem:[%s2813 + $0x14] sm:$0xf]
        %v2838 = vld [vmem:[%s2813 + $0x18] sm:$0xf]
        %v2839 = vld [vmem:[%s2813 + $0x1c] sm:$0xf]
        %s2840 = scalar_lea.vmem %s1, 8
        %v2841 = vld [vmem:[%s2840] sm:$0xf]
        %v2842 = vld [vmem:[%s2840 + $0x4] sm:$0x3]
        %v2851 = vunpack.c.l.b16 %v2832
        %v2852 = vunpack.c.l.b16 %v2833
        %v2853 = vunpack.c.l.b16 %v2834
        %v2854 = vunpack.c.l.b16 %v2835
        %v2855 = vunpack.c.l.b16 %v2836
        %v2856 = vunpack.c.l.b16 %v2837
        %v2857 = vunpack.c.l.b16 %v2838
        %v2858 = vunpack.c.l.b16 %v2839
        %v2859 = vpack.c.b16 %v2852, %v2851
        %v2860 = vpack.c.b16 %v2854, %v2853
        %v2861 = vpack.c.b16 %v2856, %v2855
        %v2862 = vpack.c.b16 %v2858, %v2857
        %v2865 = vunpack.c.l.b16 %v2841
        %v2866 = vunpack.c.l.b16 %v2842
        %v2867 = vpack.c.b16 %v2866, %v2865
        %vm2868 = vcmask 97280
        %v2870 = vsel %vm2868, %v2859, 0
        %v2873 = vsel %vm2868, %v2860, 0
        %v2876 = vsel %vm2868, %v2861, 0
        %v2879 = vsel %vm2868, %v2862, 0
        %vm2881 = vcmask 1045504
        %v2883 = vsel %vm2881, %v2867, 0
        %2885 = vmatprep.subr.bf16.mxu0 0
        %2886 = vmatpush1.bf16.msra.mxu0 %v2883
        %2887 = vmatprep.subr.bf16.mxu0 0
        %2888 = vmatpush1.bf16.msra.mxu0 0
        %2889 = vmatprep.subr.bf16.mxu0 0
        %2890 = vmatpush1.bf16.msra.mxu0 0
        %2891 = vmatprep.subr.bf16.mxu0 0
        %2892 = vmatpush1.bf16.msra.mxu0 0
        %2893 = vmatprep.subr.bf16.mxu0 0
        %2894 = vmatpush1.bf16.msra.mxu0 0
        %2895 = vmatprep.subr.bf16.mxu0 0
        %2896 = vmatpush1.bf16.msra.mxu0 0
        %2897 = vmatprep.subr.bf16.mxu0 0
        %2898 = vmatpush1.bf16.msra.mxu0 0
        %2899 = vmatprep.subr.bf16.mxu0 0
        %2900 = vmatpush1.bf16.msra.mxu0 0
        %2901 = vmatprep.subr.bf16.mxu0 0
        %2902 = vmatpush1.bf16.msra.mxu0 0
        %2903 = vmatprep.subr.bf16.mxu0 0
        %2904 = vmatpush1.bf16.msra.mxu0 0
        %2905 = vmatprep.subr.bf16.mxu0 0
        %2906 = vmatpush1.bf16.msra.mxu0 0
        %2907 = vmatprep.subr.bf16.mxu0 0
        %2908 = vmatpush1.bf16.msra.mxu0 0
        %2909 = vmatprep.subr.bf16.mxu0 0
        %2910 = vmatpush1.bf16.msra.mxu0 0
        %2911 = vmatprep.subr.bf16.mxu0 0
        %2912 = vmatpush1.bf16.msra.mxu0 0
        %2913 = vmatprep.subr.bf16.mxu0 0
        %2914 = vmatpush1.bf16.msra.mxu0 0
        %2915 = vmatprep.subr.bf16.mxu0 0
        %2916 = vmatpush1.bf16.msra.mxu0 0
        %2917 = vmatprep.mubr.bf16.mxu0 0
        %2918 = vmatmul.mubr.bf16.gmra.mrb[0].mxu0 %v2870
        %v2919 = vpop.f32.mrb[0].mxu0
        %v2920 = vadd.f32 0.0, %v2919
        %v2921 = vpop.f32.mrb[0].mxu0
        %v2922 = vpop.f32.mrb[0].mxu0
        %v2923 = vadd.f32 0.0, %v2922
        %v2924 = vpop.f32.mrb[0].mxu0
        %2925 = vmatprep.mubr.bf16.mxu0 0
        %2926 = vmatmul.mubr.bf16.gmra.mrb[0].mxu0 %v2873
        %v2927 = vpop.f32.mrb[0].mxu0
        %v2928 = vadd.f32 0.0, %v2927
        %v2929 = vpop.f32.mrb[0].mxu0
        %v2930 = vpop.f32.mrb[0].mxu0
        %v2931 = vadd.f32 0.0, %v2930
        %v2932 = vpop.f32.mrb[0].mxu0
        %2933 = vmatprep.mubr.bf16.mxu0 0
        %2934 = vmatmul.mubr.bf16.gmra.mrb[0].mxu0 %v2876
        %v2935 = vpop.f32.mrb[0].mxu0
        %v2936 = vadd.f32 0.0, %v2935
        %v2937 = vpop.f32.mrb[0].mxu0
        %v2938 = vpop.f32.mrb[0].mxu0
        %v2939 = vadd.f32 0.0, %v2938
        %v2940 = vpop.f32.mrb[0].mxu0
        %2941 = vmatprep.mubr.bf16.mxu0 0
        %2942 = vmatmul.mubr.bf16.gmra.mrb[0].mxu0 %v2879
        %v2943 = vpop.f32.mrb[0].mxu0
        %v2944 = vadd.f32 0.0, %v2943
        %v2945 = vpop.f32.mrb[0].mxu0
        %v2946 = vpop.f32.mrb[0].mxu0
        %v2947 = vadd.f32 0.0, %v2946
        %v2948 = vpop.f32.mrb[0].mxu0
        %2949 = vdwg.mxu0
        %v2958 = vunpack.c.l.b16 %v2822
        %v2959 = vunpack.c.l.b16 %v2823
        %v2960 = vunpack.c.l.b16 %v2824
        %v2961 = vunpack.c.l.b16 %v2825
        %v2962 = vunpack.c.l.b16 %v2826
        %v2963 = vunpack.c.l.b16 %v2827
        %v2964 = vunpack.c.l.b16 %v2828
        %v2965 = vunpack.c.l.b16 %v2829
        %v2966 = vpack.c.b16 %v2959, %v2958
        %v2967 = vpack.c.b16 %v2961, %v2960
        %v2968 = vpack.c.b16 %v2963, %v2962
        %v2969 = vpack.c.b16 %v2965, %v2964
        %v2972 = vunpack.c.l.b16 %v2830
        %v2973 = vunpack.c.l.b16 %v2831
        %v2974 = vpack.c.b16 %v2973, %v2972
        %v2976 = vsel %vm2868, %v2966, 0
        %v2979 = vsel %vm2868, %v2967, 0
        %v2982 = vsel %vm2868, %v2968, 0
        %v2985 = vsel %vm2868, %v2969, 0
        %v2988 = vsel %vm2881, %v2974, 0
        %2990 = vmatprep.subr.bf16.mxu0 0
        %2991 = vmatpush1.bf16.msra.mxu0 %v2988
        %2992 = vmatprep.subr.bf16.mxu0 0
        %2993 = vmatpush1.bf16.msra.mxu0 0
        %2994 = vmatprep.subr.bf16.mxu0 0
        %2995 = vmatpush1.bf16.msra.mxu0 0
        %2996 = vmatprep.subr.bf16.mxu0 0
        %2997 = vmatpush1.bf16.msra.mxu0 0
        %2998 = vmatprep.subr.bf16.mxu0 0
        %2999 = vmatpush1.bf16.msra.mxu0 0
        %3000 = vmatprep.subr.bf16.mxu0 0
        %3001 = vmatpush1.bf16.msra.mxu0 0
        %3002 = vmatprep.subr.bf16.mxu0 0
        %3003 = vmatpush1.bf16.msra.mxu0 0
        %3004 = vmatprep.subr.bf16.mxu0 0
        %3005 = vmatpush1.bf16.msra.mxu0 0
        %3006 = vmatprep.subr.bf16.mxu0 0
        %3007 = vmatpush1.bf16.msra.mxu0 0
        %3008 = vmatprep.subr.bf16.mxu0 0
        %3009 = vmatpush1.bf16.msra.mxu0 0
        %3010 = vmatprep.subr.bf16.mxu0 0
        %3011 = vmatpush1.bf16.msra.mxu0 0
        %3012 = vmatprep.subr.bf16.mxu0 0
        %3013 = vmatpush1.bf16.msra.mxu0 0
        %3014 = vmatprep.subr.bf16.mxu0 0
        %3015 = vmatpush1.bf16.msra.mxu0 0
        %3016 = vmatprep.subr.bf16.mxu0 0
        %3017 = vmatpush1.bf16.msra.mxu0 0
        %3018 = vmatprep.subr.bf16.mxu0 0
        %3019 = vmatpush1.bf16.msra.mxu0 0
        %3020 = vmatprep.subr.bf16.mxu0 0
        %3021 = vmatpush1.bf16.msra.mxu0 0
        %3022 = vmatprep.mubr.bf16.mxu0 0
        %3023 = vmatmul.mubr.bf16.gmra.mrb[0].mxu0 %v2976
        %v3024 = vpop.f32.mrb[0].mxu0
        %v3025 = vadd.f32 %v2920, %v3024
        %v3026 = vpop.f32.mrb[0].mxu0
        %v3027 = vpop.f32.mrb[0].mxu0
        %v3028 = vadd.f32 %v2923, %v3027
        %v3029 = vpop.f32.mrb[0].mxu0
        %3030 = vmatprep.mubr.bf16.mxu0 0
        %3031 = vmatmul.mubr.bf16.gmra.mrb[0].mxu0 %v2979
        %v3032 = vpop.f32.mrb[0].mxu0
        %v3033 = vadd.f32 %v2928, %v3032
        %v3034 = vpop.f32.mrb[0].mxu0
        %v3035 = vpop.f32.mrb[0].mxu0
        %v3036 = vadd.f32 %v2931, %v3035
        %v3037 = vpop.f32.mrb[0].mxu0
        %3038 = vmatprep.mubr.bf16.mxu0 0
        %3039 = vmatmul.mubr.bf16.gmra.mrb[0].mxu0 %v2982
        %v3040 = vpop.f32.mrb[0].mxu0
        %v3041 = vadd.f32 %v2936, %v3040
        %v3042 = vpop.f32.mrb[0].mxu0
        %v3043 = vpop.f32.mrb[0].mxu0
        %v3044 = vadd.f32 %v2939, %v3043
        %v3045 = vpop.f32.mrb[0].mxu0
        %3046 = vmatprep.mubr.bf16.mxu0 0
        %3047 = vmatmul.mubr.bf16.gmra.mrb[0].mxu0 %v2985
        %v3048 = vpop.f32.mrb[0].mxu0
        %v3049 = vadd.f32 %v2944, %v3048
        %v3050 = vpop.f32.mrb[0].mxu0
        %v3051 = vpop.f32.mrb[0].mxu0
        %v3052 = vadd.f32 %v2947, %v3051
        %v3053 = vpop.f32.mrb[0].mxu0
        %3054 = vdwg.mxu0
        %s3055 = scalar_lea.vmem [#allocation2], 8
        %v3056 = vld [vmem:[%s3055] sm:$0xf]
        %v3057 = vld [vmem:[%s3055 + $0x4] sm:$0xf]
        %v3058 = vld [vmem:[%s3055 + $0x8] sm:$0xf]
        %v3059 = vld [vmem:[%s3055 + $0xc] sm:$0xf]
        %v3060 = vld [vmem:[%s3055 + $0x10] sm:$0xf]
        %v3061 = vld [vmem:[%s3055 + $0x14] sm:$0xf]
        %v3062 = vld [vmem:[%s3055 + $0x18] sm:$0xf]
        %v3063 = vld [vmem:[%s3055 + $0x1c] sm:$0xf]
        %s3064 = scalar_lea.vmem %s1, 16
        %v3065 = vld [vmem:[%s3064] sm:$0xf]
        %v3066 = vld [vmem:[%s3064 + $0x4] sm:$0x3]
        %v3075 = vunpack.c.l.b16 %v3056
        %v3076 = vunpack.c.l.b16 %v3057
        %v3077 = vunpack.c.l.b16 %v3058
        %v3078 = vunpack.c.l.b16 %v3059
        %v3079 = vunpack.c.l.b16 %v3060
        %v3080 = vunpack.c.l.b16 %v3061
        %v3081 = vunpack.c.l.b16 %v3062
        %v3082 = vunpack.c.l.b16 %v3063
        %v3083 = vpack.c.b16 %v3076, %v3075
        %v3084 = vpack.c.b16 %v3078, %v3077
        %v3085 = vpack.c.b16 %v3080, %v3079
        %v3086 = vpack.c.b16 %v3082, %v3081
        %v3089 = vunpack.c.l.b16 %v3065
        %v3090 = vunpack.c.l.b16 %v3066
        %v3091 = vpack.c.b16 %v3090, %v3089
        %v3093 = vsel %vm2868, %v3083, 0
        %v3096 = vsel %vm2868, %v3084, 0
        %v3099 = vsel %vm2868, %v3085, 0
        %v3102 = vsel %vm2868, %v3086, 0
        %v3105 = vsel %vm2881, %v3091, 0
        %3107 = vmatprep.subr.bf16.mxu0 0
        %3108 = vmatpush1.bf16.msra.mxu0 %v3105
        %3109 = vmatprep.subr.bf16.mxu0 0
        %3110 = vmatpush1.bf16.msra.mxu0 0
        %3111 = vmatprep.subr.bf16.mxu0 0
        %3112 = vmatpush1.bf16.msra.mxu0 0
        %3113 = vmatprep.subr.bf16.mxu0 0
        %3114 = vmatpush1.bf16.msra.mxu0 0
        %3115 = vmatprep.subr.bf16.mxu0 0
        %3116 = vmatpush1.bf16.msra.mxu0 0
        %3117 = vmatprep.subr.bf16.mxu0 0
        %3118 = vmatpush1.bf16.msra.mxu0 0
        %3119 = vmatprep.subr.bf16.mxu0 0
        %3120 = vmatpush1.bf16.msra.mxu0 0
        %3121 = vmatprep.subr.bf16.mxu0 0
        %3122 = vmatpush1.bf16.msra.mxu0 0
        %3123 = vmatprep.subr.bf16.mxu0 0
        %3124 = vmatpush1.bf16.msra.mxu0 0
        %3125 = vmatprep.subr.bf16.mxu0 0
        %3126 = vmatpush1.bf16.msra.mxu0 0
        %3127 = vmatprep.subr.bf16.mxu0 0
        %3128 = vmatpush1.bf16.msra.mxu0 0
        %3129 = vmatprep.subr.bf16.mxu0 0
        %3130 = vmatpush1.bf16.msra.mxu0 0
        %3131 = vmatprep.subr.bf16.mxu0 0
        %3132 = vmatpush1.bf16.msra.mxu0 0
        %3133 = vmatprep.subr.bf16.mxu0 0
        %3134 = vmatpush1.bf16.msra.mxu0 0
        %3135 = vmatprep.subr.bf16.mxu0 0
        %3136 = vmatpush1.bf16.msra.mxu0 0
        %3137 = vmatprep.subr.bf16.mxu0 0
        %3138 = vmatpush1.bf16.msra.mxu0 0
        %3139 = vmatprep.mubr.bf16.mxu0 0
        %3140 = vmatmul.mubr.bf16.gmra.mrb[0].mxu0 %v3093
        %v3141 = vpop.f32.mrb[0].mxu0
        %v3142 = vadd.f32 0.0, %v3141
        %v3143 = vpop.f32.mrb[0].mxu0
        %v3144 = vpop.f32.mrb[0].mxu0
        %v3145 = vadd.f32 0.0, %v3144
        %v3146 = vpop.f32.mrb[0].mxu0
        %3147 = vmatprep.mubr.bf16.mxu0 0
        %3148 = vmatmul.mubr.bf16.gmra.mrb[0].mxu0 %v3096
        %v3149 = vpop.f32.mrb[0].mxu0
        %v3150 = vadd.f32 0.0, %v3149
        %v3151 = vpop.f32.mrb[0].mxu0
        %v3152 = vpop.f32.mrb[0].mxu0
        %v3153 = vadd.f32 0.0, %v3152
        %v3154 = vpop.f32.mrb[0].mxu0
        %3155 = vmatprep.mubr.bf16.mxu0 0
        %3156 = vmatmul.mubr.bf16.gmra.mrb[0].mxu0 %v3099
        %v3157 = vpop.f32.mrb[0].mxu0
        %v3158 = vadd.f32 0.0, %v3157
        %v3159 = vpop.f32.mrb[0].mxu0
        %v3160 = vpop.f32.mrb[0].mxu0
        %v3161 = vadd.f32 0.0, %v3160
        %v3162 = vpop.f32.mrb[0].mxu0
        %3163 = vmatprep.mubr.bf16.mxu0 0
        %3164 = vmatmul.mubr.bf16.gmra.mrb[0].mxu0 %v3102
        %v3165 = vpop.f32.mrb[0].mxu0
        %v3166 = vadd.f32 0.0, %v3165
        %v3167 = vpop.f32.mrb[0].mxu0
        %v3168 = vpop.f32.mrb[0].mxu0
        %v3169 = vadd.f32 0.0, %v3168
        %v3170 = vpop.f32.mrb[0].mxu0
        %3171 = vdwg.mxu0
        %v3172 = vadd.f32 %v3025, %v3142
        %v3173 = vadd.f32 %v3028, %v3145
        %v3174 = vadd.f32 %v3033, %v3150
        %v3175 = vadd.f32 %v3036, %v3153
        %v3176 = vadd.f32 %v3041, %v3158
        %v3177 = vadd.f32 %v3044, %v3161
        %v3178 = vadd.f32 %v3049, %v3166
        %v3179 = vadd.f32 %v3052, %v3169
        %v3180 = vld [vmem:[%s2] sm:$0x1]
        %v3182 = vlaneseq
        %v3183 = vshrl.u32 %v3182, 7
        %v3184 = vsub.s32 0, %v3183
        %v3185 = vrot.slane %v3180, %v3184
        %v3187 = vadd.f32 %v3172, %v3185
        %v3188 = vadd.f32 %v3173, %v3185
        %v3189 = vadd.f32 %v3174, %v3185
        %v3190 = vadd.f32 %v3175, %v3185
        %v3191 = vadd.f32 %v3176, %v3185
        %v3192 = vadd.f32 %v3177, %v3185
        %v3193 = vadd.f32 %v3178, %v3185
        %v3194 = vadd.f32 %v3179, %v3185
        %v3195 = vmax.f32 %v3187, 0.0
        %v3196 = vmax.f32 %v3188, 0.0
        %v3197 = vmax.f32 %v3189, 0.0
        %v3198 = vmax.f32 %v3190, 0.0
        %v3199 = vmax.f32 %v3191, 0.0
        %v3200 = vmax.f32 %v3192, 0.0
        %v3201 = vmax.f32 %v3193, 0.0
        %v3202 = vmax.f32 %v3194, 0.0
        %vm3203 = vcmask 191488
        %3204 = vst.msk [vmem:[#allocation3] sm:$0xf] %vm3203, 0
        %s3205 = scalar_lea.vmem [#allocation3], 36
        %3206 = vst.msk [vmem:[%s3205] sm:$0xf] %vm3203, 0
        %v3207 = vpack.c.bf16 %v3195, %v3195
        %v3208 = vpack.c.bf16 %v3196, %v3196
        %v3209 = vpack.c.bf16 %v3197, %v3197
        %v3210 = vpack.c.bf16 %v3198, %v3198
        %v3211 = vpack.c.bf16 %v3199, %v3199
        %v3212 = vpack.c.bf16 %v3200, %v3200
        %v3213 = vpack.c.bf16 %v3201, %v3201
        %v3214 = vpack.c.bf16 %v3202, %v3202
        %v3216 = vshrl.u32 %v3207, 16
        %v3218 = vrot.slane %v3216, 7
        %v3219 = vshll.u32 %v3207, 16
        %v3221 = vor.u32 %v3218, %v3219
        %v3223 = vshrl.u32 %v3208, 16
        %v3225 = vrot.slane %v3223, 7
        %v3226 = vshll.u32 %v3208, 16
        %v3228 = vor.u32 %v3225, %v3226
        %v3230 = vshrl.u32 %v3209, 16
        %v3232 = vrot.slane %v3230, 7
        %v3233 = vshll.u32 %v3209, 16
        %v3235 = vor.u32 %v3232, %v3233
        %v3237 = vshrl.u32 %v3210, 16
        %v3239 = vrot.slane %v3237, 7
        %v3240 = vshll.u32 %v3210, 16
        %v3242 = vor.u32 %v3239, %v3240
        %v3244 = vshrl.u32 %v3211, 16
        %v3246 = vrot.slane %v3244, 7
        %v3247 = vshll.u32 %v3211, 16
        %v3249 = vor.u32 %v3246, %v3247
        %v3251 = vshrl.u32 %v3212, 16
        %v3253 = vrot.slane %v3251, 7
        %v3254 = vshll.u32 %v3212, 16
        %v3256 = vor.u32 %v3253, %v3254
        %v3258 = vshrl.u32 %v3213, 16
        %v3260 = vrot.slane %v3258, 7
        %v3261 = vshll.u32 %v3213, 16
        %v3263 = vor.u32 %v3260, %v3261
        %v3265 = vshrl.u32 %v3214, 16
        %v3267 = vrot.slane %v3265, 7
        %v3268 = vshll.u32 %v3214, 16
        %v3270 = vor.u32 %v3267, %v3268
        %v3279 = vsel %vm2342, 0, %v3221
        %v3280 = vsel %vm2342, 0, %v3228
        %v3281 = vsel %vm2342, 0, %v3235
        %v3282 = vsel %vm2342, 0, %v3242
        %v3283 = vsel %vm2342, 0, %v3249
        %v3284 = vsel %vm2342, 0, %v3256
        %v3285 = vsel %vm2342, 0, %v3263
        %v3286 = vsel %vm2342, 0, %v3270
        %v3287 = vrot.slane %v3219, 1
        %v3288 = vor.u32 %v3216, %v3287
        %v3289 = vrot.slane %v3226, 1
        %v3290 = vor.u32 %v3223, %v3289
        %v3291 = vrot.slane %v3233, 1
        %v3292 = vor.u32 %v3230, %v3291
        %v3293 = vrot.slane %v3240, 1
        %v3294 = vor.u32 %v3237, %v3293
        %v3295 = vrot.slane %v3247, 1
        %v3296 = vor.u32 %v3244, %v3295
        %v3297 = vrot.slane %v3254, 1
        %v3298 = vor.u32 %v3251, %v3297
        %v3299 = vrot.slane %v3261, 1
        %v3300 = vor.u32 %v3258, %v3299
        %v3301 = vrot.slane %v3268, 1
        %v3302 = vor.u32 %v3265, %v3301
        %v3311 = vsel %vm2594, %v3288, 0
        %v3312 = vsel %vm2594, %v3290, 0
        %v3313 = vsel %vm2594, %v3292, 0
        %v3314 = vsel %vm2594, %v3294, 0
        %v3315 = vsel %vm2594, %v3296, 0
        %v3316 = vsel %vm2594, %v3298, 0
        %v3317 = vsel %vm2594, %v3300, 0
        %v3318 = vsel %vm2594, %v3302, 0
        %3327 = vrot.lane.b32.xlu0 %v3207, 8
        %v3328 = vpop.permute.xlu0 %3327
        %3329 = vrot.lane.b32.xlu0 %v3208, 8
        %v3330 = vpop.permute.xlu0 %3329
        %3331 = vrot.lane.b32.xlu0 %v3209, 8
        %v3332 = vpop.permute.xlu0 %3331
        %3333 = vrot.lane.b32.xlu0 %v3210, 8
        %v3334 = vpop.permute.xlu0 %3333
        %3335 = vrot.lane.b32.xlu0 %v3211, 8
        %v3336 = vpop.permute.xlu0 %3335
        %3337 = vrot.lane.b32.xlu0 %v3212, 8
        %v3338 = vpop.permute.xlu0 %3337
        %3339 = vrot.lane.b32.xlu0 %v3213, 8
        %v3340 = vpop.permute.xlu0 %3339
        %3341 = vrot.lane.b32.xlu0 %v3214, 8
        %v3342 = vpop.permute.xlu0 %3341
        %3351 = vrot.lane.b32.xlu0 %v3311, 16
        %v3352 = vpop.permute.xlu0 %3351
        %3353 = vrot.lane.b32.xlu0 %v3312, 16
        %v3354 = vpop.permute.xlu0 %3353
        %3355 = vrot.lane.b32.xlu0 %v3313, 16
        %v3356 = vpop.permute.xlu0 %3355
        %3357 = vrot.lane.b32.xlu0 %v3314, 16
        %v3358 = vpop.permute.xlu0 %3357
        %3359 = vrot.lane.b32.xlu0 %v3315, 16
        %v3360 = vpop.permute.xlu0 %3359
        %3361 = vrot.lane.b32.xlu0 %v3316, 16
        %v3362 = vpop.permute.xlu0 %3361
        %3363 = vrot.lane.b32.xlu0 %v3317, 16
        %v3364 = vpop.permute.xlu0 %3363
        %3365 = vrot.lane.b32.xlu0 %v3318, 16
        %v3366 = vpop.permute.xlu0 %3365
        %v3369 = vsel %vm2788, %v3279, %v3328
        %v3372 = vsel %vm2788, %v3280, %v3330
        %v3375 = vsel %vm2788, %v3281, %v3332
        %v3378 = vsel %vm2788, %v3282, %v3334
        %v3381 = vsel %vm2788, %v3283, %v3336
        %v3384 = vsel %vm2788, %v3284, %v3338
        %v3387 = vsel %vm2788, %v3285, %v3340
        %v3390 = vsel %vm2788, %v3286, %v3342
        %vm3391 = vcmask 130048
        %v3393 = vsel %vm3391, %v3369, %v3352
        %v3396 = vsel %vm3391, %v3372, %v3354
        %v3399 = vsel %vm3391, %v3375, %v3356
        %v3402 = vsel %vm3391, %v3378, %v3358
        %v3405 = vsel %vm3391, %v3381, %v3360
        %v3408 = vsel %vm3391, %v3384, %v3362
        %v3411 = vsel %vm3391, %v3387, %v3364
        %v3414 = vsel %vm3391, %v3390, %v3366
        %s3416 = scalar_lea.vmem [#allocation3], 4
        %3417 = vst.msk [vmem:[%s3416] sm:$0xf] %vm3203, %v3393
        %3418 = vst.msk [vmem:[%s3416 + $0x4] sm:$0xf] %vm3203, %v3396
        %3419 = vst.msk [vmem:[%s3416 + $0x8] sm:$0xf] %vm3203, %v3399
        %3420 = vst.msk [vmem:[%s3416 + $0xc] sm:$0xf] %vm3203, %v3402
        %3421 = vst.msk [vmem:[%s3416 + $0x10] sm:$0xf] %vm3203, %v3405
        %3422 = vst.msk [vmem:[%s3416 + $0x14] sm:$0xf] %vm3203, %v3408
        %3423 = vst.msk [vmem:[%s3416 + $0x18] sm:$0xf] %vm3203, %v3411
        %3424 = vst.msk [vmem:[%s3416 + $0x1c] sm:$0xf] %vm3203, %v3414
        %v3425 = vld [vmem:[#allocation3] sm:$0xf]
        %v3426 = vld [vmem:[#allocation3 + $0x4] sm:$0xf]
        %v3427 = vld [vmem:[#allocation3 + $0x8] sm:$0xf]
        %v3428 = vld [vmem:[#allocation3 + $0xc] sm:$0xf]
        %v3429 = vld [vmem:[#allocation3 + $0x10] sm:$0xf]
        %v3430 = vld [vmem:[#allocation3 + $0x14] sm:$0xf]
        %v3431 = vld [vmem:[#allocation3 + $0x18] sm:$0xf]
        %v3432 = vld [vmem:[#allocation3 + $0x1c] sm:$0xf]
        %v3433 = vld [vmem:[%s3] sm:$0xf]
        %v3434 = vld [vmem:[%s3 + $0x4] sm:$0xf]
        %v3435 = vld [vmem:[%s3 + $0x8] sm:$0xf]
        %v3436 = vld [vmem:[%s3416] sm:$0xf]
        %v3437 = vld [vmem:[%s3416 + $0x4] sm:$0xf]
        %v3438 = vld [vmem:[%s3416 + $0x8] sm:$0xf]
        %v3439 = vld [vmem:[%s3416 + $0xc] sm:$0xf]
        %v3440 = vld [vmem:[%s3416 + $0x10] sm:$0xf]
        %v3441 = vld [vmem:[%s3416 + $0x14] sm:$0xf]
        %v3442 = vld [vmem:[%s3416 + $0x18] sm:$0xf]
        %v3443 = vld [vmem:[%s3416 + $0x1c] sm:$0xf]
        %s3444 = scalar_lea.vmem %s3, 12
        %v3445 = vld [vmem:[%s3444] sm:$0xf]
        %v3446 = vld [vmem:[%s3444 + $0x4] sm:$0xf]
        %v3447 = vld [vmem:[%s3444 + $0x8] sm:$0xf]
        %v3456 = vunpack.c.l.b16 %v3436
        %v3457 = vunpack.c.l.b16 %v3437
        %v3458 = vunpack.c.l.b16 %v3438
        %v3459 = vunpack.c.l.b16 %v3439
        %v3460 = vunpack.c.l.b16 %v3440
        %v3461 = vunpack.c.l.b16 %v3441
        %v3462 = vunpack.c.l.b16 %v3442
        %v3463 = vunpack.c.l.b16 %v3443
        %v3464 = vpack.c.b16 %v3457, %v3456
        %v3465 = vpack.c.b16 %v3459, %v3458
        %v3466 = vpack.c.b16 %v3461, %v3460
        %v3467 = vpack.c.b16 %v3463, %v3462
        %v3471 = vunpack.c.l.b16 %v3445
        %v3472 = vunpack.c.l.b16 %v3446
        %v3473 = vunpack.c.l.b16 %v3447
        %v3474 = vpack.c.b16 %v3472, %v3471
        %v3475 = vpack.c.b16 %v3473, %v3473
        %vm3477 = vcmask 195584
        %v3479 = vsel %vm3477, %v3464, 0
        %v3482 = vsel %vm3477, %v3465, 0
        %v3485 = vsel %vm3477, %v3466, 0
        %v3488 = vsel %vm3477, %v3467, 0
        %vm3490 = vcmask 1043456
        %v3492 = vsel %vm3490, %v3475, 0
        %3494 = vmatprep.subr.bf16.mxu0 0
        %3495 = vmatpush1.bf16.msra.mxu0 %v3474
        %3496 = vmatprep.subr.bf16.mxu0 0
        %3497 = vmatpush1.bf16.msra.mxu0 %v3492
        %3498 = vmatprep.subr.bf16.mxu0 0
        %3499 = vmatpush1.bf16.msra.mxu0 0
        %3500 = vmatprep.subr.bf16.mxu0 0
        %3501 = vmatpush1.bf16.msra.mxu0 0
        %3502 = vmatprep.subr.bf16.mxu0 0
        %3503 = vmatpush1.bf16.msra.mxu0 0
        %3504 = vmatprep.subr.bf16.mxu0 0
        %3505 = vmatpush1.bf16.msra.mxu0 0
        %3506 = vmatprep.subr.bf16.mxu0 0
        %3507 = vmatpush1.bf16.msra.mxu0 0
        %3508 = vmatprep.subr.bf16.mxu0 0
        %3509 = vmatpush1.bf16.msra.mxu0 0
        %3510 = vmatprep.subr.bf16.mxu0 0
        %3511 = vmatpush1.bf16.msra.mxu0 0
        %3512 = vmatprep.subr.bf16.mxu0 0
        %3513 = vmatpush1.bf16.msra.mxu0 0
        %3514 = vmatprep.subr.bf16.mxu0 0
        %3515 = vmatpush1.bf16.msra.mxu0 0
        %3516 = vmatprep.subr.bf16.mxu0 0
        %3517 = vmatpush1.bf16.msra.mxu0 0
        %3518 = vmatprep.subr.bf16.mxu0 0
        %3519 = vmatpush1.bf16.msra.mxu0 0
        %3520 = vmatprep.subr.bf16.mxu0 0
        %3521 = vmatpush1.bf16.msra.mxu0 0
        %3522 = vmatprep.subr.bf16.mxu0 0
        %3523 = vmatpush1.bf16.msra.mxu0 0
        %3524 = vmatprep.subr.bf16.mxu0 0
        %3525 = vmatpush1.bf16.msra.mxu0 0
        %3526 = vmatprep.mubr.bf16.mxu0 0
        %3527 = vmatmul.mubr.bf16.gmra.mrb[0].mxu0 %v3479
        %v3528 = vpop.f32.mrb[0].mxu0
        %v3529 = vadd.f32 0.0, %v3528
        %v3530 = vpop.f32.mrb[0].mxu0
        %v3531 = vpop.f32.mrb[0].mxu0
        %v3532 = vadd.f32 0.0, %v3531
        %v3533 = vpop.f32.mrb[0].mxu0
        %3534 = vmatprep.mubr.bf16.mxu0 0
        %3535 = vmatmul.mubr.bf16.gmra.mrb[0].mxu0 %v3482
        %v3536 = vpop.f32.mrb[0].mxu0
        %v3537 = vadd.f32 0.0, %v3536
        %v3538 = vpop.f32.mrb[0].mxu0
        %v3539 = vpop.f32.mrb[0].mxu0
        %v3540 = vadd.f32 0.0, %v3539
        %v3541 = vpop.f32.mrb[0].mxu0
        %3542 = vmatprep.mubr.bf16.mxu0 0
        %3543 = vmatmul.mubr.bf16.gmra.mrb[0].mxu0 %v3485
        %v3544 = vpop.f32.mrb[0].mxu0
        %v3545 = vadd.f32 0.0, %v3544
        %v3546 = vpop.f32.mrb[0].mxu0
        %v3547 = vpop.f32.mrb[0].mxu0
        %v3548 = vadd.f32 0.0, %v3547
        %v3549 = vpop.f32.mrb[0].mxu0
        %3550 = vmatprep.mubr.bf16.mxu0 0
        %3551 = vmatmul.mubr.bf16.gmra.mrb[0].mxu0 %v3488
        %v3552 = vpop.f32.mrb[0].mxu0
        %v3553 = vadd.f32 0.0, %v3552
        %v3554 = vpop.f32.mrb[0].mxu0
        %v3555 = vpop.f32.mrb[0].mxu0
        %v3556 = vadd.f32 0.0, %v3555
        %v3557 = vpop.f32.mrb[0].mxu0
        %3558 = vdwg.mxu0
        %v3567 = vunpack.c.l.b16 %v3425
        %v3568 = vunpack.c.l.b16 %v3426
        %v3569 = vunpack.c.l.b16 %v3427
        %v3570 = vunpack.c.l.b16 %v3428
        %v3571 = vunpack.c.l.b16 %v3429
        %v3572 = vunpack.c.l.b16 %v3430
        %v3573 = vunpack.c.l.b16 %v3431
        %v3574 = vunpack.c.l.b16 %v3432
        %v3575 = vpack.c.b16 %v3568, %v3567
        %v3576 = vpack.c.b16 %v3570, %v3569
        %v3577 = vpack.c.b16 %v3572, %v3571
        %v3578 = vpack.c.b16 %v3574, %v3573
        %v3582 = vunpack.c.l.b16 %v3433
        %v3583 = vunpack.c.l.b16 %v3434
        %v3584 = vunpack.c.l.b16 %v3435
        %v3585 = vpack.c.b16 %v3583, %v3582
        %v3586 = vpack.c.b16 %v3584, %v3584
        %v3589 = vsel %vm3477, %v3575, 0
        %v3592 = vsel %vm3477, %v3576, 0
        %v3595 = vsel %vm3477, %v3577, 0
        %v3598 = vsel %vm3477, %v3578, 0
        %v3601 = vsel %vm3490, %v3586, 0
        %3603 = vmatprep.subr.bf16.mxu0 0
        %3604 = vmatpush1.bf16.msra.mxu0 %v3585
        %3605 = vmatprep.subr.bf16.mxu0 0
        %3606 = vmatpush1.bf16.msra.mxu0 %v3601
        %3607 = vmatprep.subr.bf16.mxu0 0
        %3608 = vmatpush1.bf16.msra.mxu0 0
        %3609 = vmatprep.subr.bf16.mxu0 0
        %3610 = vmatpush1.bf16.msra.mxu0 0
        %3611 = vmatprep.subr.bf16.mxu0 0
        %3612 = vmatpush1.bf16.msra.mxu0 0
        %3613 = vmatprep.subr.bf16.mxu0 0
        %3614 = vmatpush1.bf16.msra.mxu0 0
        %3615 = vmatprep.subr.bf16.mxu0 0
        %3616 = vmatpush1.bf16.msra.mxu0 0
        %3617 = vmatprep.subr.bf16.mxu0 0
        %3618 = vmatpush1.bf16.msra.mxu0 0
        %3619 = vmatprep.subr.bf16.mxu0 0
        %3620 = vmatpush1.bf16.msra.mxu0 0
        %3621 = vmatprep.subr.bf16.mxu0 0
        %3622 = vmatpush1.bf16.msra.mxu0 0
        %3623 = vmatprep.subr.bf16.mxu0 0
        %3624 = vmatpush1.bf16.msra.mxu0 0
        %3625 = vmatprep.subr.bf16.mxu0 0
        %3626 = vmatpush1.bf16.msra.mxu0 0
        %3627 = vmatprep.subr.bf16.mxu0 0
        %3628 = vmatpush1.bf16.msra.mxu0 0
        %3629 = vmatprep.subr.bf16.mxu0 0
        %3630 = vmatpush1.bf16.msra.mxu0 0
        %3631 = vmatprep.subr.bf16.mxu0 0
        %3632 = vmatpush1.bf16.msra.mxu0 0
        %3633 = vmatprep.subr.bf16.mxu0 0
        %3634 = vmatpush1.bf16.msra.mxu0 0
        %3635 = vmatprep.mubr.bf16.mxu0 0
        %3636 = vmatmul.mubr.bf16.gmra.mrb[0].mxu0 %v3589
        %v3637 = vpop.f32.mrb[0].mxu0
        %v3638 = vadd.f32 %v3529, %v3637
        %v3639 = vpop.f32.mrb[0].mxu0
        %v3640 = vpop.f32.mrb[0].mxu0
        %v3641 = vadd.f32 %v3532, %v3640
        %v3642 = vpop.f32.mrb[0].mxu0
        %3643 = vmatprep.mubr.bf16.mxu0 0
        %3644 = vmatmul.mubr.bf16.gmra.mrb[0].mxu0 %v3592
        %v3645 = vpop.f32.mrb[0].mxu0
        %v3646 = vadd.f32 %v3537, %v3645
        %v3647 = vpop.f32.mrb[0].mxu0
        %v3648 = vpop.f32.mrb[0].mxu0
        %v3649 = vadd.f32 %v3540, %v3648
        %v3650 = vpop.f32.mrb[0].mxu0
        %3651 = vmatprep.mubr.bf16.mxu0 0
        %3652 = vmatmul.mubr.bf16.gmra.mrb[0].mxu0 %v3595
        %v3653 = vpop.f32.mrb[0].mxu0
        %v3654 = vadd.f32 %v3545, %v3653
        %v3655 = vpop.f32.mrb[0].mxu0
        %v3656 = vpop.f32.mrb[0].mxu0
        %v3657 = vadd.f32 %v3548, %v3656
        %v3658 = vpop.f32.mrb[0].mxu0
        %3659 = vmatprep.mubr.bf16.mxu0 0
        %3660 = vmatmul.mubr.bf16.gmra.mrb[0].mxu0 %v3598
        %v3661 = vpop.f32.mrb[0].mxu0
        %v3662 = vadd.f32 %v3553, %v3661
        %v3663 = vpop.f32.mrb[0].mxu0
        %v3664 = vpop.f32.mrb[0].mxu0
        %v3665 = vadd.f32 %v3556, %v3664
        %v3666 = vpop.f32.mrb[0].mxu0
        %3667 = vdwg.mxu0
        %s3668 = scalar_lea.vmem [#allocation3], 8
        %v3669 = vld [vmem:[%s3668] sm:$0xf]
        %v3670 = vld [vmem:[%s3668 + $0x4] sm:$0xf]
        %v3671 = vld [vmem:[%s3668 + $0x8] sm:$0xf]
        %v3672 = vld [vmem:[%s3668 + $0xc] sm:$0xf]
        %v3673 = vld [vmem:[%s3668 + $0x10] sm:$0xf]
        %v3674 = vld [vmem:[%s3668 + $0x14] sm:$0xf]
        %v3675 = vld [vmem:[%s3668 + $0x18] sm:$0xf]
        %v3676 = vld [vmem:[%s3668 + $0x1c] sm:$0xf]
        %s3677 = scalar_lea.vmem %s3, 24
        %v3678 = vld [vmem:[%s3677] sm:$0xf]
        %v3679 = vld [vmem:[%s3677 + $0x4] sm:$0xf]
        %v3680 = vld [vmem:[%s3677 + $0x8] sm:$0xf]
        %v3689 = vunpack.c.l.b16 %v3669
        %v3690 = vunpack.c.l.b16 %v3670
        %v3691 = vunpack.c.l.b16 %v3671
        %v3692 = vunpack.c.l.b16 %v3672
        %v3693 = vunpack.c.l.b16 %v3673
        %v3694 = vunpack.c.l.b16 %v3674
        %v3695 = vunpack.c.l.b16 %v3675
        %v3696 = vunpack.c.l.b16 %v3676
        %v3697 = vpack.c.b16 %v3690, %v3689
        %v3698 = vpack.c.b16 %v3692, %v3691
        %v3699 = vpack.c.b16 %v3694, %v3693
        %v3700 = vpack.c.b16 %v3696, %v3695
        %v3704 = vunpack.c.l.b16 %v3678
        %v3705 = vunpack.c.l.b16 %v3679
        %v3706 = vunpack.c.l.b16 %v3680
        %v3707 = vpack.c.b16 %v3705, %v3704
        %v3708 = vpack.c.b16 %v3706, %v3706
        %v3711 = vsel %vm3477, %v3697, 0
        %v3714 = vsel %vm3477, %v3698, 0
        %v3717 = vsel %vm3477, %v3699, 0
        %v3720 = vsel %vm3477, %v3700, 0
        %v3723 = vsel %vm3490, %v3708, 0
        %3725 = vmatprep.subr.bf16.mxu0 0
        %3726 = vmatpush1.bf16.msra.mxu0 %v3707
        %3727 = vmatprep.subr.bf16.mxu0 0
        %3728 = vmatpush1.bf16.msra.mxu0 %v3723
        %3729 = vmatprep.subr.bf16.mxu0 0
        %3730 = vmatpush1.bf16.msra.mxu0 0
        %3731 = vmatprep.subr.bf16.mxu0 0
        %3732 = vmatpush1.bf16.msra.mxu0 0
        %3733 = vmatprep.subr.bf16.mxu0 0
        %3734 = vmatpush1.bf16.msra.mxu0 0
        %3735 = vmatprep.subr.bf16.mxu0 0
        %3736 = vmatpush1.bf16.msra.mxu0 0
        %3737 = vmatprep.subr.bf16.mxu0 0
        %3738 = vmatpush1.bf16.msra.mxu0 0
        %3739 = vmatprep.subr.bf16.mxu0 0
        %3740 = vmatpush1.bf16.msra.mxu0 0
        %3741 = vmatprep.subr.bf16.mxu0 0
        %3742 = vmatpush1.bf16.msra.mxu0 0
        %3743 = vmatprep.subr.bf16.mxu0 0
        %3744 = vmatpush1.bf16.msra.mxu0 0
        %3745 = vmatprep.subr.bf16.mxu0 0
        %3746 = vmatpush1.bf16.msra.mxu0 0
        %3747 = vmatprep.subr.bf16.mxu0 0
        %3748 = vmatpush1.bf16.msra.mxu0 0
        %3749 = vmatprep.subr.bf16.mxu0 0
        %3750 = vmatpush1.bf16.msra.mxu0 0
        %3751 = vmatprep.subr.bf16.mxu0 0
        %3752 = vmatpush1.bf16.msra.mxu0 0
        %3753 = vmatprep.subr.bf16.mxu0 0
        %3754 = vmatpush1.bf16.msra.mxu0 0
        %3755 = vmatprep.subr.bf16.mxu0 0
        %3756 = vmatpush1.bf16.msra.mxu0 0
        %3757 = vmatprep.mubr.bf16.mxu0 0
        %3758 = vmatmul.mubr.bf16.gmra.mrb[0].mxu0 %v3711
        %v3759 = vpop.f32.mrb[0].mxu0
        %v3760 = vadd.f32 0.0, %v3759
        %v3761 = vpop.f32.mrb[0].mxu0
        %v3762 = vpop.f32.mrb[0].mxu0
        %v3763 = vadd.f32 0.0, %v3762
        %v3764 = vpop.f32.mrb[0].mxu0
        %3765 = vmatprep.mubr.bf16.mxu0 0
        %3766 = vmatmul.mubr.bf16.gmra.mrb[0].mxu0 %v3714
        %v3767 = vpop.f32.mrb[0].mxu0
        %v3768 = vadd.f32 0.0, %v3767
        %v3769 = vpop.f32.mrb[0].mxu0
        %v3770 = vpop.f32.mrb[0].mxu0
        %v3771 = vadd.f32 0.0, %v3770
        %v3772 = vpop.f32.mrb[0].mxu0
        %3773 = vmatprep.mubr.bf16.mxu0 0
        %3774 = vmatmul.mubr.bf16.gmra.mrb[0].mxu0 %v3717
        %v3775 = vpop.f32.mrb[0].mxu0
        %v3776 = vadd.f32 0.0, %v3775
        %v3777 = vpop.f32.mrb[0].mxu0
        %v3778 = vpop.f32.mrb[0].mxu0
        %v3779 = vadd.f32 0.0, %v3778
        %v3780 = vpop.f32.mrb[0].mxu0
        %3781 = vmatprep.mubr.bf16.mxu0 0
        %3782 = vmatmul.mubr.bf16.gmra.mrb[0].mxu0 %v3720
        %v3783 = vpop.f32.mrb[0].mxu0
        %v3784 = vadd.f32 0.0, %v3783
        %v3785 = vpop.f32.mrb[0].mxu0
        %v3786 = vpop.f32.mrb[0].mxu0
        %v3787 = vadd.f32 0.0, %v3786
        %v3788 = vpop.f32.mrb[0].mxu0
        %3789 = vdwg.mxu0
        %v3790 = vadd.f32 %v3638, %v3760
        %v3791 = vadd.f32 %v3641, %v3763
        %v3792 = vadd.f32 %v3646, %v3768
        %v3793 = vadd.f32 %v3649, %v3771
        %v3794 = vadd.f32 %v3654, %v3776
        %v3795 = vadd.f32 %v3657, %v3779
        %v3796 = vadd.f32 %v3662, %v3784
        %v3797 = vadd.f32 %v3665, %v3787
        %v3798 = vld [vmem:[%s4] sm:$0x1]
        %v3800 = vlaneseq
        %v3801 = vshrl.u32 %v3800, 7
        %v3802 = vsub.s32 0, %v3801
        %v3803 = vrot.slane %v3798, %v3802
        %v3805 = vadd.f32 %v3790, %v3803
        %v3806 = vadd.f32 %v3791, %v3803
        %v3807 = vadd.f32 %v3792, %v3803
        %v3808 = vadd.f32 %v3793, %v3803
        %v3809 = vadd.f32 %v3794, %v3803
        %v3810 = vadd.f32 %v3795, %v3803
        %v3811 = vadd.f32 %v3796, %v3803
        %v3812 = vadd.f32 %v3797, %v3803
        %v3813 = vmax.f32 %v3805, 0.0
        %v3814 = vmax.f32 %v3806, 0.0
        %v3815 = vmax.f32 %v3807, 0.0
        %v3816 = vmax.f32 %v3808, 0.0
        %v3817 = vmax.f32 %v3809, 0.0
        %v3818 = vmax.f32 %v3810, 0.0
        %v3819 = vmax.f32 %v3811, 0.0
        %v3820 = vmax.f32 %v3812, 0.0
        %3821 = vst.msk [vmem:[%s218] sm:$0xff] %vm2788, %v3813
        %3822 = vst.msk [vmem:[%s218 + $0x8] sm:$0xff] %vm2788, %v3814
        %3823 = vst.msk [vmem:[%s218 + $0x10] sm:$0xff] %vm2788, %v3815
        %3824 = vst.msk [vmem:[%s218 + $0x18] sm:$0xff] %vm2788, %v3816
        %3825 = vst.msk [vmem:[%s218 + $0x20] sm:$0xff] %vm2788, %v3817
        %3826 = vst.msk [vmem:[%s218 + $0x28] sm:$0xff] %vm2788, %v3818
        %3827 = vst.msk [vmem:[%s218 + $0x30] sm:$0xff] %vm2788, %v3819
        %3828 = vst.msk [vmem:[%s218 + $0x38] sm:$0xff] %vm2788, %v3820
        %s3829 = sand.u32 %s137, 1
        %s3830 = scalar_lea.sflag [#allocation5], %s3829
        %s3831 = sand.u32 %s137, 1
        %s3832 = smul.addr %s3831, 64
        %s3833 = scalar_lea.vmem [#allocation4], %s3832
        // Predicated region
        $region41: #{tpu_custom_call.1} parent=39 // pred_check
          %p3834 = pneg %p147
        $region42: #{tpu_custom_call.1} parent=39 // pred_check_branch
          %3836 = sbr.rel (%p3834) target = $region44
        $region43: #{tpu_custom_call.1} parent=39 // pred_region
          %s3838 = ssub.s32 1024, 1024
          %3839 = vsyncadd %s3830, %s3838
          %s3840 = smul.addr %s19, 8
          %s3841 = smul.addr %s3840, 128
          %s3842 = scalar_lea.hbm %s5, %s3841
          %s3843 = sshll.u32 %s3833, 4
          %s3844 = int_to_ptr.vmem [resolvable:$true] %s3843
          %3849 = dma.vmem_to_hbm [thread:$0]  %s3844, 1024, %s3842, %s3830, 128, 128, 8
        $region44: #{tpu_custom_call.1} parent=39 // pred_fallthru
          _
      $region40: #{tpu_custom_call.1} parent=5 // pred_fallthru
        _
      %p3850 = scmp.le.s32.totalorder 2, %s14
      // Predicated region
      $region45: #{tpu_custom_call.1} parent=5 // pred_check
        %p3851 = pneg %p3850
      $region46: #{tpu_custom_call.1} parent=5 // pred_check_branch
        %3853 = sbr.rel (%p3851) target = $region48
      $region47: #{tpu_custom_call.1} parent=5 // pred_region
        %s3854 = ssub.s32 %s14, 2
        // Predicated region
        $region49: #{tpu_custom_call.1} parent=47 // pred_check
          %p3855 = pneg %p153
        $region50: #{tpu_custom_call.1} parent=47 // pred_check_branch
          %3857 = sbr.rel (%p3855) target = $region52
        $region51: #{tpu_custom_call.1} parent=47 // pred_region
          %s3858 = sand.u32 %s138, 1
          %s3859 = scalar_lea.sflag [#allocation5], %s3858
          %s3860 = sand.u32 %s138, 1
          %s3861 = smul.addr %s3860, 64
          %s3862 = scalar_lea.vmem [#allocation4], %s3861
          %3863 = dma.done %s3859, 1024
        $region52: #{tpu_custom_call.1} parent=47 // pred_fallthru
          _
      $region48: #{tpu_custom_call.1} parent=5 // pred_fallthru
        _
    $region6: #{tpu_custom_call.1} parent=1 // loop_footer
      %s18 = sadd.s32 1, %s14
    $region7: #{tpu_custom_call.1} parent=1 // loop_footer_branch
      %13 = sbr.rel target = $region3
    $region8: #{tpu_custom_call.1} parent=1 // loop_exit
      _
    %3864 = vsyncpa [#allocation5], 1
    %s3865 = scalar_lea.sflag [#allocation5], 1
    %3866 = vsyncpa %s3865, 1

</llo_original>
